<compile_context>
chip_gen: v5e
topology: v5e:2x2
jax: 0.10.0
libtpu: 0.0.40
codegen_flags: <defaults>
</compile_context>

<pallas_src>
import functools

import jax
import jax.numpy as jnp
from jax.experimental import pallas as pl
from jax.experimental.pallas import tpu as pltpu


def _round_up(v: int, m: int) -> int:
    return ((v + m - 1) // m) * m


def _nearest_map_matrix(H: int, W: int, s: int, dtype):
    # Output column j encodes (h, r, w, c) over shapes (H, s, W, s); it reads
    # input element (h, w) -> flat lane h*W + w.  Exactly one 1.0 per column.
    j = jnp.arange(H * s * W * s, dtype=jnp.int32)
    h = j // (s * W * s)
    w = (j // s) % W
    src = h * W + w                                        # (H*s*W*s,)
    rows = jnp.arange(H * W, dtype=jnp.int32)
    return (rows[:, None] == src[None, :]).astype(dtype)   # (H*W, H*s*W*s)


def _upsample_kernel(m_ref, x_ref, o_ref, *, exact_f32: bool):
    # x_ref: (TN, H*W) lane-dense rows; m_ref: (H*W, H*s*W*s) one-hot map.
    # One MXU matmul performs the whole nearest-neighbour lane mapping.
    x = x_ref[...]
    if exact_f32:
        x = x.astype(jnp.float32)          # no-op for f32; exact upcast for f16
        prec = jax.lax.Precision.HIGHEST   # multi-pass f32 -> bit-exact copy
    else:
        prec = jax.lax.Precision.DEFAULT   # bf16: single exact MXU pass
    o_ref[...] = jnp.dot(
        x, m_ref[...], precision=prec, preferred_element_type=jnp.float32
    ).astype(o_ref.dtype)


@functools.partial(jax.jit, static_argnames=("scale_factor", "mode"))
def quaternion_upsample(x, scale_factor: int = 2, mode: str = "nearest"):
    """Pallas implementation of QuaternionUpsample.forward.

    x: (B, C, Q, H, W). Returns (B, C, Q, H*scale, W*scale), same dtype.
    """
    assert mode == "nearest", "only 'nearest' mode implemented"
    s = int(scale_factor)
    assert s == scale_factor and s >= 1, "scale_factor must be a positive integer"
    assert jnp.issubdtype(x.dtype, jnp.floating), "floating-point inputs expected"

    B, C, Q, H, W = x.shape
    if s == 1:
        return x

    N = B * C * Q
    hw_in = H * W
    hw_out = hw_in * s * s
    itemsize = jnp.dtype(x.dtype).itemsize
    sub = {4: 8, 2: 16, 1: 32}.get(itemsize, 8)      # sublane tile for this dtype

    exact_f32 = x.dtype != jnp.bfloat16
    map_dtype = jnp.float32 if exact_f32 else jnp.bfloat16
    map_bytes = hw_in * hw_out * jnp.dtype(map_dtype).itemsize

    # --- generation-aware tile sizing --------------------------------------
    try:
        vmem_cap = int(pltpu.get_tpu_info().vmem_capacity_bytes)
    except Exception:
        vmem_cap = 64 << 20                          # conservative fallback
    if vmem_cap >= (100 << 20):                      # v5e / v6e: 128 MiB VMEM
        payload_budget = 16 << 20                    # in+out bytes per grid step
        multi_core = False                           # single TensorCore
    else:                                            # v7x (64 MiB) or unknown
        payload_budget = 6 << 20
        multi_core = True                            # two TCs share the grid
    # Scalability guard: the (double-buffered) map eats VMEM; shrink payload.
    payload_budget = max(2 << 20, payload_budget - 2 * map_bytes)

    bytes_per_row = (hw_in + hw_out) * itemsize
    tn = max(sub, payload_budget // bytes_per_row)
    tn = min(tn, _round_up(N, sub))                  # tiny inputs: one small block
    if multi_core and N > sub:
        tn = min(tn, _round_up(-(-N // 2), sub))     # >=2 steps for megacore split
    tn = max(sub, (tn // sub) * sub)
    grid = pl.cdiv(N, tn)                            # ragged last block, no padding

    vmem_limit = int(
        min(vmem_cap - (4 << 20),
            max(32 << 20, 2 * map_bytes + 2 * tn * bytes_per_row + (2 << 20)))
    )

    xr = x.reshape(N, hw_in)                         # free reshape, contiguous
    mmap = _nearest_map_matrix(H, W, s, map_dtype)   # constant one-hot map

    out = pl.pallas_call(
        functools.partial(_upsample_kernel, exact_f32=exact_f32),
        out_shape=jax.ShapeDtypeStruct((N, hw_out), x.dtype),
        grid=(grid,),
        in_specs=[
            # constant block index -> DMA'd into VMEM once, reused every step
            pl.BlockSpec((hw_in, hw_out), lambda i: (0, 0)),
            pl.BlockSpec((tn, hw_in), lambda i: (i, 0)),
        ],
        out_specs=pl.BlockSpec((tn, hw_out), lambda i: (i, 0)),
        compiler_params=pltpu.CompilerParams(
            dimension_semantics=("parallel",),
            vmem_limit_bytes=vmem_limit,
        ),
        cost_estimate=pl.CostEstimate(
            flops=0,
            transcendentals=0,
            bytes_accessed=N * bytes_per_row + map_bytes,
        ),
    )(mmap, xr)

    return out.reshape(B, C, Q, H * s, W * s)


def _reference(x, scale_factor=2):
    # Pure-JAX reference: nearest upsample of the last two axes.
    y = jnp.repeat(x, scale_factor, axis=-2)
    y = jnp.repeat(y, scale_factor, axis=-1)
    return y


if __name__ == "__main__":
    key = jax.random.PRNGKey(0)
    # Small shapes consistent with the module: B=2, C=4, Q=4 (quaternion), H=W=16.
    B, C, Q, H, W = 2, 4, 4, 16, 16
    x = jax.random.normal(key, (B, C, Q, H, W), dtype=jnp.float32)

    # f32 path: must be a bit-exact copy (nearest interpolation is a pure copy).
    y = quaternion_upsample(x, scale_factor=2, mode="nearest")
    y = jax.block_until_ready(y)
    y_ref = _reference(x, scale_factor=2)
    assert y.shape == (B, C, Q, H * 2, W * 2), y.shape
    assert y.dtype == x.dtype
    assert jnp.allclose(y, y_ref), "mismatch vs reference nearest upsample (f32)"
    assert jnp.array_equal(y, y_ref), "f32 nearest upsample is not bit-exact"

    # bf16 fast path (single-pass MXU): also a bit-exact copy.
    x_bf = x.astype(jnp.bfloat16)
    y_bf = jax.block_until_ready(quaternion_upsample(x_bf, scale_factor=2))
    assert y_bf.dtype == jnp.bfloat16
    assert jnp.array_equal(y_bf, _reference(x_bf, 2)), "bf16 path not bit-exact"

    print("KERNEL_OK")
</pallas_src>

<mosaic_0001>
module attributes {stable_mosaic.version = 11 : i64} {
  func.func @_upsample_kernel(%arg0: i32, %arg1: memref<256x1024xf32, #tpu.memory_space<vmem>>, %arg2: memref<16x256xf32, #tpu.memory_space<vmem>>, %arg3: memref<16x1024xf32, #tpu.memory_space<vmem>>) attributes {dimension_semantics = [#tpu.dimension_semantics<parallel>], iteration_bounds = array<i64: 2>, scalar_prefetch = 0 : i64, scratch_operands = 0 : i64, tpu.core_type = #tpu.core_type<tc>, window_params = [{pipeline_mode = #tpu.pipeline_mode<synchronous>, transform_indices = @transform_0, window_bounds = array<i64: 256, 1024>}, {transform_indices = @transform_1, window_bounds = array<i64: 16, 256>}, {transform_indices = @transform_2, window_bounds = array<i64: 16, 1024>}]} {
    %c0 = arith.constant 0 : index
    %c0_0 = arith.constant 0 : index
    %0 = vector.load %arg2[%c0, %c0_0] : memref<16x256xf32, #tpu.memory_space<vmem>>, vector<16x256xf32>
    %c0_1 = arith.constant 0 : index
    %c0_2 = arith.constant 0 : index
    %1 = vector.load %arg1[%c0_1, %c0_2] : memref<256x1024xf32, #tpu.memory_space<vmem>>, vector<256x1024xf32>
    %cst = arith.constant dense<0.000000e+00> : vector<16x1024xf32>
    %2 = tpu.matmul %0, %1, %cst {dimension_numbers = #tpu.dot_dimension_numbers<[1], [0], [0], [1], [0, 0, 1, 1], [], []>, precision = #tpu.contract_precision<fp32>} : vector<16x256xf32>, vector<256x1024xf32>, vector<16x1024xf32> -> vector<16x1024xf32>
    %c0_3 = arith.constant 0 : index
    %c0_4 = arith.constant 0 : index
    %3 = vector.load %arg3[%c0_3, %c0_4] : memref<16x1024xf32, #tpu.memory_space<vmem>>, vector<16x1024xf32>
    tpu.vector_store %arg3[%c0_3, %c0_4], %2 {strides = array<i32>} : memref<16x1024xf32, #tpu.memory_space<vmem>>, vector<16x1024xf32>,
    return
  }
  func.func @transform_0(%arg0: i32) -> (i32, i32) {
    %c0_i32 = arith.constant 0 : i32
    %c0_i32_0 = arith.constant 0 : i32
    %c0_i32_1 = arith.constant 0 : i32
    return %c0_i32, %c0_i32_0 : i32, i32
  }
  func.func @transform_1(%arg0: i32) -> (i32, i32) {
    %c0_i32 = arith.constant 0 : i32
    %c0_i32_0 = arith.constant 0 : i32
    return %arg0, %c0_i32 : i32, i32
  }
  func.func @transform_2(%arg0: i32) -> (i32, i32) {
    %c0_i32 = arith.constant 0 : i32
    %c0_i32_0 = arith.constant 0 : i32
    return %arg0, %c0_i32 : i32, i32
  }
}

</mosaic_0001>

<llo_original>
// kernel: quaternion_upsample.1
$region0: #{quaternion_upsample.1}
  #allocation0 [shape = 'u32[]', space=smem, size = 0x4, offset = 0x4, fixed_abs, tag = 'smem constant byte address 0x4 - core index']
  #allocation1 [shape = 'u32[72,128]{1,0:T(1,128)}', space=vmem, size = 0x9000, scoped, tag = 'internal scratch']
  %s0 = inlined_call_operand.vmem [shape: f32[256,1024], index: 0, kind: input, shape index: {}]
  %s1 = inlined_call_operand.vmem [shape: f32[32,256], index: 1, kind: input, shape index: {}]
  %s2 = inlined_call_operand.vmem [shape: f32[32,1024], index: 2, kind: output, shape index: {}]
  %s3 = sld [smem:[#allocation0]]
  $region41: #{quaternion_upsample.1} parent=0
    _
  %s5 = ssub.s32 1, %s3
  %s6 = scalar_select 0, %s5, %s3
  loop: start=0, step=1, limit=4
  $region2: #{quaternion_upsample.1} parent=0 // loop_pre_header
    _
  $region3: #{quaternion_upsample.1} parent=0 // loop_header
    %s8 = sphi 0, %s12
    %p9 = scmp.ge.s32.totalorder %s8, 4
    %s16 = sphi 0, %s16
    %s18 = sphi 0, %s16
    %s19 = sphi 0, %s18
    %s33 = sphi 0, %s19
    %s39 = sphi 0, %s41
    %s42 = sphi 0, %s39
    %s43 = sphi 0, %s42
    %s59 = sphi 0, %s43
    %s65 = sphi 0, %s67
    %s68 = sphi 0, %s65
    %s69 = sphi 0, %s68
    %s85 = sphi 0, %s69
  $region4: #{quaternion_upsample.1} parent=0 // loop_header_branch
    %11 = sbr.rel (%p9) target = $region8
  $region5: #{quaternion_upsample.1} parent=0 // loop_body
    %s13 = ssub.s32 %s8, 1
    %s14 = ssub.s32 %s8, 2
    %s15 = sadd.s32 %s8, 1
    %s17 = sadd.s32 %s16, 1
    %p20 = scmp.eq.s32.totalorder %s8, 1
    %p21 = scmp.ne.s32.totalorder %s16, %s18
    %p22 = scmp.eq.s32.totalorder %s8, 0
    %p23 = por %p21, %p22
    %p24 = scmp.ne.s32.totalorder %s16, %s18
    %p25 = scmp.eq.s32.totalorder %s13, 1
    %p26 = por %p24, %p25
    %p27 = scmp.ne.s32.totalorder %s18, %s19
    %p28 = scmp.eq.s32.totalorder %s13, 0
    %p29 = por %p27, %p28
    %p30 = scmp.ne.s32.totalorder %s18, %s19
    %p31 = scmp.eq.s32.totalorder %s14, 1
    %p32 = por %p30, %p31
    %p34 = scmp.ne.s32.totalorder %s19, %s33
    %p35 = scmp.eq.s32.totalorder %s14, 0
    %p36 = por %p34, %p35
    %s37 = ssub.s32 %s8, %s15
    %p38 = scmp.eq.s32.totalorder %s37, 0
    %s40 = sadd.s32 %s39, 1
    %s41 = scalar_select %p38, %s39, %s40
    %p44 = pneg %p38
    %p45 = scmp.eq.s32.totalorder %s8, 1
    %p46 = por %p44, %p45
    %p47 = scmp.ne.s32.totalorder %s39, %s42
    %p48 = scmp.eq.s32.totalorder %s8, 0
    %p49 = por %p47, %p48
    %p50 = scmp.ne.s32.totalorder %s39, %s42
    %p51 = scmp.eq.s32.totalorder %s13, 1
    %p52 = por %p50, %p51
    %p53 = scmp.ne.s32.totalorder %s42, %s43
    %p54 = scmp.eq.s32.totalorder %s13, 0
    %p55 = por %p53, %p54
    %p56 = scmp.ne.s32.totalorder %s42, %s43
    %p57 = scmp.eq.s32.totalorder %s14, 1
    %p58 = por %p56, %p57
    %p60 = scmp.ne.s32.totalorder %s43, %s59
    %p61 = scmp.eq.s32.totalorder %s14, 0
    %p62 = por %p60, %p61
    %s63 = ssub.s32 %s8, %s15
    %p64 = scmp.eq.s32.totalorder %s63, 0
    %s66 = sadd.s32 %s65, 1
    %s67 = scalar_select %p64, %s65, %s66
    %p70 = pneg %p64
    %p71 = scmp.eq.s32.totalorder %s8, 1
    %p72 = por %p70, %p71
    %p73 = scmp.ne.s32.totalorder %s65, %s68
    %p74 = scmp.eq.s32.totalorder %s8, 0
    %p75 = por %p73, %p74
    %p76 = scmp.ne.s32.totalorder %s65, %s68
    %p77 = scmp.eq.s32.totalorder %s13, 1
    %p78 = por %p76, %p77
    %p79 = scmp.ne.s32.totalorder %s68, %s69
    %p80 = scmp.eq.s32.totalorder %s13, 0
    %p81 = por %p79, %p80
    %p82 = scmp.ne.s32.totalorder %s68, %s69
    %p83 = scmp.eq.s32.totalorder %s14, 1
    %p84 = por %p82, %p83
    %p86 = scmp.ne.s32.totalorder %s69, %s85
    %p87 = scmp.eq.s32.totalorder %s14, 0
    %p88 = por %p86, %p87
    %p89 = scmp.le.s32.totalorder 1, %s8
    %p90 = scmp.lt.s32.totalorder %s8, 3
    %p91 = pnand %p89, %p90
    %p92 = pneg %p91
    // Predicated region
    $region9: #{quaternion_upsample.1} parent=5 // pred_check
      _
    $region10: #{quaternion_upsample.1} parent=5 // pred_check_branch
      %94 = sbr.rel (%p91) target = $region12
    $region11: #{quaternion_upsample.1} parent=5 // pred_region
      %s95 = ssub.s32 %s8, 1
      // Predicated region
      $region13: #{quaternion_upsample.1} parent=11 // pred_check
        %p96 = pneg %p29
      $region14: #{quaternion_upsample.1} parent=11 // pred_check_branch
        %98 = sbr.rel (%p96) target = $region16
      $region15: #{quaternion_upsample.1} parent=11 // pred_region
        _
      $region16: #{quaternion_upsample.1} parent=11 // pred_fallthru
        _
    $region12: #{quaternion_upsample.1} parent=5 // pred_fallthru
      _
    %p99 = scmp.lt.s32.totalorder %s8, 2
    // Predicated region
    $region17: #{quaternion_upsample.1} parent=5 // pred_check
      %p100 = pneg %p99
    $region18: #{quaternion_upsample.1} parent=5 // pred_check_branch
      %102 = sbr.rel (%p100) target = $region20
    $region19: #{quaternion_upsample.1} parent=5 // pred_region
      // Predicated region
      $region21: #{quaternion_upsample.1} parent=19 // pred_check
        %p103 = pneg %p49
      $region22: #{quaternion_upsample.1} parent=19 // pred_check_branch
        %105 = sbr.rel (%p103) target = $region24
      $region23: #{quaternion_upsample.1} parent=19 // pred_region
        %s106 = smul.u32 2, %s8
        %p107 = scmp.lt.s32.totalorder %s106, 3
        %s108 = scalar_select %p107, %s106, 3
        %s109 = smul.addr %s108, 2
        %s110 = smul.addr %s109, 8
        %s111 = scalar_lea.vmem %s1, %s110
        %s112 = smul.u32 2, %s8
      $region24: #{quaternion_upsample.1} parent=19 // pred_fallthru
        _
    $region20: #{quaternion_upsample.1} parent=5 // pred_fallthru
      _
    %p113 = scmp.le.s32.totalorder 1, %s8
    %p114 = scmp.lt.s32.totalorder %s8, 3
    %p115 = pnand %p113, %p114
    %p116 = pneg %p115
    // Predicated region
    $region25: #{quaternion_upsample.1} parent=5 // pred_check
      _
    $region26: #{quaternion_upsample.1} parent=5 // pred_check_branch
      %118 = sbr.rel (%p115) target = $region28
    $region27: #{quaternion_upsample.1} parent=5 // pred_region
      %s119 = ssub.s32 %s8, 1
      %p120 = pneg %p29
      %p121 = pneg %p26
      %s122 = smul.u32 2, %s13
      %p123 = scmp.lt.s32.totalorder %s122, 3
      %s124 = scalar_select %p123, %s122, 3
      %s125 = smul.addr %s124, 2
      %s126 = smul.addr %s125, 8
      %s127 = scalar_lea.vmem %s1, %s126
      %p128 = pneg %p55
      %p129 = pneg %p52
      %p130 = pneg %p81
      %p131 = pneg %p78
      %s132 = smul.u32 2, %s13
      %p133 = scmp.lt.s32.totalorder %s132, 3
      %s134 = scalar_select %p133, %s132, 3
      %s135 = smul.addr %s134, 8
      %s136 = smul.addr %s135, 8
      %s137 = scalar_lea.vmem %s2, %s136
      %s138 = smul.u32 2, %s13
      %p139 = scmp.lt.s32.totalorder %s138, 3
      %s140 = scalar_select %p139, %s138, 3
      %s141 = smul.addr %s140, 2
      %s142 = smul.addr %s141, 8
      %s143 = scalar_lea.vmem %s1, %s142
      %s144 = smul.u32 2, %s13
      %s145 = smul.u32 2, %s13
      %p146 = scmp.lt.s32.totalorder %s145, 3
      %s147 = scalar_select %p146, %s145, 3
      %s148 = smul.addr %s147, 8
      %s149 = smul.addr %s148, 8
      %s150 = scalar_lea.vmem %s2, %s149
      %s151 = smul.u32 2, %s13
      %v152 = vld [vmem:[%s143] sm:$0xff]
      %v153 = vld [vmem:[%s143 + $0x8] sm:$0xff]
      %v154 = vld [vmem:[%s143 + $0x10] sm:$0xff]
      %v155 = vld [vmem:[%s143 + $0x18] sm:$0xff]
      %v156 = vld [vmem:[%s0] sm:$0xff]
      %v157 = vld [vmem:[%s0 + $0x8] sm:$0xff]
      %v158 = vld [vmem:[%s0 + $0x10] sm:$0xff]
      %v159 = vld [vmem:[%s0 + $0x18] sm:$0xff]
      %v160 = vld [vmem:[%s0 + $0x20] sm:$0xff]
      %v161 = vld [vmem:[%s0 + $0x28] sm:$0xff]
      %v162 = vld [vmem:[%s0 + $0x30] sm:$0xff]
      %v163 = vld [vmem:[%s0 + $0x38] sm:$0xff]
      %v164 = vld [vmem:[%s0 + $0x40] sm:$0xff]
      %v165 = vld [vmem:[%s0 + $0x48] sm:$0xff]
      %v166 = vld [vmem:[%s0 + $0x50] sm:$0xff]
      %v167 = vld [vmem:[%s0 + $0x58] sm:$0xff]
      %v168 = vld [vmem:[%s0 + $0x60] sm:$0xff]
      %v169 = vld [vmem:[%s0 + $0x68] sm:$0xff]
      %v170 = vld [vmem:[%s0 + $0x70] sm:$0xff]
      %v171 = vld [vmem:[%s0 + $0x78] sm:$0xff]
      %v172 = vld [vmem:[%s0 + $0x80] sm:$0xff]
      %v173 = vld [vmem:[%s0 + $0x88] sm:$0xff]
      %v174 = vld [vmem:[%s0 + $0x90] sm:$0xff]
      %v175 = vld [vmem:[%s0 + $0x98] sm:$0xff]
      %v176 = vld [vmem:[%s0 + $0xa0] sm:$0xff]
      %v177 = vld [vmem:[%s0 + $0xa8] sm:$0xff]
      %v178 = vld [vmem:[%s0 + $0xb0] sm:$0xff]
      %v179 = vld [vmem:[%s0 + $0xb8] sm:$0xff]
      %v180 = vld [vmem:[%s0 + $0xc0] sm:$0xff]
      %v181 = vld [vmem:[%s0 + $0xc8] sm:$0xff]
      %v182 = vld [vmem:[%s0 + $0xd0] sm:$0xff]
      %v183 = vld [vmem:[%s0 + $0xd8] sm:$0xff]
      %v184 = vld [vmem:[%s0 + $0xe0] sm:$0xff]
      %v185 = vld [vmem:[%s0 + $0xe8] sm:$0xff]
      %v186 = vld [vmem:[%s0 + $0xf0] sm:$0xff]
      %v187 = vld [vmem:[%s0 + $0xf8] sm:$0xff]
      %v188 = vld [vmem:[%s0 + $0x100] sm:$0xff]
      %v189 = vld [vmem:[%s0 + $0x108] sm:$0xff]
      %v190 = vld [vmem:[%s0 + $0x110] sm:$0xff]
      %v191 = vld [vmem:[%s0 + $0x118] sm:$0xff]
      %v192 = vld [vmem:[%s0 + $0x120] sm:$0xff]
      %v193 = vld [vmem:[%s0 + $0x128] sm:$0xff]
      %v194 = vld [vmem:[%s0 + $0x130] sm:$0xff]
      %v195 = vld [vmem:[%s0 + $0x138] sm:$0xff]
      %v196 = vld [vmem:[%s0 + $0x140] sm:$0xff]
      %v197 = vld [vmem:[%s0 + $0x148] sm:$0xff]
      %v198 = vld [vmem:[%s0 + $0x150] sm:$0xff]
      %v199 = vld [vmem:[%s0 + $0x158] sm:$0xff]
      %v200 = vld [vmem:[%s0 + $0x160] sm:$0xff]
      %v201 = vld [vmem:[%s0 + $0x168] sm:$0xff]
      %v202 = vld [vmem:[%s0 + $0x170] sm:$0xff]
      %v203 = vld [vmem:[%s0 + $0x178] sm:$0xff]
      %v204 = vld [vmem:[%s0 + $0x180] sm:$0xff]
      %v205 = vld [vmem:[%s0 + $0x188] sm:$0xff]
      %v206 = vld [vmem:[%s0 + $0x190] sm:$0xff]
      %v207 = vld [vmem:[%s0 + $0x198] sm:$0xff]
      %v208 = vld [vmem:[%s0 + $0x1a0] sm:$0xff]
      %v209 = vld [vmem:[%s0 + $0x1a8] sm:$0xff]
      %v210 = vld [vmem:[%s0 + $0x1b0] sm:$0xff]
      %v211 = vld [vmem:[%s0 + $0x1b8] sm:$0xff]
      %v212 = vld [vmem:[%s0 + $0x1c0] sm:$0xff]
      %v213 = vld [vmem:[%s0 + $0x1c8] sm:$0xff]
      %v214 = vld [vmem:[%s0 + $0x1d0] sm:$0xff]
      %v215 = vld [vmem:[%s0 + $0x1d8] sm:$0xff]
      %v216 = vld [vmem:[%s0 + $0x1e0] sm:$0xff]
      %v217 = vld [vmem:[%s0 + $0x1e8] sm:$0xff]
      %v218 = vld [vmem:[%s0 + $0x1f0] sm:$0xff]
      %v219 = vld [vmem:[%s0 + $0x1f8] sm:$0xff]
      %v220 = vld [vmem:[%s0 + $0x200] sm:$0xff]
      %v221 = vld [vmem:[%s0 + $0x208] sm:$0xff]
      %v222 = vld [vmem:[%s0 + $0x210] sm:$0xff]
      %v223 = vld [vmem:[%s0 + $0x218] sm:$0xff]
      %v224 = vld [vmem:[%s0 + $0x220] sm:$0xff]
      %v225 = vld [vmem:[%s0 + $0x228] sm:$0xff]
      %v226 = vld [vmem:[%s0 + $0x230] sm:$0xff]
      %v227 = vld [vmem:[%s0 + $0x238] sm:$0xff]
      %v228 = vld [vmem:[%s0 + $0x240] sm:$0xff]
      %v229 = vld [vmem:[%s0 + $0x248] sm:$0xff]
      %v230 = vld [vmem:[%s0 + $0x250] sm:$0xff]
      %v231 = vld [vmem:[%s0 + $0x258] sm:$0xff]
      %v232 = vld [vmem:[%s0 + $0x260] sm:$0xff]
      %v233 = vld [vmem:[%s0 + $0x268] sm:$0xff]
      %v234 = vld [vmem:[%s0 + $0x270] sm:$0xff]
      %v235 = vld [vmem:[%s0 + $0x278] sm:$0xff]
      %v236 = vld [vmem:[%s0 + $0x280] sm:$0xff]
      %v237 = vld [vmem:[%s0 + $0x288] sm:$0xff]
      %v238 = vld [vmem:[%s0 + $0x290] sm:$0xff]
      %v239 = vld [vmem:[%s0 + $0x298] sm:$0xff]
      %v240 = vld [vmem:[%s0 + $0x2a0] sm:$0xff]
      %v241 = vld [vmem:[%s0 + $0x2a8] sm:$0xff]
      %v242 = vld [vmem:[%s0 + $0x2b0] sm:$0xff]
      %v243 = vld [vmem:[%s0 + $0x2b8] sm:$0xff]
      %v244 = vld [vmem:[%s0 + $0x2c0] sm:$0xff]
      %v245 = vld [vmem:[%s0 + $0x2c8] sm:$0xff]
      %v246 = vld [vmem:[%s0 + $0x2d0] sm:$0xff]
      %v247 = vld [vmem:[%s0 + $0x2d8] sm:$0xff]
      %v248 = vld [vmem:[%s0 + $0x2e0] sm:$0xff]
      %v249 = vld [vmem:[%s0 + $0x2e8] sm:$0xff]
      %v250 = vld [vmem:[%s0 + $0x2f0] sm:$0xff]
      %v251 = vld [vmem:[%s0 + $0x2f8] sm:$0xff]
      %v252 = vld [vmem:[%s0 + $0x300] sm:$0xff]
      %v253 = vld [vmem:[%s0 + $0x308] sm:$0xff]
      %v254 = vld [vmem:[%s0 + $0x310] sm:$0xff]
      %v255 = vld [vmem:[%s0 + $0x318] sm:$0xff]
      %v256 = vld [vmem:[%s0 + $0x320] sm:$0xff]
      %v257 = vld [vmem:[%s0 + $0x328] sm:$0xff]
      %v258 = vld [vmem:[%s0 + $0x330] sm:$0xff]
      %v259 = vld [vmem:[%s0 + $0x338] sm:$0xff]
      %v260 = vld [vmem:[%s0 + $0x340] sm:$0xff]
      %v261 = vld [vmem:[%s0 + $0x348] sm:$0xff]
      %v262 = vld [vmem:[%s0 + $0x350] sm:$0xff]
      %v263 = vld [vmem:[%s0 + $0x358] sm:$0xff]
      %v264 = vld [vmem:[%s0 + $0x360] sm:$0xff]
      %v265 = vld [vmem:[%s0 + $0x368] sm:$0xff]
      %v266 = vld [vmem:[%s0 + $0x370] sm:$0xff]
      %v267 = vld [vmem:[%s0 + $0x378] sm:$0xff]
      %v268 = vld [vmem:[%s0 + $0x380] sm:$0xff]
      %v269 = vld [vmem:[%s0 + $0x388] sm:$0xff]
      %v270 = vld [vmem:[%s0 + $0x390] sm:$0xff]
      %v271 = vld [vmem:[%s0 + $0x398] sm:$0xff]
      %v272 = vld [vmem:[%s0 + $0x3a0] sm:$0xff]
      %v273 = vld [vmem:[%s0 + $0x3a8] sm:$0xff]
      %v274 = vld [vmem:[%s0 + $0x3b0] sm:$0xff]
      %v275 = vld [vmem:[%s0 + $0x3b8] sm:$0xff]
      %v276 = vld [vmem:[%s0 + $0x3c0] sm:$0xff]
      %v277 = vld [vmem:[%s0 + $0x3c8] sm:$0xff]
      %v278 = vld [vmem:[%s0 + $0x3d0] sm:$0xff]
      %v279 = vld [vmem:[%s0 + $0x3d8] sm:$0xff]
      %v280 = vld [vmem:[%s0 + $0x3e0] sm:$0xff]
      %v281 = vld [vmem:[%s0 + $0x3e8] sm:$0xff]
      %v282 = vld [vmem:[%s0 + $0x3f0] sm:$0xff]
      %v283 = vld [vmem:[%s0 + $0x3f8] sm:$0xff]
      %v284 = vld [vmem:[%s0 + $0x400] sm:$0xff]
      %v285 = vld [vmem:[%s0 + $0x408] sm:$0xff]
      %v286 = vld [vmem:[%s0 + $0x410] sm:$0xff]
      %v287 = vld [vmem:[%s0 + $0x418] sm:$0xff]
      %v288 = vld [vmem:[%s0 + $0x420] sm:$0xff]
      %v289 = vld [vmem:[%s0 + $0x428] sm:$0xff]
      %v290 = vld [vmem:[%s0 + $0x430] sm:$0xff]
      %v291 = vld [vmem:[%s0 + $0x438] sm:$0xff]
      %v292 = vld [vmem:[%s0 + $0x440] sm:$0xff]
      %v293 = vld [vmem:[%s0 + $0x448] sm:$0xff]
      %v294 = vld [vmem:[%s0 + $0x450] sm:$0xff]
      %v295 = vld [vmem:[%s0 + $0x458] sm:$0xff]
      %v296 = vld [vmem:[%s0 + $0x460] sm:$0xff]
      %v297 = vld [vmem:[%s0 + $0x468] sm:$0xff]
      %v298 = vld [vmem:[%s0 + $0x470] sm:$0xff]
      %v299 = vld [vmem:[%s0 + $0x478] sm:$0xff]
      %v300 = vld [vmem:[%s0 + $0x480] sm:$0xff]
      %v301 = vld [vmem:[%s0 + $0x488] sm:$0xff]
      %v302 = vld [vmem:[%s0 + $0x490] sm:$0xff]
      %v303 = vld [vmem:[%s0 + $0x498] sm:$0xff]
      %v304 = vld [vmem:[%s0 + $0x4a0] sm:$0xff]
      %v305 = vld [vmem:[%s0 + $0x4a8] sm:$0xff]
      %v306 = vld [vmem:[%s0 + $0x4b0] sm:$0xff]
      %v307 = vld [vmem:[%s0 + $0x4b8] sm:$0xff]
      %v308 = vld [vmem:[%s0 + $0x4c0] sm:$0xff]
      %v309 = vld [vmem:[%s0 + $0x4c8] sm:$0xff]
      %v310 = vld [vmem:[%s0 + $0x4d0] sm:$0xff]
      %v311 = vld [vmem:[%s0 + $0x4d8] sm:$0xff]
      %v312 = vld [vmem:[%s0 + $0x4e0] sm:$0xff]
      %v313 = vld [vmem:[%s0 + $0x4e8] sm:$0xff]
      %v314 = vld [vmem:[%s0 + $0x4f0] sm:$0xff]
      %v315 = vld [vmem:[%s0 + $0x4f8] sm:$0xff]
      %v316 = vld [vmem:[%s0 + $0x500] sm:$0xff]
      %v317 = vld [vmem:[%s0 + $0x508] sm:$0xff]
      %v318 = vld [vmem:[%s0 + $0x510] sm:$0xff]
      %v319 = vld [vmem:[%s0 + $0x518] sm:$0xff]
      %v320 = vld [vmem:[%s0 + $0x520] sm:$0xff]
      %v321 = vld [vmem:[%s0 + $0x528] sm:$0xff]
      %v322 = vld [vmem:[%s0 + $0x530] sm:$0xff]
      %v323 = vld [vmem:[%s0 + $0x538] sm:$0xff]
      %v324 = vld [vmem:[%s0 + $0x540] sm:$0xff]
      %v325 = vld [vmem:[%s0 + $0x548] sm:$0xff]
      %v326 = vld [vmem:[%s0 + $0x550] sm:$0xff]
      %v327 = vld [vmem:[%s0 + $0x558] sm:$0xff]
      %v328 = vld [vmem:[%s0 + $0x560] sm:$0xff]
      %v329 = vld [vmem:[%s0 + $0x568] sm:$0xff]
      %v330 = vld [vmem:[%s0 + $0x570] sm:$0xff]
      %v331 = vld [vmem:[%s0 + $0x578] sm:$0xff]
      %v332 = vld [vmem:[%s0 + $0x580] sm:$0xff]
      %v333 = vld [vmem:[%s0 + $0x588] sm:$0xff]
      %v334 = vld [vmem:[%s0 + $0x590] sm:$0xff]
      %v335 = vld [vmem:[%s0 + $0x598] sm:$0xff]
      %v336 = vld [vmem:[%s0 + $0x5a0] sm:$0xff]
      %v337 = vld [vmem:[%s0 + $0x5a8] sm:$0xff]
      %v338 = vld [vmem:[%s0 + $0x5b0] sm:$0xff]
      %v339 = vld [vmem:[%s0 + $0x5b8] sm:$0xff]
      %v340 = vld [vmem:[%s0 + $0x5c0] sm:$0xff]
      %v341 = vld [vmem:[%s0 + $0x5c8] sm:$0xff]
      %v342 = vld [vmem:[%s0 + $0x5d0] sm:$0xff]
      %v343 = vld [vmem:[%s0 + $0x5d8] sm:$0xff]
      %v344 = vld [vmem:[%s0 + $0x5e0] sm:$0xff]
      %v345 = vld [vmem:[%s0 + $0x5e8] sm:$0xff]
      %v346 = vld [vmem:[%s0 + $0x5f0] sm:$0xff]
      %v347 = vld [vmem:[%s0 + $0x5f8] sm:$0xff]
      %v348 = vld [vmem:[%s0 + $0x600] sm:$0xff]
      %v349 = vld [vmem:[%s0 + $0x608] sm:$0xff]
      %v350 = vld [vmem:[%s0 + $0x610] sm:$0xff]
      %v351 = vld [vmem:[%s0 + $0x618] sm:$0xff]
      %v352 = vld [vmem:[%s0 + $0x620] sm:$0xff]
      %v353 = vld [vmem:[%s0 + $0x628] sm:$0xff]
      %v354 = vld [vmem:[%s0 + $0x630] sm:$0xff]
      %v355 = vld [vmem:[%s0 + $0x638] sm:$0xff]
      %v356 = vld [vmem:[%s0 + $0x640] sm:$0xff]
      %v357 = vld [vmem:[%s0 + $0x648] sm:$0xff]
      %v358 = vld [vmem:[%s0 + $0x650] sm:$0xff]
      %v359 = vld [vmem:[%s0 + $0x658] sm:$0xff]
      %v360 = vld [vmem:[%s0 + $0x660] sm:$0xff]
      %v361 = vld [vmem:[%s0 + $0x668] sm:$0xff]
      %v362 = vld [vmem:[%s0 + $0x670] sm:$0xff]
      %v363 = vld [vmem:[%s0 + $0x678] sm:$0xff]
      %v364 = vld [vmem:[%s0 + $0x680] sm:$0xff]
      %v365 = vld [vmem:[%s0 + $0x688] sm:$0xff]
      %v366 = vld [vmem:[%s0 + $0x690] sm:$0xff]
      %v367 = vld [vmem:[%s0 + $0x698] sm:$0xff]
      %v368 = vld [vmem:[%s0 + $0x6a0] sm:$0xff]
      %v369 = vld [vmem:[%s0 + $0x6a8] sm:$0xff]
      %v370 = vld [vmem:[%s0 + $0x6b0] sm:$0xff]
      %v371 = vld [vmem:[%s0 + $0x6b8] sm:$0xff]
      %v372 = vld [vmem:[%s0 + $0x6c0] sm:$0xff]
      %v373 = vld [vmem:[%s0 + $0x6c8] sm:$0xff]
      %v374 = vld [vmem:[%s0 + $0x6d0] sm:$0xff]
      %v375 = vld [vmem:[%s0 + $0x6d8] sm:$0xff]
      %v376 = vld [vmem:[%s0 + $0x6e0] sm:$0xff]
      %v377 = vld [vmem:[%s0 + $0x6e8] sm:$0xff]
      %v378 = vld [vmem:[%s0 + $0x6f0] sm:$0xff]
      %v379 = vld [vmem:[%s0 + $0x6f8] sm:$0xff]
      %v380 = vld [vmem:[%s0 + $0x700] sm:$0xff]
      %v381 = vld [vmem:[%s0 + $0x708] sm:$0xff]
      %v382 = vld [vmem:[%s0 + $0x710] sm:$0xff]
      %v383 = vld [vmem:[%s0 + $0x718] sm:$0xff]
      %v384 = vld [vmem:[%s0 + $0x720] sm:$0xff]
      %v385 = vld [vmem:[%s0 + $0x728] sm:$0xff]
      %v386 = vld [vmem:[%s0 + $0x730] sm:$0xff]
      %v387 = vld [vmem:[%s0 + $0x738] sm:$0xff]
      %v388 = vld [vmem:[%s0 + $0x740] sm:$0xff]
      %v389 = vld [vmem:[%s0 + $0x748] sm:$0xff]
      %v390 = vld [vmem:[%s0 + $0x750] sm:$0xff]
      %v391 = vld [vmem:[%s0 + $0x758] sm:$0xff]
      %v392 = vld [vmem:[%s0 + $0x760] sm:$0xff]
      %v393 = vld [vmem:[%s0 + $0x768] sm:$0xff]
      %v394 = vld [vmem:[%s0 + $0x770] sm:$0xff]
      %v395 = vld [vmem:[%s0 + $0x778] sm:$0xff]
      %v396 = vld [vmem:[%s0 + $0x780] sm:$0xff]
      %v397 = vld [vmem:[%s0 + $0x788] sm:$0xff]
      %v398 = vld [vmem:[%s0 + $0x790] sm:$0xff]
      %v399 = vld [vmem:[%s0 + $0x798] sm:$0xff]
      %v400 = vld [vmem:[%s0 + $0x7a0] sm:$0xff]
      %v401 = vld [vmem:[%s0 + $0x7a8] sm:$0xff]
      %v402 = vld [vmem:[%s0 + $0x7b0] sm:$0xff]
      %v403 = vld [vmem:[%s0 + $0x7b8] sm:$0xff]
      %v404 = vld [vmem:[%s0 + $0x7c0] sm:$0xff]
      %v405 = vld [vmem:[%s0 + $0x7c8] sm:$0xff]
      %v406 = vld [vmem:[%s0 + $0x7d0] sm:$0xff]
      %v407 = vld [vmem:[%s0 + $0x7d8] sm:$0xff]
      %v408 = vld [vmem:[%s0 + $0x7e0] sm:$0xff]
      %v409 = vld [vmem:[%s0 + $0x7e8] sm:$0xff]
      %v410 = vld [vmem:[%s0 + $0x7f0] sm:$0xff]
      %v411 = vld [vmem:[%s0 + $0x7f8] sm:$0xff]
      %v412 = vand.u32 %v276, 4294901760
      %413 = vmatpush.msra.mxu0 %v412
      %v414 = vand.u32 %v268, 4294901760
      %415 = vmatpush.msra.mxu0 %v414
      %v416 = vand.u32 %v260, 4294901760
      %417 = vmatpush.msra.mxu0 %v416
      %v418 = vand.u32 %v252, 4294901760
      %419 = vmatpush.msra.mxu0 %v418
      %v420 = vand.u32 %v244, 4294901760
      %421 = vmatpush.msra.mxu0 %v420
      %v422 = vand.u32 %v236, 4294901760
      %423 = vmatpush.msra.mxu0 %v422
      %v424 = vand.u32 %v228, 4294901760
      %425 = vmatpush.msra.mxu0 %v424
      %v426 = vand.u32 %v220, 4294901760
      %427 = vmatpush.msra.mxu0 %v426
      %v428 = vand.u32 %v212, 4294901760
      %429 = vmatpush.msra.mxu0 %v428
      %v430 = vand.u32 %v204, 4294901760
      %431 = vmatpush.msra.mxu0 %v430
      %v432 = vand.u32 %v196, 4294901760
      %433 = vmatpush.msra.mxu0 %v432
      %v434 = vand.u32 %v188, 4294901760
      %435 = vmatpush.msra.mxu0 %v434
      %v436 = vand.u32 %v180, 4294901760
      %437 = vmatpush.msra.mxu0 %v436
      %v438 = vand.u32 %v172, 4294901760
      %439 = vmatpush.msra.mxu0 %v438
      %v440 = vand.u32 %v164, 4294901760
      %441 = vmatpush.msra.mxu0 %v440
      %v442 = vand.u32 %v156, 4294901760
      %443 = vmatpush.msra.mxu0 %v442
      %v444 = vand.u32 %v152, 4294901760
      %v445 = vsub.f32 %v152, %v444
      %v446 = vand.u32 %v445, 4294901760
      %v447 = vsub.f32 %v445, %v446
      %v448 = vand.u32 %v447, 4294901760
      %449 = vmatmul.f32.gmra.mxu0 %v448
      %v450 = vpop.f32.mrf.mxu0
      %v451 = vadd.f32 0.0, %v450
      %v452 = vand.u32 %v154, 4294901760
      %v453 = vsub.f32 %v154, %v452
      %v454 = vand.u32 %v453, 4294901760
      %v455 = vsub.f32 %v453, %v454
      %v456 = vand.u32 %v455, 4294901760
      %457 = vmatmul.f32.gmra.mxu0 %v456
      %v458 = vpop.f32.mrf.mxu0
      %v459 = vadd.f32 0.0, %v458
      %460 = vdwg.mxu0
      %v461 = vand.u32 %v276, 4294901760
      %v462 = vsub.f32 %v276, %v461
      %v463 = vand.u32 %v462, 4294901760
      %v464 = vsub.f32 %v462, %v463
      %v465 = vand.u32 %v464, 4294901760
      %466 = vmatpush.msra.mxu0 %v465
      %v467 = vand.u32 %v268, 4294901760
      %v468 = vsub.f32 %v268, %v467
      %v469 = vand.u32 %v468, 4294901760
      %v470 = vsub.f32 %v468, %v469
      %v471 = vand.u32 %v470, 4294901760
      %472 = vmatpush.msra.mxu0 %v471
      %v473 = vand.u32 %v260, 4294901760
      %v474 = vsub.f32 %v260, %v473
      %v475 = vand.u32 %v474, 4294901760
      %v476 = vsub.f32 %v474, %v475
      %v477 = vand.u32 %v476, 4294901760
      %478 = vmatpush.msra.mxu0 %v477
      %v479 = vand.u32 %v252, 4294901760
      %v480 = vsub.f32 %v252, %v479
      %v481 = vand.u32 %v480, 4294901760
      %v482 = vsub.f32 %v480, %v481
      %v483 = vand.u32 %v482, 4294901760
      %484 = vmatpush.msra.mxu0 %v483
      %v485 = vand.u32 %v244, 4294901760
      %v486 = vsub.f32 %v244, %v485
      %v487 = vand.u32 %v486, 4294901760
      %v488 = vsub.f32 %v486, %v487
      %v489 = vand.u32 %v488, 4294901760
      %490 = vmatpush.msra.mxu0 %v489
      %v491 = vand.u32 %v236, 4294901760
      %v492 = vsub.f32 %v236, %v491
      %v493 = vand.u32 %v492, 4294901760
      %v494 = vsub.f32 %v492, %v493
      %v495 = vand.u32 %v494, 4294901760
      %496 = vmatpush.msra.mxu0 %v495
      %v497 = vand.u32 %v228, 4294901760
      %v498 = vsub.f32 %v228, %v497
      %v499 = vand.u32 %v498, 4294901760
      %v500 = vsub.f32 %v498, %v499
      %v501 = vand.u32 %v500, 4294901760
      %502 = vmatpush.msra.mxu0 %v501
      %v503 = vand.u32 %v220, 4294901760
      %v504 = vsub.f32 %v220, %v503
      %v505 = vand.u32 %v504, 4294901760
      %v506 = vsub.f32 %v504, %v505
      %v507 = vand.u32 %v506, 4294901760
      %508 = vmatpush.msra.mxu0 %v507
      %v509 = vand.u32 %v212, 4294901760
      %v510 = vsub.f32 %v212, %v509
      %v511 = vand.u32 %v510, 4294901760
      %v512 = vsub.f32 %v510, %v511
      %v513 = vand.u32 %v512, 4294901760
      %514 = vmatpush.msra.mxu0 %v513
      %v515 = vand.u32 %v204, 4294901760
      %v516 = vsub.f32 %v204, %v515
      %v517 = vand.u32 %v516, 4294901760
      %v518 = vsub.f32 %v516, %v517
      %v519 = vand.u32 %v518, 4294901760
      %520 = vmatpush.msra.mxu0 %v519
      %v521 = vand.u32 %v196, 4294901760
      %v522 = vsub.f32 %v196, %v521
      %v523 = vand.u32 %v522, 4294901760
      %v524 = vsub.f32 %v522, %v523
      %v525 = vand.u32 %v524, 4294901760
      %526 = vmatpush.msra.mxu0 %v525
      %v527 = vand.u32 %v188, 4294901760
      %v528 = vsub.f32 %v188, %v527
      %v529 = vand.u32 %v528, 4294901760
      %v530 = vsub.f32 %v528, %v529
      %v531 = vand.u32 %v530, 4294901760
      %532 = vmatpush.msra.mxu0 %v531
      %v533 = vand.u32 %v180, 4294901760
      %v534 = vsub.f32 %v180, %v533
      %v535 = vand.u32 %v534, 4294901760
      %v536 = vsub.f32 %v534, %v535
      %v537 = vand.u32 %v536, 4294901760
      %538 = vmatpush.msra.mxu0 %v537
      %v539 = vand.u32 %v172, 4294901760
      %v540 = vsub.f32 %v172, %v539
      %v541 = vand.u32 %v540, 4294901760
      %v542 = vsub.f32 %v540, %v541
      %v543 = vand.u32 %v542, 4294901760
      %544 = vmatpush.msra.mxu0 %v543
      %v545 = vand.u32 %v164, 4294901760
      %v546 = vsub.f32 %v164, %v545
      %v547 = vand.u32 %v546, 4294901760
      %v548 = vsub.f32 %v546, %v547
      %v549 = vand.u32 %v548, 4294901760
      %550 = vmatpush.msra.mxu0 %v549
      %v551 = vand.u32 %v156, 4294901760
      %v552 = vsub.f32 %v156, %v551
      %v553 = vand.u32 %v552, 4294901760
      %v554 = vsub.f32 %v552, %v553
      %v555 = vand.u32 %v554, 4294901760
      %556 = vmatpush.msra.mxu0 %v555
      %v557 = vand.u32 %v152, 4294901760
      %558 = vmatmul.f32.gmra.mxu0 %v557
      %v559 = vpop.f32.mrf.mxu0
      %v560 = vadd.f32 %v451, %v559
      %v561 = vand.u32 %v154, 4294901760
      %562 = vmatmul.f32.gmra.mxu0 %v561
      %v563 = vpop.f32.mrf.mxu0
      %v564 = vadd.f32 %v459, %v563
      %565 = vdwg.mxu0
      %v566 = vand.u32 %v276, 4294901760
      %v567 = vsub.f32 %v276, %v566
      %568 = vmatpush.msra.mxu0 %v567
      %v569 = vand.u32 %v268, 4294901760
      %v570 = vsub.f32 %v268, %v569
      %571 = vmatpush.msra.mxu0 %v570
      %v572 = vand.u32 %v260, 4294901760
      %v573 = vsub.f32 %v260, %v572
      %574 = vmatpush.msra.mxu0 %v573
      %v575 = vand.u32 %v252, 4294901760
      %v576 = vsub.f32 %v252, %v575
      %577 = vmatpush.msra.mxu0 %v576
      %v578 = vand.u32 %v244, 4294901760
      %v579 = vsub.f32 %v244, %v578
      %580 = vmatpush.msra.mxu0 %v579
      %v581 = vand.u32 %v236, 4294901760
      %v582 = vsub.f32 %v236, %v581
      %583 = vmatpush.msra.mxu0 %v582
      %v584 = vand.u32 %v228, 4294901760
      %v585 = vsub.f32 %v228, %v584
      %586 = vmatpush.msra.mxu0 %v585
      %v587 = vand.u32 %v220, 4294901760
      %v588 = vsub.f32 %v220, %v587
      %589 = vmatpush.msra.mxu0 %v588
      %v590 = vand.u32 %v212, 4294901760
      %v591 = vsub.f32 %v212, %v590
      %592 = vmatpush.msra.mxu0 %v591
      %v593 = vand.u32 %v204, 4294901760
      %v594 = vsub.f32 %v204, %v593
      %595 = vmatpush.msra.mxu0 %v594
      %v596 = vand.u32 %v196, 4294901760
      %v597 = vsub.f32 %v196, %v596
      %598 = vmatpush.msra.mxu0 %v597
      %v599 = vand.u32 %v188, 4294901760
      %v600 = vsub.f32 %v188, %v599
      %601 = vmatpush.msra.mxu0 %v600
      %v602 = vand.u32 %v180, 4294901760
      %v603 = vsub.f32 %v180, %v602
      %604 = vmatpush.msra.mxu0 %v603
      %v605 = vand.u32 %v172, 4294901760
      %v606 = vsub.f32 %v172, %v605
      %607 = vmatpush.msra.mxu0 %v606
      %v608 = vand.u32 %v164, 4294901760
      %v609 = vsub.f32 %v164, %v608
      %610 = vmatpush.msra.mxu0 %v609
      %v611 = vand.u32 %v156, 4294901760
      %v612 = vsub.f32 %v156, %v611
      %613 = vmatpush.msra.mxu0 %v612
      %v614 = vand.u32 %v152, 4294901760
      %v615 = vsub.f32 %v152, %v614
      %616 = vmatmul.f32.gmra.mxu0 %v615
      %v617 = vpop.f32.mrf.mxu0
      %v618 = vadd.f32 %v560, %v617
      %v619 = vand.u32 %v154, 4294901760
      %v620 = vsub.f32 %v154, %v619
      %621 = vmatmul.f32.gmra.mxu0 %v620
      %v622 = vpop.f32.mrf.mxu0
      %v623 = vadd.f32 %v564, %v622
      %624 = vdwg.mxu0
      %v625 = vand.u32 %v276, 4294901760
      %626 = vmatpush.msra.mxu0 %v625
      %v627 = vand.u32 %v268, 4294901760
      %628 = vmatpush.msra.mxu0 %v627
      %v629 = vand.u32 %v260, 4294901760
      %630 = vmatpush.msra.mxu0 %v629
      %v631 = vand.u32 %v252, 4294901760
      %632 = vmatpush.msra.mxu0 %v631
      %v633 = vand.u32 %v244, 4294901760
      %634 = vmatpush.msra.mxu0 %v633
      %v635 = vand.u32 %v236, 4294901760
      %636 = vmatpush.msra.mxu0 %v635
      %v637 = vand.u32 %v228, 4294901760
      %638 = vmatpush.msra.mxu0 %v637
      %v639 = vand.u32 %v220, 4294901760
      %640 = vmatpush.msra.mxu0 %v639
      %v641 = vand.u32 %v212, 4294901760
      %642 = vmatpush.msra.mxu0 %v641
      %v643 = vand.u32 %v204, 4294901760
      %644 = vmatpush.msra.mxu0 %v643
      %v645 = vand.u32 %v196, 4294901760
      %646 = vmatpush.msra.mxu0 %v645
      %v647 = vand.u32 %v188, 4294901760
      %648 = vmatpush.msra.mxu0 %v647
      %v649 = vand.u32 %v180, 4294901760
      %650 = vmatpush.msra.mxu0 %v649
      %v651 = vand.u32 %v172, 4294901760
      %652 = vmatpush.msra.mxu0 %v651
      %v653 = vand.u32 %v164, 4294901760
      %654 = vmatpush.msra.mxu0 %v653
      %v655 = vand.u32 %v156, 4294901760
      %656 = vmatpush.msra.mxu0 %v655
      %v657 = vand.u32 %v152, 4294901760
      %v658 = vsub.f32 %v152, %v657
      %v659 = vand.u32 %v658, 4294901760
      %660 = vmatmul.f32.gmra.mxu0 %v659
      %v661 = vpop.f32.mrf.mxu0
      %v662 = vadd.f32 %v618, %v661
      %v663 = vand.u32 %v154, 4294901760
      %v664 = vsub.f32 %v154, %v663
      %v665 = vand.u32 %v664, 4294901760
      %666 = vmatmul.f32.gmra.mxu0 %v665
      %v667 = vpop.f32.mrf.mxu0
      %v668 = vadd.f32 %v623, %v667
      %669 = vdwg.mxu0
      %v670 = vand.u32 %v276, 4294901760
      %v671 = vsub.f32 %v276, %v670
      %v672 = vand.u32 %v671, 4294901760
      %673 = vmatpush.msra.mxu0 %v672
      %v674 = vand.u32 %v268, 4294901760
      %v675 = vsub.f32 %v268, %v674
      %v676 = vand.u32 %v675, 4294901760
      %677 = vmatpush.msra.mxu0 %v676
      %v678 = vand.u32 %v260, 4294901760
      %v679 = vsub.f32 %v260, %v678
      %v680 = vand.u32 %v679, 4294901760
      %681 = vmatpush.msra.mxu0 %v680
      %v682 = vand.u32 %v252, 4294901760
      %v683 = vsub.f32 %v252, %v682
      %v684 = vand.u32 %v683, 4294901760
      %685 = vmatpush.msra.mxu0 %v684
      %v686 = vand.u32 %v244, 4294901760
      %v687 = vsub.f32 %v244, %v686
      %v688 = vand.u32 %v687, 4294901760
      %689 = vmatpush.msra.mxu0 %v688
      %v690 = vand.u32 %v236, 4294901760
      %v691 = vsub.f32 %v236, %v690
      %v692 = vand.u32 %v691, 4294901760
      %693 = vmatpush.msra.mxu0 %v692
      %v694 = vand.u32 %v228, 4294901760
      %v695 = vsub.f32 %v228, %v694
      %v696 = vand.u32 %v695, 4294901760
      %697 = vmatpush.msra.mxu0 %v696
      %v698 = vand.u32 %v220, 4294901760
      %v699 = vsub.f32 %v220, %v698
      %v700 = vand.u32 %v699, 4294901760
      %701 = vmatpush.msra.mxu0 %v700
      %v702 = vand.u32 %v212, 4294901760
      %v703 = vsub.f32 %v212, %v702
      %v704 = vand.u32 %v703, 4294901760
      %705 = vmatpush.msra.mxu0 %v704
      %v706 = vand.u32 %v204, 4294901760
      %v707 = vsub.f32 %v204, %v706
      %v708 = vand.u32 %v707, 4294901760
      %709 = vmatpush.msra.mxu0 %v708
      %v710 = vand.u32 %v196, 4294901760
      %v711 = vsub.f32 %v196, %v710
      %v712 = vand.u32 %v711, 4294901760
      %713 = vmatpush.msra.mxu0 %v712
      %v714 = vand.u32 %v188, 4294901760
      %v715 = vsub.f32 %v188, %v714
      %v716 = vand.u32 %v715, 4294901760
      %717 = vmatpush.msra.mxu0 %v716
      %v718 = vand.u32 %v180, 4294901760
      %v719 = vsub.f32 %v180, %v718
      %v720 = vand.u32 %v719, 4294901760
      %721 = vmatpush.msra.mxu0 %v720
      %v722 = vand.u32 %v172, 4294901760
      %v723 = vsub.f32 %v172, %v722
      %v724 = vand.u32 %v723, 4294901760
      %725 = vmatpush.msra.mxu0 %v724
      %v726 = vand.u32 %v164, 4294901760
      %v727 = vsub.f32 %v164, %v726
      %v728 = vand.u32 %v727, 4294901760
      %729 = vmatpush.msra.mxu0 %v728
      %v730 = vand.u32 %v156, 4294901760
      %v731 = vsub.f32 %v156, %v730
      %v732 = vand.u32 %v731, 4294901760
      %733 = vmatpush.msra.mxu0 %v732
      %v734 = vand.u32 %v152, 4294901760
      %735 = vmatmul.f32.gmra.mxu0 %v734
      %v736 = vpop.f32.mrf.mxu0
      %v737 = vadd.f32 %v662, %v736
      %v738 = vand.u32 %v154, 4294901760
      %739 = vmatmul.f32.gmra.mxu0 %v738
      %v740 = vpop.f32.mrf.mxu0
      %v741 = vadd.f32 %v668, %v740
      %742 = vdwg.mxu0
      %v743 = vand.u32 %v276, 4294901760
      %744 = vmatpush.msra.mxu0 %v743
      %v745 = vand.u32 %v268, 4294901760
      %746 = vmatpush.msra.mxu0 %v745
      %v747 = vand.u32 %v260, 4294901760
      %748 = vmatpush.msra.mxu0 %v747
      %v749 = vand.u32 %v252, 4294901760
      %750 = vmatpush.msra.mxu0 %v749
      %v751 = vand.u32 %v244, 4294901760
      %752 = vmatpush.msra.mxu0 %v751
      %v753 = vand.u32 %v236, 4294901760
      %754 = vmatpush.msra.mxu0 %v753
      %v755 = vand.u32 %v228, 4294901760
      %756 = vmatpush.msra.mxu0 %v755
      %v757 = vand.u32 %v220, 4294901760
      %758 = vmatpush.msra.mxu0 %v757
      %v759 = vand.u32 %v212, 4294901760
      %760 = vmatpush.msra.mxu0 %v759
      %v761 = vand.u32 %v204, 4294901760
      %762 = vmatpush.msra.mxu0 %v761
      %v763 = vand.u32 %v196, 4294901760
      %764 = vmatpush.msra.mxu0 %v763
      %v765 = vand.u32 %v188, 4294901760
      %766 = vmatpush.msra.mxu0 %v765
      %v767 = vand.u32 %v180, 4294901760
      %768 = vmatpush.msra.mxu0 %v767
      %v769 = vand.u32 %v172, 4294901760
      %770 = vmatpush.msra.mxu0 %v769
      %v771 = vand.u32 %v164, 4294901760
      %772 = vmatpush.msra.mxu0 %v771
      %v773 = vand.u32 %v156, 4294901760
      %774 = vmatpush.msra.mxu0 %v773
      %v775 = vand.u32 %v152, 4294901760
      %776 = vmatmul.f32.gmra.mxu0 %v775
      %v777 = vpop.f32.mrf.mxu0
      %v778 = vadd.f32 %v737, %v777
      %v779 = vand.u32 %v154, 4294901760
      %780 = vmatmul.f32.gmra.mxu0 %v779
      %v781 = vpop.f32.mrf.mxu0
      %v782 = vadd.f32 %v741, %v781
      %783 = vdwg.mxu0
      %v784 = vand.u32 %v404, 4294901760
      %785 = vmatpush.msra.mxu0 %v784
      %v786 = vand.u32 %v396, 4294901760
      %787 = vmatpush.msra.mxu0 %v786
      %v788 = vand.u32 %v388, 4294901760
      %789 = vmatpush.msra.mxu0 %v788
      %v790 = vand.u32 %v380, 4294901760
      %791 = vmatpush.msra.mxu0 %v790
      %v792 = vand.u32 %v372, 4294901760
      %793 = vmatpush.msra.mxu0 %v792
      %v794 = vand.u32 %v364, 4294901760
      %795 = vmatpush.msra.mxu0 %v794
      %v796 = vand.u32 %v356, 4294901760
      %797 = vmatpush.msra.mxu0 %v796
      %v798 = vand.u32 %v348, 4294901760
      %799 = vmatpush.msra.mxu0 %v798
      %v800 = vand.u32 %v340, 4294901760
      %801 = vmatpush.msra.mxu0 %v800
      %v802 = vand.u32 %v332, 4294901760
      %803 = vmatpush.msra.mxu0 %v802
      %v804 = vand.u32 %v324, 4294901760
      %805 = vmatpush.msra.mxu0 %v804
      %v806 = vand.u32 %v316, 4294901760
      %807 = vmatpush.msra.mxu0 %v806
      %v808 = vand.u32 %v308, 4294901760
      %809 = vmatpush.msra.mxu0 %v808
      %v810 = vand.u32 %v300, 4294901760
      %811 = vmatpush.msra.mxu0 %v810
      %v812 = vand.u32 %v292, 4294901760
      %813 = vmatpush.msra.mxu0 %v812
      %v814 = vand.u32 %v284, 4294901760
      %815 = vmatpush.msra.mxu0 %v814
      %v816 = vand.u32 %v153, 4294901760
      %v817 = vsub.f32 %v153, %v816
      %v818 = vand.u32 %v817, 4294901760
      %v819 = vsub.f32 %v817, %v818
      %v820 = vand.u32 %v819, 4294901760
      %821 = vmatmul.f32.gmra.mxu0 %v820
      %v822 = vpop.f32.mrf.mxu0
      %v823 = vadd.f32 %v778, %v822
      %v824 = vand.u32 %v155, 4294901760
      %v825 = vsub.f32 %v155, %v824
      %v826 = vand.u32 %v825, 4294901760
      %v827 = vsub.f32 %v825, %v826
      %v828 = vand.u32 %v827, 4294901760
      %829 = vmatmul.f32.gmra.mxu0 %v828
      %v830 = vpop.f32.mrf.mxu0
      %v831 = vadd.f32 %v782, %v830
      %832 = vdwg.mxu0
      %v833 = vand.u32 %v404, 4294901760
      %v834 = vsub.f32 %v404, %v833
      %v835 = vand.u32 %v834, 4294901760
      %v836 = vsub.f32 %v834, %v835
      %v837 = vand.u32 %v836, 4294901760
      %838 = vmatpush.msra.mxu0 %v837
      %v839 = vand.u32 %v396, 4294901760
      %v840 = vsub.f32 %v396, %v839
      %v841 = vand.u32 %v840, 4294901760
      %v842 = vsub.f32 %v840, %v841
      %v843 = vand.u32 %v842, 4294901760
      %844 = vmatpush.msra.mxu0 %v843
      %v845 = vand.u32 %v388, 4294901760
      %v846 = vsub.f32 %v388, %v845
      %v847 = vand.u32 %v846, 4294901760
      %v848 = vsub.f32 %v846, %v847
      %v849 = vand.u32 %v848, 4294901760
      %850 = vmatpush.msra.mxu0 %v849
      %v851 = vand.u32 %v380, 4294901760
      %v852 = vsub.f32 %v380, %v851
      %v853 = vand.u32 %v852, 4294901760
      %v854 = vsub.f32 %v852, %v853
      %v855 = vand.u32 %v854, 4294901760
      %856 = vmatpush.msra.mxu0 %v855
      %v857 = vand.u32 %v372, 4294901760
      %v858 = vsub.f32 %v372, %v857
      %v859 = vand.u32 %v858, 4294901760
      %v860 = vsub.f32 %v858, %v859
      %v861 = vand.u32 %v860, 4294901760
      %862 = vmatpush.msra.mxu0 %v861
      %v863 = vand.u32 %v364, 4294901760
      %v864 = vsub.f32 %v364, %v863
      %v865 = vand.u32 %v864, 4294901760
      %v866 = vsub.f32 %v864, %v865
      %v867 = vand.u32 %v866, 4294901760
      %868 = vmatpush.msra.mxu0 %v867
      %v869 = vand.u32 %v356, 4294901760
      %v870 = vsub.f32 %v356, %v869
      %v871 = vand.u32 %v870, 4294901760
      %v872 = vsub.f32 %v870, %v871
      %v873 = vand.u32 %v872, 4294901760
      %874 = vmatpush.msra.mxu0 %v873
      %v875 = vand.u32 %v348, 4294901760
      %v876 = vsub.f32 %v348, %v875
      %v877 = vand.u32 %v876, 4294901760
      %v878 = vsub.f32 %v876, %v877
      %v879 = vand.u32 %v878, 4294901760
      %880 = vmatpush.msra.mxu0 %v879
      %v881 = vand.u32 %v340, 4294901760
      %v882 = vsub.f32 %v340, %v881
      %v883 = vand.u32 %v882, 4294901760
      %v884 = vsub.f32 %v882, %v883
      %v885 = vand.u32 %v884, 4294901760
      %886 = vmatpush.msra.mxu0 %v885
      %v887 = vand.u32 %v332, 4294901760
      %v888 = vsub.f32 %v332, %v887
      %v889 = vand.u32 %v888, 4294901760
      %v890 = vsub.f32 %v888, %v889
      %v891 = vand.u32 %v890, 4294901760
      %892 = vmatpush.msra.mxu0 %v891
      %v893 = vand.u32 %v324, 4294901760
      %v894 = vsub.f32 %v324, %v893
      %v895 = vand.u32 %v894, 4294901760
      %v896 = vsub.f32 %v894, %v895
      %v897 = vand.u32 %v896, 4294901760
      %898 = vmatpush.msra.mxu0 %v897
      %v899 = vand.u32 %v316, 4294901760
      %v900 = vsub.f32 %v316, %v899
      %v901 = vand.u32 %v900, 4294901760
      %v902 = vsub.f32 %v900, %v901
      %v903 = vand.u32 %v902, 4294901760
      %904 = vmatpush.msra.mxu0 %v903
      %v905 = vand.u32 %v308, 4294901760
      %v906 = vsub.f32 %v308, %v905
      %v907 = vand.u32 %v906, 4294901760
      %v908 = vsub.f32 %v906, %v907
      %v909 = vand.u32 %v908, 4294901760
      %910 = vmatpush.msra.mxu0 %v909
      %v911 = vand.u32 %v300, 4294901760
      %v912 = vsub.f32 %v300, %v911
      %v913 = vand.u32 %v912, 4294901760
      %v914 = vsub.f32 %v912, %v913
      %v915 = vand.u32 %v914, 4294901760
      %916 = vmatpush.msra.mxu0 %v915
      %v917 = vand.u32 %v292, 4294901760
      %v918 = vsub.f32 %v292, %v917
      %v919 = vand.u32 %v918, 4294901760
      %v920 = vsub.f32 %v918, %v919
      %v921 = vand.u32 %v920, 4294901760
      %922 = vmatpush.msra.mxu0 %v921
      %v923 = vand.u32 %v284, 4294901760
      %v924 = vsub.f32 %v284, %v923
      %v925 = vand.u32 %v924, 4294901760
      %v926 = vsub.f32 %v924, %v925
      %v927 = vand.u32 %v926, 4294901760
      %928 = vmatpush.msra.mxu0 %v927
      %v929 = vand.u32 %v153, 4294901760
      %930 = vmatmul.f32.gmra.mxu0 %v929
      %v931 = vpop.f32.mrf.mxu0
      %v932 = vadd.f32 %v823, %v931
      %v933 = vand.u32 %v155, 4294901760
      %934 = vmatmul.f32.gmra.mxu0 %v933
      %v935 = vpop.f32.mrf.mxu0
      %v936 = vadd.f32 %v831, %v935
      %937 = vdwg.mxu0
      %v938 = vand.u32 %v404, 4294901760
      %v939 = vsub.f32 %v404, %v938
      %940 = vmatpush.msra.mxu0 %v939
      %v941 = vand.u32 %v396, 4294901760
      %v942 = vsub.f32 %v396, %v941
      %943 = vmatpush.msra.mxu0 %v942
      %v944 = vand.u32 %v388, 4294901760
      %v945 = vsub.f32 %v388, %v944
      %946 = vmatpush.msra.mxu0 %v945
      %v947 = vand.u32 %v380, 4294901760
      %v948 = vsub.f32 %v380, %v947
      %949 = vmatpush.msra.mxu0 %v948
      %v950 = vand.u32 %v372, 4294901760
      %v951 = vsub.f32 %v372, %v950
      %952 = vmatpush.msra.mxu0 %v951
      %v953 = vand.u32 %v364, 4294901760
      %v954 = vsub.f32 %v364, %v953
      %955 = vmatpush.msra.mxu0 %v954
      %v956 = vand.u32 %v356, 4294901760
      %v957 = vsub.f32 %v356, %v956
      %958 = vmatpush.msra.mxu0 %v957
      %v959 = vand.u32 %v348, 4294901760
      %v960 = vsub.f32 %v348, %v959
      %961 = vmatpush.msra.mxu0 %v960
      %v962 = vand.u32 %v340, 4294901760
      %v963 = vsub.f32 %v340, %v962
      %964 = vmatpush.msra.mxu0 %v963
      %v965 = vand.u32 %v332, 4294901760
      %v966 = vsub.f32 %v332, %v965
      %967 = vmatpush.msra.mxu0 %v966
      %v968 = vand.u32 %v324, 4294901760
      %v969 = vsub.f32 %v324, %v968
      %970 = vmatpush.msra.mxu0 %v969
      %v971 = vand.u32 %v316, 4294901760
      %v972 = vsub.f32 %v316, %v971
      %973 = vmatpush.msra.mxu0 %v972
      %v974 = vand.u32 %v308, 4294901760
      %v975 = vsub.f32 %v308, %v974
      %976 = vmatpush.msra.mxu0 %v975
      %v977 = vand.u32 %v300, 4294901760
      %v978 = vsub.f32 %v300, %v977
      %979 = vmatpush.msra.mxu0 %v978
      %v980 = vand.u32 %v292, 4294901760
      %v981 = vsub.f32 %v292, %v980
      %982 = vmatpush.msra.mxu0 %v981
      %v983 = vand.u32 %v284, 4294901760
      %v984 = vsub.f32 %v284, %v983
      %985 = vmatpush.msra.mxu0 %v984
      %v986 = vand.u32 %v153, 4294901760
      %v987 = vsub.f32 %v153, %v986
      %988 = vmatmul.f32.gmra.mxu0 %v987
      %v989 = vpop.f32.mrf.mxu0
      %v990 = vadd.f32 %v932, %v989
      %v991 = vand.u32 %v155, 4294901760
      %v992 = vsub.f32 %v155, %v991
      %993 = vmatmul.f32.gmra.mxu0 %v992
      %v994 = vpop.f32.mrf.mxu0
      %v995 = vadd.f32 %v936, %v994
      %996 = vdwg.mxu0
      %v997 = vand.u32 %v404, 4294901760
      %998 = vmatpush.msra.mxu0 %v997
      %v999 = vand.u32 %v396, 4294901760
      %1000 = vmatpush.msra.mxu0 %v999
      %v1001 = vand.u32 %v388, 4294901760
      %1002 = vmatpush.msra.mxu0 %v1001
      %v1003 = vand.u32 %v380, 4294901760
      %1004 = vmatpush.msra.mxu0 %v1003
      %v1005 = vand.u32 %v372, 4294901760
      %1006 = vmatpush.msra.mxu0 %v1005
      %v1007 = vand.u32 %v364, 4294901760
      %1008 = vmatpush.msra.mxu0 %v1007
      %v1009 = vand.u32 %v356, 4294901760
      %1010 = vmatpush.msra.mxu0 %v1009
      %v1011 = vand.u32 %v348, 4294901760
      %1012 = vmatpush.msra.mxu0 %v1011
      %v1013 = vand.u32 %v340, 4294901760
      %1014 = vmatpush.msra.mxu0 %v1013
      %v1015 = vand.u32 %v332, 4294901760
      %1016 = vmatpush.msra.mxu0 %v1015
      %v1017 = vand.u32 %v324, 4294901760
      %1018 = vmatpush.msra.mxu0 %v1017
      %v1019 = vand.u32 %v316, 4294901760
      %1020 = vmatpush.msra.mxu0 %v1019
      %v1021 = vand.u32 %v308, 4294901760
      %1022 = vmatpush.msra.mxu0 %v1021
      %v1023 = vand.u32 %v300, 4294901760
      %1024 = vmatpush.msra.mxu0 %v1023
      %v1025 = vand.u32 %v292, 4294901760
      %1026 = vmatpush.msra.mxu0 %v1025
      %v1027 = vand.u32 %v284, 4294901760
      %1028 = vmatpush.msra.mxu0 %v1027
      %v1029 = vand.u32 %v153, 4294901760
      %v1030 = vsub.f32 %v153, %v1029
      %v1031 = vand.u32 %v1030, 4294901760
      %1032 = vmatmul.f32.gmra.mxu0 %v1031
      %v1033 = vpop.f32.mrf.mxu0
      %v1034 = vadd.f32 %v990, %v1033
      %v1035 = vand.u32 %v155, 4294901760
      %v1036 = vsub.f32 %v155, %v1035
      %v1037 = vand.u32 %v1036, 4294901760
      %1038 = vmatmul.f32.gmra.mxu0 %v1037
      %v1039 = vpop.f32.mrf.mxu0
      %v1040 = vadd.f32 %v995, %v1039
      %1041 = vdwg.mxu0
      %v1042 = vand.u32 %v404, 4294901760
      %v1043 = vsub.f32 %v404, %v1042
      %v1044 = vand.u32 %v1043, 4294901760
      %1045 = vmatpush.msra.mxu0 %v1044
      %v1046 = vand.u32 %v396, 4294901760
      %v1047 = vsub.f32 %v396, %v1046
      %v1048 = vand.u32 %v1047, 4294901760
      %1049 = vmatpush.msra.mxu0 %v1048
      %v1050 = vand.u32 %v388, 4294901760
      %v1051 = vsub.f32 %v388, %v1050
      %v1052 = vand.u32 %v1051, 4294901760
      %1053 = vmatpush.msra.mxu0 %v1052
      %v1054 = vand.u32 %v380, 4294901760
      %v1055 = vsub.f32 %v380, %v1054
      %v1056 = vand.u32 %v1055, 4294901760
      %1057 = vmatpush.msra.mxu0 %v1056
      %v1058 = vand.u32 %v372, 4294901760
      %v1059 = vsub.f32 %v372, %v1058
      %v1060 = vand.u32 %v1059, 4294901760
      %1061 = vmatpush.msra.mxu0 %v1060
      %v1062 = vand.u32 %v364, 4294901760
      %v1063 = vsub.f32 %v364, %v1062
      %v1064 = vand.u32 %v1063, 4294901760
      %1065 = vmatpush.msra.mxu0 %v1064
      %v1066 = vand.u32 %v356, 4294901760
      %v1067 = vsub.f32 %v356, %v1066
      %v1068 = vand.u32 %v1067, 4294901760
      %1069 = vmatpush.msra.mxu0 %v1068
      %v1070 = vand.u32 %v348, 4294901760
      %v1071 = vsub.f32 %v348, %v1070
      %v1072 = vand.u32 %v1071, 4294901760
      %1073 = vmatpush.msra.mxu0 %v1072
      %v1074 = vand.u32 %v340, 4294901760
      %v1075 = vsub.f32 %v340, %v1074
      %v1076 = vand.u32 %v1075, 4294901760
      %1077 = vmatpush.msra.mxu0 %v1076
      %v1078 = vand.u32 %v332, 4294901760
      %v1079 = vsub.f32 %v332, %v1078
      %v1080 = vand.u32 %v1079, 4294901760
      %1081 = vmatpush.msra.mxu0 %v1080
      %v1082 = vand.u32 %v324, 4294901760
      %v1083 = vsub.f32 %v324, %v1082
      %v1084 = vand.u32 %v1083, 4294901760
      %1085 = vmatpush.msra.mxu0 %v1084
      %v1086 = vand.u32 %v316, 4294901760
      %v1087 = vsub.f32 %v316, %v1086
      %v1088 = vand.u32 %v1087, 4294901760
      %1089 = vmatpush.msra.mxu0 %v1088
      %v1090 = vand.u32 %v308, 4294901760
      %v1091 = vsub.f32 %v308, %v1090
      %v1092 = vand.u32 %v1091, 4294901760
      %1093 = vmatpush.msra.mxu0 %v1092
      %v1094 = vand.u32 %v300, 4294901760
      %v1095 = vsub.f32 %v300, %v1094
      %v1096 = vand.u32 %v1095, 4294901760
      %1097 = vmatpush.msra.mxu0 %v1096
      %v1098 = vand.u32 %v292, 4294901760
      %v1099 = vsub.f32 %v292, %v1098
      %v1100 = vand.u32 %v1099, 4294901760
      %1101 = vmatpush.msra.mxu0 %v1100
      %v1102 = vand.u32 %v284, 4294901760
      %v1103 = vsub.f32 %v284, %v1102
      %v1104 = vand.u32 %v1103, 4294901760
      %1105 = vmatpush.msra.mxu0 %v1104
      %v1106 = vand.u32 %v153, 4294901760
      %1107 = vmatmul.f32.gmra.mxu0 %v1106
      %v1108 = vpop.f32.mrf.mxu0
      %v1109 = vadd.f32 %v1034, %v1108
      %v1110 = vand.u32 %v155, 4294901760
      %1111 = vmatmul.f32.gmra.mxu0 %v1110
      %v1112 = vpop.f32.mrf.mxu0
      %v1113 = vadd.f32 %v1040, %v1112
      %1114 = vdwg.mxu0
      %v1115 = vand.u32 %v404, 4294901760
      %1116 = vmatpush.msra.mxu0 %v1115
      %v1117 = vand.u32 %v396, 4294901760
      %1118 = vmatpush.msra.mxu0 %v1117
      %v1119 = vand.u32 %v388, 4294901760
      %1120 = vmatpush.msra.mxu0 %v1119
      %v1121 = vand.u32 %v380, 4294901760
      %1122 = vmatpush.msra.mxu0 %v1121
      %v1123 = vand.u32 %v372, 4294901760
      %1124 = vmatpush.msra.mxu0 %v1123
      %v1125 = vand.u32 %v364, 4294901760
      %1126 = vmatpush.msra.mxu0 %v1125
      %v1127 = vand.u32 %v356, 4294901760
      %1128 = vmatpush.msra.mxu0 %v1127
      %v1129 = vand.u32 %v348, 4294901760
      %1130 = vmatpush.msra.mxu0 %v1129
      %v1131 = vand.u32 %v340, 4294901760
      %1132 = vmatpush.msra.mxu0 %v1131
      %v1133 = vand.u32 %v332, 4294901760
      %1134 = vmatpush.msra.mxu0 %v1133
      %v1135 = vand.u32 %v324, 4294901760
      %1136 = vmatpush.msra.mxu0 %v1135
      %v1137 = vand.u32 %v316, 4294901760
      %1138 = vmatpush.msra.mxu0 %v1137
      %v1139 = vand.u32 %v308, 4294901760
      %1140 = vmatpush.msra.mxu0 %v1139
      %v1141 = vand.u32 %v300, 4294901760
      %1142 = vmatpush.msra.mxu0 %v1141
      %v1143 = vand.u32 %v292, 4294901760
      %1144 = vmatpush.msra.mxu0 %v1143
      %v1145 = vand.u32 %v284, 4294901760
      %1146 = vmatpush.msra.mxu0 %v1145
      %v1147 = vand.u32 %v153, 4294901760
      %1148 = vmatmul.f32.gmra.mxu0 %v1147
      %v1149 = vpop.f32.mrf.mxu0
      %v1150 = vadd.f32 %v1109, %v1149
      %v1151 = vand.u32 %v155, 4294901760
      %1152 = vmatmul.f32.gmra.mxu0 %v1151
      %v1153 = vpop.f32.mrf.mxu0
      %v1154 = vadd.f32 %v1113, %v1153
      %1155 = vdwg.mxu0
      %v1156 = vand.u32 %v277, 4294901760
      %1157 = vmatpush.msra.mxu0 %v1156
      %v1158 = vand.u32 %v269, 4294901760
      %1159 = vmatpush.msra.mxu0 %v1158
      %v1160 = vand.u32 %v261, 4294901760
      %1161 = vmatpush.msra.mxu0 %v1160
      %v1162 = vand.u32 %v253, 4294901760
      %1163 = vmatpush.msra.mxu0 %v1162
      %v1164 = vand.u32 %v245, 4294901760
      %1165 = vmatpush.msra.mxu0 %v1164
      %v1166 = vand.u32 %v237, 4294901760
      %1167 = vmatpush.msra.mxu0 %v1166
      %v1168 = vand.u32 %v229, 4294901760
      %1169 = vmatpush.msra.mxu0 %v1168
      %v1170 = vand.u32 %v221, 4294901760
      %1171 = vmatpush.msra.mxu0 %v1170
      %v1172 = vand.u32 %v213, 4294901760
      %1173 = vmatpush.msra.mxu0 %v1172
      %v1174 = vand.u32 %v205, 4294901760
      %1175 = vmatpush.msra.mxu0 %v1174
      %v1176 = vand.u32 %v197, 4294901760
      %1177 = vmatpush.msra.mxu0 %v1176
      %v1178 = vand.u32 %v189, 4294901760
      %1179 = vmatpush.msra.mxu0 %v1178
      %v1180 = vand.u32 %v181, 4294901760
      %1181 = vmatpush.msra.mxu0 %v1180
      %v1182 = vand.u32 %v173, 4294901760
      %1183 = vmatpush.msra.mxu0 %v1182
      %v1184 = vand.u32 %v165, 4294901760
      %1185 = vmatpush.msra.mxu0 %v1184
      %v1186 = vand.u32 %v157, 4294901760
      %1187 = vmatpush.msra.mxu0 %v1186
      %v1188 = vand.u32 %v152, 4294901760
      %v1189 = vsub.f32 %v152, %v1188
      %v1190 = vand.u32 %v1189, 4294901760
      %v1191 = vsub.f32 %v1189, %v1190
      %v1192 = vand.u32 %v1191, 4294901760
      %1193 = vmatmul.f32.gmra.mxu0 %v1192
      %v1194 = vpop.f32.mrf.mxu0
      %v1195 = vadd.f32 0.0, %v1194
      %v1196 = vand.u32 %v154, 4294901760
      %v1197 = vsub.f32 %v154, %v1196
      %v1198 = vand.u32 %v1197, 4294901760
      %v1199 = vsub.f32 %v1197, %v1198
      %v1200 = vand.u32 %v1199, 4294901760
      %1201 = vmatmul.f32.gmra.mxu0 %v1200
      %v1202 = vpop.f32.mrf.mxu0
      %v1203 = vadd.f32 0.0, %v1202
      %1204 = vdwg.mxu0
      %v1205 = vand.u32 %v277, 4294901760
      %v1206 = vsub.f32 %v277, %v1205
      %v1207 = vand.u32 %v1206, 4294901760
      %v1208 = vsub.f32 %v1206, %v1207
      %v1209 = vand.u32 %v1208, 4294901760
      %1210 = vmatpush.msra.mxu0 %v1209
      %v1211 = vand.u32 %v269, 4294901760
      %v1212 = vsub.f32 %v269, %v1211
      %v1213 = vand.u32 %v1212, 4294901760
      %v1214 = vsub.f32 %v1212, %v1213
      %v1215 = vand.u32 %v1214, 4294901760
      %1216 = vmatpush.msra.mxu0 %v1215
      %v1217 = vand.u32 %v261, 4294901760
      %v1218 = vsub.f32 %v261, %v1217
      %v1219 = vand.u32 %v1218, 4294901760
      %v1220 = vsub.f32 %v1218, %v1219
      %v1221 = vand.u32 %v1220, 4294901760
      %1222 = vmatpush.msra.mxu0 %v1221
      %v1223 = vand.u32 %v253, 4294901760
      %v1224 = vsub.f32 %v253, %v1223
      %v1225 = vand.u32 %v1224, 4294901760
      %v1226 = vsub.f32 %v1224, %v1225
      %v1227 = vand.u32 %v1226, 4294901760
      %1228 = vmatpush.msra.mxu0 %v1227
      %v1229 = vand.u32 %v245, 4294901760
      %v1230 = vsub.f32 %v245, %v1229
      %v1231 = vand.u32 %v1230, 4294901760
      %v1232 = vsub.f32 %v1230, %v1231
      %v1233 = vand.u32 %v1232, 4294901760
      %1234 = vmatpush.msra.mxu0 %v1233
      %v1235 = vand.u32 %v237, 4294901760
      %v1236 = vsub.f32 %v237, %v1235
      %v1237 = vand.u32 %v1236, 4294901760
      %v1238 = vsub.f32 %v1236, %v1237
      %v1239 = vand.u32 %v1238, 4294901760
      %1240 = vmatpush.msra.mxu0 %v1239
      %v1241 = vand.u32 %v229, 4294901760
      %v1242 = vsub.f32 %v229, %v1241
      %v1243 = vand.u32 %v1242, 4294901760
      %v1244 = vsub.f32 %v1242, %v1243
      %v1245 = vand.u32 %v1244, 4294901760
      %1246 = vmatpush.msra.mxu0 %v1245
      %v1247 = vand.u32 %v221, 4294901760
      %v1248 = vsub.f32 %v221, %v1247
      %v1249 = vand.u32 %v1248, 4294901760
      %v1250 = vsub.f32 %v1248, %v1249
      %v1251 = vand.u32 %v1250, 4294901760
      %1252 = vmatpush.msra.mxu0 %v1251
      %v1253 = vand.u32 %v213, 4294901760
      %v1254 = vsub.f32 %v213, %v1253
      %v1255 = vand.u32 %v1254, 4294901760
      %v1256 = vsub.f32 %v1254, %v1255
      %v1257 = vand.u32 %v1256, 4294901760
      %1258 = vmatpush.msra.mxu0 %v1257
      %v1259 = vand.u32 %v205, 4294901760
      %v1260 = vsub.f32 %v205, %v1259
      %v1261 = vand.u32 %v1260, 4294901760
      %v1262 = vsub.f32 %v1260, %v1261
      %v1263 = vand.u32 %v1262, 4294901760
      %1264 = vmatpush.msra.mxu0 %v1263
      %v1265 = vand.u32 %v197, 4294901760
      %v1266 = vsub.f32 %v197, %v1265
      %v1267 = vand.u32 %v1266, 4294901760
      %v1268 = vsub.f32 %v1266, %v1267
      %v1269 = vand.u32 %v1268, 4294901760
      %1270 = vmatpush.msra.mxu0 %v1269
      %v1271 = vand.u32 %v189, 4294901760
      %v1272 = vsub.f32 %v189, %v1271
      %v1273 = vand.u32 %v1272, 4294901760
      %v1274 = vsub.f32 %v1272, %v1273
      %v1275 = vand.u32 %v1274, 4294901760
      %1276 = vmatpush.msra.mxu0 %v1275
      %v1277 = vand.u32 %v181, 4294901760
      %v1278 = vsub.f32 %v181, %v1277
      %v1279 = vand.u32 %v1278, 4294901760
      %v1280 = vsub.f32 %v1278, %v1279
      %v1281 = vand.u32 %v1280, 4294901760
      %1282 = vmatpush.msra.mxu0 %v1281
      %v1283 = vand.u32 %v173, 4294901760
      %v1284 = vsub.f32 %v173, %v1283
      %v1285 = vand.u32 %v1284, 4294901760
      %v1286 = vsub.f32 %v1284, %v1285
      %v1287 = vand.u32 %v1286, 4294901760
      %1288 = vmatpush.msra.mxu0 %v1287
      %v1289 = vand.u32 %v165, 4294901760
      %v1290 = vsub.f32 %v165, %v1289
      %v1291 = vand.u32 %v1290, 4294901760
      %v1292 = vsub.f32 %v1290, %v1291
      %v1293 = vand.u32 %v1292, 4294901760
      %1294 = vmatpush.msra.mxu0 %v1293
      %v1295 = vand.u32 %v157, 4294901760
      %v1296 = vsub.f32 %v157, %v1295
      %v1297 = vand.u32 %v1296, 4294901760
      %v1298 = vsub.f32 %v1296, %v1297
      %v1299 = vand.u32 %v1298, 4294901760
      %1300 = vmatpush.msra.mxu0 %v1299
      %v1301 = vand.u32 %v152, 4294901760
      %1302 = vmatmul.f32.gmra.mxu0 %v1301
      %v1303 = vpop.f32.mrf.mxu0
      %v1304 = vadd.f32 %v1195, %v1303
      %v1305 = vand.u32 %v154, 4294901760
      %1306 = vmatmul.f32.gmra.mxu0 %v1305
      %v1307 = vpop.f32.mrf.mxu0
      %v1308 = vadd.f32 %v1203, %v1307
      %1309 = vdwg.mxu0
      %v1310 = vand.u32 %v277, 4294901760
      %v1311 = vsub.f32 %v277, %v1310
      %1312 = vmatpush.msra.mxu0 %v1311
      %v1313 = vand.u32 %v269, 4294901760
      %v1314 = vsub.f32 %v269, %v1313
      %1315 = vmatpush.msra.mxu0 %v1314
      %v1316 = vand.u32 %v261, 4294901760
      %v1317 = vsub.f32 %v261, %v1316
      %1318 = vmatpush.msra.mxu0 %v1317
      %v1319 = vand.u32 %v253, 4294901760
      %v1320 = vsub.f32 %v253, %v1319
      %1321 = vmatpush.msra.mxu0 %v1320
      %v1322 = vand.u32 %v245, 4294901760
      %v1323 = vsub.f32 %v245, %v1322
      %1324 = vmatpush.msra.mxu0 %v1323
      %v1325 = vand.u32 %v237, 4294901760
      %v1326 = vsub.f32 %v237, %v1325
      %1327 = vmatpush.msra.mxu0 %v1326
      %v1328 = vand.u32 %v229, 4294901760
      %v1329 = vsub.f32 %v229, %v1328
      %1330 = vmatpush.msra.mxu0 %v1329
      %v1331 = vand.u32 %v221, 4294901760
      %v1332 = vsub.f32 %v221, %v1331
      %1333 = vmatpush.msra.mxu0 %v1332
      %v1334 = vand.u32 %v213, 4294901760
      %v1335 = vsub.f32 %v213, %v1334
      %1336 = vmatpush.msra.mxu0 %v1335
      %v1337 = vand.u32 %v205, 4294901760
      %v1338 = vsub.f32 %v205, %v1337
      %1339 = vmatpush.msra.mxu0 %v1338
      %v1340 = vand.u32 %v197, 4294901760
      %v1341 = vsub.f32 %v197, %v1340
      %1342 = vmatpush.msra.mxu0 %v1341
      %v1343 = vand.u32 %v189, 4294901760
      %v1344 = vsub.f32 %v189, %v1343
      %1345 = vmatpush.msra.mxu0 %v1344
      %v1346 = vand.u32 %v181, 4294901760
      %v1347 = vsub.f32 %v181, %v1346
      %1348 = vmatpush.msra.mxu0 %v1347
      %v1349 = vand.u32 %v173, 4294901760
      %v1350 = vsub.f32 %v173, %v1349
      %1351 = vmatpush.msra.mxu0 %v1350
      %v1352 = vand.u32 %v165, 4294901760
      %v1353 = vsub.f32 %v165, %v1352
      %1354 = vmatpush.msra.mxu0 %v1353
      %v1355 = vand.u32 %v157, 4294901760
      %v1356 = vsub.f32 %v157, %v1355
      %1357 = vmatpush.msra.mxu0 %v1356
      %v1358 = vand.u32 %v152, 4294901760
      %v1359 = vsub.f32 %v152, %v1358
      %1360 = vmatmul.f32.gmra.mxu0 %v1359
      %v1361 = vpop.f32.mrf.mxu0
      %v1362 = vadd.f32 %v1304, %v1361
      %v1363 = vand.u32 %v154, 4294901760
      %v1364 = vsub.f32 %v154, %v1363
      %1365 = vmatmul.f32.gmra.mxu0 %v1364
      %v1366 = vpop.f32.mrf.mxu0
      %v1367 = vadd.f32 %v1308, %v1366
      %1368 = vdwg.mxu0
      %v1369 = vand.u32 %v277, 4294901760
      %1370 = vmatpush.msra.mxu0 %v1369
      %v1371 = vand.u32 %v269, 4294901760
      %1372 = vmatpush.msra.mxu0 %v1371
      %v1373 = vand.u32 %v261, 4294901760
      %1374 = vmatpush.msra.mxu0 %v1373
      %v1375 = vand.u32 %v253, 4294901760
      %1376 = vmatpush.msra.mxu0 %v1375
      %v1377 = vand.u32 %v245, 4294901760
      %1378 = vmatpush.msra.mxu0 %v1377
      %v1379 = vand.u32 %v237, 4294901760
      %1380 = vmatpush.msra.mxu0 %v1379
      %v1381 = vand.u32 %v229, 4294901760
      %1382 = vmatpush.msra.mxu0 %v1381
      %v1383 = vand.u32 %v221, 4294901760
      %1384 = vmatpush.msra.mxu0 %v1383
      %v1385 = vand.u32 %v213, 4294901760
      %1386 = vmatpush.msra.mxu0 %v1385
      %v1387 = vand.u32 %v205, 4294901760
      %1388 = vmatpush.msra.mxu0 %v1387
      %v1389 = vand.u32 %v197, 4294901760
      %1390 = vmatpush.msra.mxu0 %v1389
      %v1391 = vand.u32 %v189, 4294901760
      %1392 = vmatpush.msra.mxu0 %v1391
      %v1393 = vand.u32 %v181, 4294901760
      %1394 = vmatpush.msra.mxu0 %v1393
      %v1395 = vand.u32 %v173, 4294901760
      %1396 = vmatpush.msra.mxu0 %v1395
      %v1397 = vand.u32 %v165, 4294901760
      %1398 = vmatpush.msra.mxu0 %v1397
      %v1399 = vand.u32 %v157, 4294901760
      %1400 = vmatpush.msra.mxu0 %v1399
      %v1401 = vand.u32 %v152, 4294901760
      %v1402 = vsub.f32 %v152, %v1401
      %v1403 = vand.u32 %v1402, 4294901760
      %1404 = vmatmul.f32.gmra.mxu0 %v1403
      %v1405 = vpop.f32.mrf.mxu0
      %v1406 = vadd.f32 %v1362, %v1405
      %v1407 = vand.u32 %v154, 4294901760
      %v1408 = vsub.f32 %v154, %v1407
      %v1409 = vand.u32 %v1408, 4294901760
      %1410 = vmatmul.f32.gmra.mxu0 %v1409
      %v1411 = vpop.f32.mrf.mxu0
      %v1412 = vadd.f32 %v1367, %v1411
      %1413 = vdwg.mxu0
      %v1414 = vand.u32 %v277, 4294901760
      %v1415 = vsub.f32 %v277, %v1414
      %v1416 = vand.u32 %v1415, 4294901760
      %1417 = vmatpush.msra.mxu0 %v1416
      %v1418 = vand.u32 %v269, 4294901760
      %v1419 = vsub.f32 %v269, %v1418
      %v1420 = vand.u32 %v1419, 4294901760
      %1421 = vmatpush.msra.mxu0 %v1420
      %v1422 = vand.u32 %v261, 4294901760
      %v1423 = vsub.f32 %v261, %v1422
      %v1424 = vand.u32 %v1423, 4294901760
      %1425 = vmatpush.msra.mxu0 %v1424
      %v1426 = vand.u32 %v253, 4294901760
      %v1427 = vsub.f32 %v253, %v1426
      %v1428 = vand.u32 %v1427, 4294901760
      %1429 = vmatpush.msra.mxu0 %v1428
      %v1430 = vand.u32 %v245, 4294901760
      %v1431 = vsub.f32 %v245, %v1430
      %v1432 = vand.u32 %v1431, 4294901760
      %1433 = vmatpush.msra.mxu0 %v1432
      %v1434 = vand.u32 %v237, 4294901760
      %v1435 = vsub.f32 %v237, %v1434
      %v1436 = vand.u32 %v1435, 4294901760
      %1437 = vmatpush.msra.mxu0 %v1436
      %v1438 = vand.u32 %v229, 4294901760
      %v1439 = vsub.f32 %v229, %v1438
      %v1440 = vand.u32 %v1439, 4294901760
      %1441 = vmatpush.msra.mxu0 %v1440
      %v1442 = vand.u32 %v221, 4294901760
      %v1443 = vsub.f32 %v221, %v1442
      %v1444 = vand.u32 %v1443, 4294901760
      %1445 = vmatpush.msra.mxu0 %v1444
      %v1446 = vand.u32 %v213, 4294901760
      %v1447 = vsub.f32 %v213, %v1446
      %v1448 = vand.u32 %v1447, 4294901760
      %1449 = vmatpush.msra.mxu0 %v1448
      %v1450 = vand.u32 %v205, 4294901760
      %v1451 = vsub.f32 %v205, %v1450
      %v1452 = vand.u32 %v1451, 4294901760
      %1453 = vmatpush.msra.mxu0 %v1452
      %v1454 = vand.u32 %v197, 4294901760
      %v1455 = vsub.f32 %v197, %v1454
      %v1456 = vand.u32 %v1455, 4294901760
      %1457 = vmatpush.msra.mxu0 %v1456
      %v1458 = vand.u32 %v189, 4294901760
      %v1459 = vsub.f32 %v189, %v1458
      %v1460 = vand.u32 %v1459, 4294901760
      %1461 = vmatpush.msra.mxu0 %v1460
      %v1462 = vand.u32 %v181, 4294901760
      %v1463 = vsub.f32 %v181, %v1462
      %v1464 = vand.u32 %v1463, 4294901760
      %1465 = vmatpush.msra.mxu0 %v1464
      %v1466 = vand.u32 %v173, 4294901760
      %v1467 = vsub.f32 %v173, %v1466
      %v1468 = vand.u32 %v1467, 4294901760
      %1469 = vmatpush.msra.mxu0 %v1468
      %v1470 = vand.u32 %v165, 4294901760
      %v1471 = vsub.f32 %v165, %v1470
      %v1472 = vand.u32 %v1471, 4294901760
      %1473 = vmatpush.msra.mxu0 %v1472
      %v1474 = vand.u32 %v157, 4294901760
      %v1475 = vsub.f32 %v157, %v1474
      %v1476 = vand.u32 %v1475, 4294901760
      %1477 = vmatpush.msra.mxu0 %v1476
      %v1478 = vand.u32 %v152, 4294901760
      %1479 = vmatmul.f32.gmra.mxu0 %v1478
      %v1480 = vpop.f32.mrf.mxu0
      %v1481 = vadd.f32 %v1406, %v1480
      %v1482 = vand.u32 %v154, 4294901760
      %1483 = vmatmul.f32.gmra.mxu0 %v1482
      %v1484 = vpop.f32.mrf.mxu0
      %v1485 = vadd.f32 %v1412, %v1484
      %1486 = vdwg.mxu0
      %v1487 = vand.u32 %v277, 4294901760
      %1488 = vmatpush.msra.mxu0 %v1487
      %v1489 = vand.u32 %v269, 4294901760
      %1490 = vmatpush.msra.mxu0 %v1489
      %v1491 = vand.u32 %v261, 4294901760
      %1492 = vmatpush.msra.mxu0 %v1491
      %v1493 = vand.u32 %v253, 4294901760
      %1494 = vmatpush.msra.mxu0 %v1493
      %v1495 = vand.u32 %v245, 4294901760
      %1496 = vmatpush.msra.mxu0 %v1495
      %v1497 = vand.u32 %v237, 4294901760
      %1498 = vmatpush.msra.mxu0 %v1497
      %v1499 = vand.u32 %v229, 4294901760
      %1500 = vmatpush.msra.mxu0 %v1499
      %v1501 = vand.u32 %v221, 4294901760
      %1502 = vmatpush.msra.mxu0 %v1501
      %v1503 = vand.u32 %v213, 4294901760
      %1504 = vmatpush.msra.mxu0 %v1503
      %v1505 = vand.u32 %v205, 4294901760
      %1506 = vmatpush.msra.mxu0 %v1505
      %v1507 = vand.u32 %v197, 4294901760
      %1508 = vmatpush.msra.mxu0 %v1507
      %v1509 = vand.u32 %v189, 4294901760
      %1510 = vmatpush.msra.mxu0 %v1509
      %v1511 = vand.u32 %v181, 4294901760
      %1512 = vmatpush.msra.mxu0 %v1511
      %v1513 = vand.u32 %v173, 4294901760
      %1514 = vmatpush.msra.mxu0 %v1513
      %v1515 = vand.u32 %v165, 4294901760
      %1516 = vmatpush.msra.mxu0 %v1515
      %v1517 = vand.u32 %v157, 4294901760
      %1518 = vmatpush.msra.mxu0 %v1517
      %v1519 = vand.u32 %v152, 4294901760
      %1520 = vmatmul.f32.gmra.mxu0 %v1519
      %v1521 = vpop.f32.mrf.mxu0
      %v1522 = vadd.f32 %v1481, %v1521
      %v1523 = vand.u32 %v154, 4294901760
      %1524 = vmatmul.f32.gmra.mxu0 %v1523
      %v1525 = vpop.f32.mrf.mxu0
      %v1526 = vadd.f32 %v1485, %v1525
      %1527 = vdwg.mxu0
      %v1528 = vand.u32 %v405, 4294901760
      %1529 = vmatpush.msra.mxu0 %v1528
      %v1530 = vand.u32 %v397, 4294901760
      %1531 = vmatpush.msra.mxu0 %v1530
      %v1532 = vand.u32 %v389, 4294901760
      %1533 = vmatpush.msra.mxu0 %v1532
      %v1534 = vand.u32 %v381, 4294901760
      %1535 = vmatpush.msra.mxu0 %v1534
      %v1536 = vand.u32 %v373, 4294901760
      %1537 = vmatpush.msra.mxu0 %v1536
      %v1538 = vand.u32 %v365, 4294901760
      %1539 = vmatpush.msra.mxu0 %v1538
      %v1540 = vand.u32 %v357, 4294901760
      %1541 = vmatpush.msra.mxu0 %v1540
      %v1542 = vand.u32 %v349, 4294901760
      %1543 = vmatpush.msra.mxu0 %v1542
      %v1544 = vand.u32 %v341, 4294901760
      %1545 = vmatpush.msra.mxu0 %v1544
      %v1546 = vand.u32 %v333, 4294901760
      %1547 = vmatpush.msra.mxu0 %v1546
      %v1548 = vand.u32 %v325, 4294901760
      %1549 = vmatpush.msra.mxu0 %v1548
      %v1550 = vand.u32 %v317, 4294901760
      %1551 = vmatpush.msra.mxu0 %v1550
      %v1552 = vand.u32 %v309, 4294901760
      %1553 = vmatpush.msra.mxu0 %v1552
      %v1554 = vand.u32 %v301, 4294901760
      %1555 = vmatpush.msra.mxu0 %v1554
      %v1556 = vand.u32 %v293, 4294901760
      %1557 = vmatpush.msra.mxu0 %v1556
      %v1558 = vand.u32 %v285, 4294901760
      %1559 = vmatpush.msra.mxu0 %v1558
      %v1560 = vand.u32 %v153, 4294901760
      %v1561 = vsub.f32 %v153, %v1560
      %v1562 = vand.u32 %v1561, 4294901760
      %v1563 = vsub.f32 %v1561, %v1562
      %v1564 = vand.u32 %v1563, 4294901760
      %1565 = vmatmul.f32.gmra.mxu0 %v1564
      %v1566 = vpop.f32.mrf.mxu0
      %v1567 = vadd.f32 %v1522, %v1566
      %v1568 = vand.u32 %v155, 4294901760
      %v1569 = vsub.f32 %v155, %v1568
      %v1570 = vand.u32 %v1569, 4294901760
      %v1571 = vsub.f32 %v1569, %v1570
      %v1572 = vand.u32 %v1571, 4294901760
      %1573 = vmatmul.f32.gmra.mxu0 %v1572
      %v1574 = vpop.f32.mrf.mxu0
      %v1575 = vadd.f32 %v1526, %v1574
      %1576 = vdwg.mxu0
      %v1577 = vand.u32 %v405, 4294901760
      %v1578 = vsub.f32 %v405, %v1577
      %v1579 = vand.u32 %v1578, 4294901760
      %v1580 = vsub.f32 %v1578, %v1579
      %v1581 = vand.u32 %v1580, 4294901760
      %1582 = vmatpush.msra.mxu0 %v1581
      %v1583 = vand.u32 %v397, 4294901760
      %v1584 = vsub.f32 %v397, %v1583
      %v1585 = vand.u32 %v1584, 4294901760
      %v1586 = vsub.f32 %v1584, %v1585
      %v1587 = vand.u32 %v1586, 4294901760
      %1588 = vmatpush.msra.mxu0 %v1587
      %v1589 = vand.u32 %v389, 4294901760
      %v1590 = vsub.f32 %v389, %v1589
      %v1591 = vand.u32 %v1590, 4294901760
      %v1592 = vsub.f32 %v1590, %v1591
      %v1593 = vand.u32 %v1592, 4294901760
      %1594 = vmatpush.msra.mxu0 %v1593
      %v1595 = vand.u32 %v381, 4294901760
      %v1596 = vsub.f32 %v381, %v1595
      %v1597 = vand.u32 %v1596, 4294901760
      %v1598 = vsub.f32 %v1596, %v1597
      %v1599 = vand.u32 %v1598, 4294901760
      %1600 = vmatpush.msra.mxu0 %v1599
      %v1601 = vand.u32 %v373, 4294901760
      %v1602 = vsub.f32 %v373, %v1601
      %v1603 = vand.u32 %v1602, 4294901760
      %v1604 = vsub.f32 %v1602, %v1603
      %v1605 = vand.u32 %v1604, 4294901760
      %1606 = vmatpush.msra.mxu0 %v1605
      %v1607 = vand.u32 %v365, 4294901760
      %v1608 = vsub.f32 %v365, %v1607
      %v1609 = vand.u32 %v1608, 4294901760
      %v1610 = vsub.f32 %v1608, %v1609
      %v1611 = vand.u32 %v1610, 4294901760
      %1612 = vmatpush.msra.mxu0 %v1611
      %v1613 = vand.u32 %v357, 4294901760
      %v1614 = vsub.f32 %v357, %v1613
      %v1615 = vand.u32 %v1614, 4294901760
      %v1616 = vsub.f32 %v1614, %v1615
      %v1617 = vand.u32 %v1616, 4294901760
      %1618 = vmatpush.msra.mxu0 %v1617
      %v1619 = vand.u32 %v349, 4294901760
      %v1620 = vsub.f32 %v349, %v1619
      %v1621 = vand.u32 %v1620, 4294901760
      %v1622 = vsub.f32 %v1620, %v1621
      %v1623 = vand.u32 %v1622, 4294901760
      %1624 = vmatpush.msra.mxu0 %v1623
      %v1625 = vand.u32 %v341, 4294901760
      %v1626 = vsub.f32 %v341, %v1625
      %v1627 = vand.u32 %v1626, 4294901760
      %v1628 = vsub.f32 %v1626, %v1627
      %v1629 = vand.u32 %v1628, 4294901760
      %1630 = vmatpush.msra.mxu0 %v1629
      %v1631 = vand.u32 %v333, 4294901760
      %v1632 = vsub.f32 %v333, %v1631
      %v1633 = vand.u32 %v1632, 4294901760
      %v1634 = vsub.f32 %v1632, %v1633
      %v1635 = vand.u32 %v1634, 4294901760
      %1636 = vmatpush.msra.mxu0 %v1635
      %v1637 = vand.u32 %v325, 4294901760
      %v1638 = vsub.f32 %v325, %v1637
      %v1639 = vand.u32 %v1638, 4294901760
      %v1640 = vsub.f32 %v1638, %v1639
      %v1641 = vand.u32 %v1640, 4294901760
      %1642 = vmatpush.msra.mxu0 %v1641
      %v1643 = vand.u32 %v317, 4294901760
      %v1644 = vsub.f32 %v317, %v1643
      %v1645 = vand.u32 %v1644, 4294901760
      %v1646 = vsub.f32 %v1644, %v1645
      %v1647 = vand.u32 %v1646, 4294901760
      %1648 = vmatpush.msra.mxu0 %v1647
      %v1649 = vand.u32 %v309, 4294901760
      %v1650 = vsub.f32 %v309, %v1649
      %v1651 = vand.u32 %v1650, 4294901760
      %v1652 = vsub.f32 %v1650, %v1651
      %v1653 = vand.u32 %v1652, 4294901760
      %1654 = vmatpush.msra.mxu0 %v1653
      %v1655 = vand.u32 %v301, 4294901760
      %v1656 = vsub.f32 %v301, %v1655
      %v1657 = vand.u32 %v1656, 4294901760
      %v1658 = vsub.f32 %v1656, %v1657
      %v1659 = vand.u32 %v1658, 4294901760
      %1660 = vmatpush.msra.mxu0 %v1659
      %v1661 = vand.u32 %v293, 4294901760
      %v1662 = vsub.f32 %v293, %v1661
      %v1663 = vand.u32 %v1662, 4294901760
      %v1664 = vsub.f32 %v1662, %v1663
      %v1665 = vand.u32 %v1664, 4294901760
      %1666 = vmatpush.msra.mxu0 %v1665
      %v1667 = vand.u32 %v285, 4294901760
      %v1668 = vsub.f32 %v285, %v1667
      %v1669 = vand.u32 %v1668, 4294901760
      %v1670 = vsub.f32 %v1668, %v1669
      %v1671 = vand.u32 %v1670, 4294901760
      %1672 = vmatpush.msra.mxu0 %v1671
      %v1673 = vand.u32 %v153, 4294901760
      %1674 = vmatmul.f32.gmra.mxu0 %v1673
      %v1675 = vpop.f32.mrf.mxu0
      %v1676 = vadd.f32 %v1567, %v1675
      %v1677 = vand.u32 %v155, 4294901760
      %1678 = vmatmul.f32.gmra.mxu0 %v1677
      %v1679 = vpop.f32.mrf.mxu0
      %v1680 = vadd.f32 %v1575, %v1679
      %1681 = vdwg.mxu0
      %v1682 = vand.u32 %v405, 4294901760
      %v1683 = vsub.f32 %v405, %v1682
      %1684 = vmatpush.msra.mxu0 %v1683
      %v1685 = vand.u32 %v397, 4294901760
      %v1686 = vsub.f32 %v397, %v1685
      %1687 = vmatpush.msra.mxu0 %v1686
      %v1688 = vand.u32 %v389, 4294901760
      %v1689 = vsub.f32 %v389, %v1688
      %1690 = vmatpush.msra.mxu0 %v1689
      %v1691 = vand.u32 %v381, 4294901760
      %v1692 = vsub.f32 %v381, %v1691
      %1693 = vmatpush.msra.mxu0 %v1692
      %v1694 = vand.u32 %v373, 4294901760
      %v1695 = vsub.f32 %v373, %v1694
      %1696 = vmatpush.msra.mxu0 %v1695
      %v1697 = vand.u32 %v365, 4294901760
      %v1698 = vsub.f32 %v365, %v1697
      %1699 = vmatpush.msra.mxu0 %v1698
      %v1700 = vand.u32 %v357, 4294901760
      %v1701 = vsub.f32 %v357, %v1700
      %1702 = vmatpush.msra.mxu0 %v1701
      %v1703 = vand.u32 %v349, 4294901760
      %v1704 = vsub.f32 %v349, %v1703
      %1705 = vmatpush.msra.mxu0 %v1704
      %v1706 = vand.u32 %v341, 4294901760
      %v1707 = vsub.f32 %v341, %v1706
      %1708 = vmatpush.msra.mxu0 %v1707
      %v1709 = vand.u32 %v333, 4294901760
      %v1710 = vsub.f32 %v333, %v1709
      %1711 = vmatpush.msra.mxu0 %v1710
      %v1712 = vand.u32 %v325, 4294901760
      %v1713 = vsub.f32 %v325, %v1712
      %1714 = vmatpush.msra.mxu0 %v1713
      %v1715 = vand.u32 %v317, 4294901760
      %v1716 = vsub.f32 %v317, %v1715
      %1717 = vmatpush.msra.mxu0 %v1716
      %v1718 = vand.u32 %v309, 4294901760
      %v1719 = vsub.f32 %v309, %v1718
      %1720 = vmatpush.msra.mxu0 %v1719
      %v1721 = vand.u32 %v301, 4294901760
      %v1722 = vsub.f32 %v301, %v1721
      %1723 = vmatpush.msra.mxu0 %v1722
      %v1724 = vand.u32 %v293, 4294901760
      %v1725 = vsub.f32 %v293, %v1724
      %1726 = vmatpush.msra.mxu0 %v1725
      %v1727 = vand.u32 %v285, 4294901760
      %v1728 = vsub.f32 %v285, %v1727
      %1729 = vmatpush.msra.mxu0 %v1728
      %v1730 = vand.u32 %v153, 4294901760
      %v1731 = vsub.f32 %v153, %v1730
      %1732 = vmatmul.f32.gmra.mxu0 %v1731
      %v1733 = vpop.f32.mrf.mxu0
      %v1734 = vadd.f32 %v1676, %v1733
      %v1735 = vand.u32 %v155, 4294901760
      %v1736 = vsub.f32 %v155, %v1735
      %1737 = vmatmul.f32.gmra.mxu0 %v1736
      %v1738 = vpop.f32.mrf.mxu0
      %v1739 = vadd.f32 %v1680, %v1738
      %1740 = vdwg.mxu0
      %v1741 = vand.u32 %v405, 4294901760
      %1742 = vmatpush.msra.mxu0 %v1741
      %v1743 = vand.u32 %v397, 4294901760
      %1744 = vmatpush.msra.mxu0 %v1743
      %v1745 = vand.u32 %v389, 4294901760
      %1746 = vmatpush.msra.mxu0 %v1745
      %v1747 = vand.u32 %v381, 4294901760
      %1748 = vmatpush.msra.mxu0 %v1747
      %v1749 = vand.u32 %v373, 4294901760
      %1750 = vmatpush.msra.mxu0 %v1749
      %v1751 = vand.u32 %v365, 4294901760
      %1752 = vmatpush.msra.mxu0 %v1751
      %v1753 = vand.u32 %v357, 4294901760
      %1754 = vmatpush.msra.mxu0 %v1753
      %v1755 = vand.u32 %v349, 4294901760
      %1756 = vmatpush.msra.mxu0 %v1755
      %v1757 = vand.u32 %v341, 4294901760
      %1758 = vmatpush.msra.mxu0 %v1757
      %v1759 = vand.u32 %v333, 4294901760
      %1760 = vmatpush.msra.mxu0 %v1759
      %v1761 = vand.u32 %v325, 4294901760
      %1762 = vmatpush.msra.mxu0 %v1761
      %v1763 = vand.u32 %v317, 4294901760
      %1764 = vmatpush.msra.mxu0 %v1763
      %v1765 = vand.u32 %v309, 4294901760
      %1766 = vmatpush.msra.mxu0 %v1765
      %v1767 = vand.u32 %v301, 4294901760
      %1768 = vmatpush.msra.mxu0 %v1767
      %v1769 = vand.u32 %v293, 4294901760
      %1770 = vmatpush.msra.mxu0 %v1769
      %v1771 = vand.u32 %v285, 4294901760
      %1772 = vmatpush.msra.mxu0 %v1771
      %v1773 = vand.u32 %v153, 4294901760
      %v1774 = vsub.f32 %v153, %v1773
      %v1775 = vand.u32 %v1774, 4294901760
      %1776 = vmatmul.f32.gmra.mxu0 %v1775
      %v1777 = vpop.f32.mrf.mxu0
      %v1778 = vadd.f32 %v1734, %v1777
      %v1779 = vand.u32 %v155, 4294901760
      %v1780 = vsub.f32 %v155, %v1779
      %v1781 = vand.u32 %v1780, 4294901760
      %1782 = vmatmul.f32.gmra.mxu0 %v1781
      %v1783 = vpop.f32.mrf.mxu0
      %v1784 = vadd.f32 %v1739, %v1783
      %1785 = vdwg.mxu0
      %v1786 = vand.u32 %v405, 4294901760
      %v1787 = vsub.f32 %v405, %v1786
      %v1788 = vand.u32 %v1787, 4294901760
      %1789 = vmatpush.msra.mxu0 %v1788
      %v1790 = vand.u32 %v397, 4294901760
      %v1791 = vsub.f32 %v397, %v1790
      %v1792 = vand.u32 %v1791, 4294901760
      %1793 = vmatpush.msra.mxu0 %v1792
      %v1794 = vand.u32 %v389, 4294901760
      %v1795 = vsub.f32 %v389, %v1794
      %v1796 = vand.u32 %v1795, 4294901760
      %1797 = vmatpush.msra.mxu0 %v1796
      %v1798 = vand.u32 %v381, 4294901760
      %v1799 = vsub.f32 %v381, %v1798
      %v1800 = vand.u32 %v1799, 4294901760
      %1801 = vmatpush.msra.mxu0 %v1800
      %v1802 = vand.u32 %v373, 4294901760
      %v1803 = vsub.f32 %v373, %v1802
      %v1804 = vand.u32 %v1803, 4294901760
      %1805 = vmatpush.msra.mxu0 %v1804
      %v1806 = vand.u32 %v365, 4294901760
      %v1807 = vsub.f32 %v365, %v1806
      %v1808 = vand.u32 %v1807, 4294901760
      %1809 = vmatpush.msra.mxu0 %v1808
      %v1810 = vand.u32 %v357, 4294901760
      %v1811 = vsub.f32 %v357, %v1810
      %v1812 = vand.u32 %v1811, 4294901760
      %1813 = vmatpush.msra.mxu0 %v1812
      %v1814 = vand.u32 %v349, 4294901760
      %v1815 = vsub.f32 %v349, %v1814
      %v1816 = vand.u32 %v1815, 4294901760
      %1817 = vmatpush.msra.mxu0 %v1816
      %v1818 = vand.u32 %v341, 4294901760
      %v1819 = vsub.f32 %v341, %v1818
      %v1820 = vand.u32 %v1819, 4294901760
      %1821 = vmatpush.msra.mxu0 %v1820
      %v1822 = vand.u32 %v333, 4294901760
      %v1823 = vsub.f32 %v333, %v1822
      %v1824 = vand.u32 %v1823, 4294901760
      %1825 = vmatpush.msra.mxu0 %v1824
      %v1826 = vand.u32 %v325, 4294901760
      %v1827 = vsub.f32 %v325, %v1826
      %v1828 = vand.u32 %v1827, 4294901760
      %1829 = vmatpush.msra.mxu0 %v1828
      %v1830 = vand.u32 %v317, 4294901760
      %v1831 = vsub.f32 %v317, %v1830
      %v1832 = vand.u32 %v1831, 4294901760
      %1833 = vmatpush.msra.mxu0 %v1832
      %v1834 = vand.u32 %v309, 4294901760
      %v1835 = vsub.f32 %v309, %v1834
      %v1836 = vand.u32 %v1835, 4294901760
      %1837 = vmatpush.msra.mxu0 %v1836
      %v1838 = vand.u32 %v301, 4294901760
      %v1839 = vsub.f32 %v301, %v1838
      %v1840 = vand.u32 %v1839, 4294901760
      %1841 = vmatpush.msra.mxu0 %v1840
      %v1842 = vand.u32 %v293, 4294901760
      %v1843 = vsub.f32 %v293, %v1842
      %v1844 = vand.u32 %v1843, 4294901760
      %1845 = vmatpush.msra.mxu0 %v1844
      %v1846 = vand.u32 %v285, 4294901760
      %v1847 = vsub.f32 %v285, %v1846
      %v1848 = vand.u32 %v1847, 4294901760
      %1849 = vmatpush.msra.mxu0 %v1848
      %v1850 = vand.u32 %v153, 4294901760
      %1851 = vmatmul.f32.gmra.mxu0 %v1850
      %v1852 = vpop.f32.mrf.mxu0
      %v1853 = vadd.f32 %v1778, %v1852
      %v1854 = vand.u32 %v155, 4294901760
      %1855 = vmatmul.f32.gmra.mxu0 %v1854
      %v1856 = vpop.f32.mrf.mxu0
      %v1857 = vadd.f32 %v1784, %v1856
      %1858 = vdwg.mxu0
      %v1859 = vand.u32 %v405, 4294901760
      %1860 = vmatpush.msra.mxu0 %v1859
      %v1861 = vand.u32 %v397, 4294901760
      %1862 = vmatpush.msra.mxu0 %v1861
      %v1863 = vand.u32 %v389, 4294901760
      %1864 = vmatpush.msra.mxu0 %v1863
      %v1865 = vand.u32 %v381, 4294901760
      %1866 = vmatpush.msra.mxu0 %v1865
      %v1867 = vand.u32 %v373, 4294901760
      %1868 = vmatpush.msra.mxu0 %v1867
      %v1869 = vand.u32 %v365, 4294901760
      %1870 = vmatpush.msra.mxu0 %v1869
      %v1871 = vand.u32 %v357, 4294901760
      %1872 = vmatpush.msra.mxu0 %v1871
      %v1873 = vand.u32 %v349, 4294901760
      %1874 = vmatpush.msra.mxu0 %v1873
      %v1875 = vand.u32 %v341, 4294901760
      %1876 = vmatpush.msra.mxu0 %v1875
      %v1877 = vand.u32 %v333, 4294901760
      %1878 = vmatpush.msra.mxu0 %v1877
      %v1879 = vand.u32 %v325, 4294901760
      %1880 = vmatpush.msra.mxu0 %v1879
      %v1881 = vand.u32 %v317, 4294901760
      %1882 = vmatpush.msra.mxu0 %v1881
      %v1883 = vand.u32 %v309, 4294901760
      %1884 = vmatpush.msra.mxu0 %v1883
      %v1885 = vand.u32 %v301, 4294901760
      %1886 = vmatpush.msra.mxu0 %v1885
      %v1887 = vand.u32 %v293, 4294901760
      %1888 = vmatpush.msra.mxu0 %v1887
      %v1889 = vand.u32 %v285, 4294901760
      %1890 = vmatpush.msra.mxu0 %v1889
      %v1891 = vand.u32 %v153, 4294901760
      %1892 = vmatmul.f32.gmra.mxu0 %v1891
      %v1893 = vpop.f32.mrf.mxu0
      %v1894 = vadd.f32 %v1853, %v1893
      %v1895 = vand.u32 %v155, 4294901760
      %1896 = vmatmul.f32.gmra.mxu0 %v1895
      %v1897 = vpop.f32.mrf.mxu0
      %v1898 = vadd.f32 %v1857, %v1897
      %1899 = vdwg.mxu0
      %v1900 = vand.u32 %v278, 4294901760
      %1901 = vmatpush.msra.mxu0 %v1900
      %v1902 = vand.u32 %v270, 4294901760
      %1903 = vmatpush.msra.mxu0 %v1902
      %v1904 = vand.u32 %v262, 4294901760
      %1905 = vmatpush.msra.mxu0 %v1904
      %v1906 = vand.u32 %v254, 4294901760
      %1907 = vmatpush.msra.mxu0 %v1906
      %v1908 = vand.u32 %v246, 4294901760
      %1909 = vmatpush.msra.mxu0 %v1908
      %v1910 = vand.u32 %v238, 4294901760
      %1911 = vmatpush.msra.mxu0 %v1910
      %v1912 = vand.u32 %v230, 4294901760
      %1913 = vmatpush.msra.mxu0 %v1912
      %v1914 = vand.u32 %v222, 4294901760
      %1915 = vmatpush.msra.mxu0 %v1914
      %v1916 = vand.u32 %v214, 4294901760
      %1917 = vmatpush.msra.mxu0 %v1916
      %v1918 = vand.u32 %v206, 4294901760
      %1919 = vmatpush.msra.mxu0 %v1918
      %v1920 = vand.u32 %v198, 4294901760
      %1921 = vmatpush.msra.mxu0 %v1920
      %v1922 = vand.u32 %v190, 4294901760
      %1923 = vmatpush.msra.mxu0 %v1922
      %v1924 = vand.u32 %v182, 4294901760
      %1925 = vmatpush.msra.mxu0 %v1924
      %v1926 = vand.u32 %v174, 4294901760
      %1927 = vmatpush.msra.mxu0 %v1926
      %v1928 = vand.u32 %v166, 4294901760
      %1929 = vmatpush.msra.mxu0 %v1928
      %v1930 = vand.u32 %v158, 4294901760
      %1931 = vmatpush.msra.mxu0 %v1930
      %v1932 = vand.u32 %v152, 4294901760
      %v1933 = vsub.f32 %v152, %v1932
      %v1934 = vand.u32 %v1933, 4294901760
      %v1935 = vsub.f32 %v1933, %v1934
      %v1936 = vand.u32 %v1935, 4294901760
      %1937 = vmatmul.f32.gmra.mxu0 %v1936
      %v1938 = vpop.f32.mrf.mxu0
      %v1939 = vadd.f32 0.0, %v1938
      %v1940 = vand.u32 %v154, 4294901760
      %v1941 = vsub.f32 %v154, %v1940
      %v1942 = vand.u32 %v1941, 4294901760
      %v1943 = vsub.f32 %v1941, %v1942
      %v1944 = vand.u32 %v1943, 4294901760
      %1945 = vmatmul.f32.gmra.mxu0 %v1944
      %v1946 = vpop.f32.mrf.mxu0
      %v1947 = vadd.f32 0.0, %v1946
      %1948 = vdwg.mxu0
      %v1949 = vand.u32 %v278, 4294901760
      %v1950 = vsub.f32 %v278, %v1949
      %v1951 = vand.u32 %v1950, 4294901760
      %v1952 = vsub.f32 %v1950, %v1951
      %v1953 = vand.u32 %v1952, 4294901760
      %1954 = vmatpush.msra.mxu0 %v1953
      %v1955 = vand.u32 %v270, 4294901760
      %v1956 = vsub.f32 %v270, %v1955
      %v1957 = vand.u32 %v1956, 4294901760
      %v1958 = vsub.f32 %v1956, %v1957
      %v1959 = vand.u32 %v1958, 4294901760
      %1960 = vmatpush.msra.mxu0 %v1959
      %v1961 = vand.u32 %v262, 4294901760
      %v1962 = vsub.f32 %v262, %v1961
      %v1963 = vand.u32 %v1962, 4294901760
      %v1964 = vsub.f32 %v1962, %v1963
      %v1965 = vand.u32 %v1964, 4294901760
      %1966 = vmatpush.msra.mxu0 %v1965
      %v1967 = vand.u32 %v254, 4294901760
      %v1968 = vsub.f32 %v254, %v1967
      %v1969 = vand.u32 %v1968, 4294901760
      %v1970 = vsub.f32 %v1968, %v1969
      %v1971 = vand.u32 %v1970, 4294901760
      %1972 = vmatpush.msra.mxu0 %v1971
      %v1973 = vand.u32 %v246, 4294901760
      %v1974 = vsub.f32 %v246, %v1973
      %v1975 = vand.u32 %v1974, 4294901760
      %v1976 = vsub.f32 %v1974, %v1975
      %v1977 = vand.u32 %v1976, 4294901760
      %1978 = vmatpush.msra.mxu0 %v1977
      %v1979 = vand.u32 %v238, 4294901760
      %v1980 = vsub.f32 %v238, %v1979
      %v1981 = vand.u32 %v1980, 4294901760
      %v1982 = vsub.f32 %v1980, %v1981
      %v1983 = vand.u32 %v1982, 4294901760
      %1984 = vmatpush.msra.mxu0 %v1983
      %v1985 = vand.u32 %v230, 4294901760
      %v1986 = vsub.f32 %v230, %v1985
      %v1987 = vand.u32 %v1986, 4294901760
      %v1988 = vsub.f32 %v1986, %v1987
      %v1989 = vand.u32 %v1988, 4294901760
      %1990 = vmatpush.msra.mxu0 %v1989
      %v1991 = vand.u32 %v222, 4294901760
      %v1992 = vsub.f32 %v222, %v1991
      %v1993 = vand.u32 %v1992, 4294901760
      %v1994 = vsub.f32 %v1992, %v1993
      %v1995 = vand.u32 %v1994, 4294901760
      %1996 = vmatpush.msra.mxu0 %v1995
      %v1997 = vand.u32 %v214, 4294901760
      %v1998 = vsub.f32 %v214, %v1997
      %v1999 = vand.u32 %v1998, 4294901760
      %v2000 = vsub.f32 %v1998, %v1999
      %v2001 = vand.u32 %v2000, 4294901760
      %2002 = vmatpush.msra.mxu0 %v2001
      %v2003 = vand.u32 %v206, 4294901760
      %v2004 = vsub.f32 %v206, %v2003
      %v2005 = vand.u32 %v2004, 4294901760
      %v2006 = vsub.f32 %v2004, %v2005
      %v2007 = vand.u32 %v2006, 4294901760
      %2008 = vmatpush.msra.mxu0 %v2007
      %v2009 = vand.u32 %v198, 4294901760
      %v2010 = vsub.f32 %v198, %v2009
      %v2011 = vand.u32 %v2010, 4294901760
      %v2012 = vsub.f32 %v2010, %v2011
      %v2013 = vand.u32 %v2012, 4294901760
      %2014 = vmatpush.msra.mxu0 %v2013
      %v2015 = vand.u32 %v190, 4294901760
      %v2016 = vsub.f32 %v190, %v2015
      %v2017 = vand.u32 %v2016, 4294901760
      %v2018 = vsub.f32 %v2016, %v2017
      %v2019 = vand.u32 %v2018, 4294901760
      %2020 = vmatpush.msra.mxu0 %v2019
      %v2021 = vand.u32 %v182, 4294901760
      %v2022 = vsub.f32 %v182, %v2021
      %v2023 = vand.u32 %v2022, 4294901760
      %v2024 = vsub.f32 %v2022, %v2023
      %v2025 = vand.u32 %v2024, 4294901760
      %2026 = vmatpush.msra.mxu0 %v2025
      %v2027 = vand.u32 %v174, 4294901760
      %v2028 = vsub.f32 %v174, %v2027
      %v2029 = vand.u32 %v2028, 4294901760
      %v2030 = vsub.f32 %v2028, %v2029
      %v2031 = vand.u32 %v2030, 4294901760
      %2032 = vmatpush.msra.mxu0 %v2031
      %v2033 = vand.u32 %v166, 4294901760
      %v2034 = vsub.f32 %v166, %v2033
      %v2035 = vand.u32 %v2034, 4294901760
      %v2036 = vsub.f32 %v2034, %v2035
      %v2037 = vand.u32 %v2036, 4294901760
      %2038 = vmatpush.msra.mxu0 %v2037
      %v2039 = vand.u32 %v158, 4294901760
      %v2040 = vsub.f32 %v158, %v2039
      %v2041 = vand.u32 %v2040, 4294901760
      %v2042 = vsub.f32 %v2040, %v2041
      %v2043 = vand.u32 %v2042, 4294901760
      %2044 = vmatpush.msra.mxu0 %v2043
      %v2045 = vand.u32 %v152, 4294901760
      %2046 = vmatmul.f32.gmra.mxu0 %v2045
      %v2047 = vpop.f32.mrf.mxu0
      %v2048 = vadd.f32 %v1939, %v2047
      %v2049 = vand.u32 %v154, 4294901760
      %2050 = vmatmul.f32.gmra.mxu0 %v2049
      %v2051 = vpop.f32.mrf.mxu0
      %v2052 = vadd.f32 %v1947, %v2051
      %2053 = vdwg.mxu0
      %v2054 = vand.u32 %v278, 4294901760
      %v2055 = vsub.f32 %v278, %v2054
      %2056 = vmatpush.msra.mxu0 %v2055
      %v2057 = vand.u32 %v270, 4294901760
      %v2058 = vsub.f32 %v270, %v2057
      %2059 = vmatpush.msra.mxu0 %v2058
      %v2060 = vand.u32 %v262, 4294901760
      %v2061 = vsub.f32 %v262, %v2060
      %2062 = vmatpush.msra.mxu0 %v2061
      %v2063 = vand.u32 %v254, 4294901760
      %v2064 = vsub.f32 %v254, %v2063
      %2065 = vmatpush.msra.mxu0 %v2064
      %v2066 = vand.u32 %v246, 4294901760
      %v2067 = vsub.f32 %v246, %v2066
      %2068 = vmatpush.msra.mxu0 %v2067
      %v2069 = vand.u32 %v238, 4294901760
      %v2070 = vsub.f32 %v238, %v2069
      %2071 = vmatpush.msra.mxu0 %v2070
      %v2072 = vand.u32 %v230, 4294901760
      %v2073 = vsub.f32 %v230, %v2072
      %2074 = vmatpush.msra.mxu0 %v2073
      %v2075 = vand.u32 %v222, 4294901760
      %v2076 = vsub.f32 %v222, %v2075
      %2077 = vmatpush.msra.mxu0 %v2076
      %v2078 = vand.u32 %v214, 4294901760
      %v2079 = vsub.f32 %v214, %v2078
      %2080 = vmatpush.msra.mxu0 %v2079
      %v2081 = vand.u32 %v206, 4294901760
      %v2082 = vsub.f32 %v206, %v2081
      %2083 = vmatpush.msra.mxu0 %v2082
      %v2084 = vand.u32 %v198, 4294901760
      %v2085 = vsub.f32 %v198, %v2084
      %2086 = vmatpush.msra.mxu0 %v2085
      %v2087 = vand.u32 %v190, 4294901760
      %v2088 = vsub.f32 %v190, %v2087
      %2089 = vmatpush.msra.mxu0 %v2088
      %v2090 = vand.u32 %v182, 4294901760
      %v2091 = vsub.f32 %v182, %v2090
      %2092 = vmatpush.msra.mxu0 %v2091
      %v2093 = vand.u32 %v174, 4294901760
      %v2094 = vsub.f32 %v174, %v2093
      %2095 = vmatpush.msra.mxu0 %v2094
      %v2096 = vand.u32 %v166, 4294901760
      %v2097 = vsub.f32 %v166, %v2096
      %2098 = vmatpush.msra.mxu0 %v2097
      %v2099 = vand.u32 %v158, 4294901760
      %v2100 = vsub.f32 %v158, %v2099
      %2101 = vmatpush.msra.mxu0 %v2100
      %v2102 = vand.u32 %v152, 4294901760
      %v2103 = vsub.f32 %v152, %v2102
      %2104 = vmatmul.f32.gmra.mxu0 %v2103
      %v2105 = vpop.f32.mrf.mxu0
      %v2106 = vadd.f32 %v2048, %v2105
      %v2107 = vand.u32 %v154, 4294901760
      %v2108 = vsub.f32 %v154, %v2107
      %2109 = vmatmul.f32.gmra.mxu0 %v2108
      %v2110 = vpop.f32.mrf.mxu0
      %v2111 = vadd.f32 %v2052, %v2110
      %2112 = vdwg.mxu0
      %v2113 = vand.u32 %v278, 4294901760
      %2114 = vmatpush.msra.mxu0 %v2113
      %v2115 = vand.u32 %v270, 4294901760
      %2116 = vmatpush.msra.mxu0 %v2115
      %v2117 = vand.u32 %v262, 4294901760
      %2118 = vmatpush.msra.mxu0 %v2117
      %v2119 = vand.u32 %v254, 4294901760
      %2120 = vmatpush.msra.mxu0 %v2119
      %v2121 = vand.u32 %v246, 4294901760
      %2122 = vmatpush.msra.mxu0 %v2121
      %v2123 = vand.u32 %v238, 4294901760
      %2124 = vmatpush.msra.mxu0 %v2123
      %v2125 = vand.u32 %v230, 4294901760
      %2126 = vmatpush.msra.mxu0 %v2125
      %v2127 = vand.u32 %v222, 4294901760
      %2128 = vmatpush.msra.mxu0 %v2127
      %v2129 = vand.u32 %v214, 4294901760
      %2130 = vmatpush.msra.mxu0 %v2129
      %v2131 = vand.u32 %v206, 4294901760
      %2132 = vmatpush.msra.mxu0 %v2131
      %v2133 = vand.u32 %v198, 4294901760
      %2134 = vmatpush.msra.mxu0 %v2133
      %v2135 = vand.u32 %v190, 4294901760
      %2136 = vmatpush.msra.mxu0 %v2135
      %v2137 = vand.u32 %v182, 4294901760
      %2138 = vmatpush.msra.mxu0 %v2137
      %v2139 = vand.u32 %v174, 4294901760
      %2140 = vmatpush.msra.mxu0 %v2139
      %v2141 = vand.u32 %v166, 4294901760
      %2142 = vmatpush.msra.mxu0 %v2141
      %v2143 = vand.u32 %v158, 4294901760
      %2144 = vmatpush.msra.mxu0 %v2143
      %v2145 = vand.u32 %v152, 4294901760
      %v2146 = vsub.f32 %v152, %v2145
      %v2147 = vand.u32 %v2146, 4294901760
      %2148 = vmatmul.f32.gmra.mxu0 %v2147
      %v2149 = vpop.f32.mrf.mxu0
      %v2150 = vadd.f32 %v2106, %v2149
      %v2151 = vand.u32 %v154, 4294901760
      %v2152 = vsub.f32 %v154, %v2151
      %v2153 = vand.u32 %v2152, 4294901760
      %2154 = vmatmul.f32.gmra.mxu0 %v2153
      %v2155 = vpop.f32.mrf.mxu0
      %v2156 = vadd.f32 %v2111, %v2155
      %2157 = vdwg.mxu0
      %v2158 = vand.u32 %v278, 4294901760
      %v2159 = vsub.f32 %v278, %v2158
      %v2160 = vand.u32 %v2159, 4294901760
      %2161 = vmatpush.msra.mxu0 %v2160
      %v2162 = vand.u32 %v270, 4294901760
      %v2163 = vsub.f32 %v270, %v2162
      %v2164 = vand.u32 %v2163, 4294901760
      %2165 = vmatpush.msra.mxu0 %v2164
      %v2166 = vand.u32 %v262, 4294901760
      %v2167 = vsub.f32 %v262, %v2166
      %v2168 = vand.u32 %v2167, 4294901760
      %2169 = vmatpush.msra.mxu0 %v2168
      %v2170 = vand.u32 %v254, 4294901760
      %v2171 = vsub.f32 %v254, %v2170
      %v2172 = vand.u32 %v2171, 4294901760
      %2173 = vmatpush.msra.mxu0 %v2172
      %v2174 = vand.u32 %v246, 4294901760
      %v2175 = vsub.f32 %v246, %v2174
      %v2176 = vand.u32 %v2175, 4294901760
      %2177 = vmatpush.msra.mxu0 %v2176
      %v2178 = vand.u32 %v238, 4294901760
      %v2179 = vsub.f32 %v238, %v2178
      %v2180 = vand.u32 %v2179, 4294901760
      %2181 = vmatpush.msra.mxu0 %v2180
      %v2182 = vand.u32 %v230, 4294901760
      %v2183 = vsub.f32 %v230, %v2182
      %v2184 = vand.u32 %v2183, 4294901760
      %2185 = vmatpush.msra.mxu0 %v2184
      %v2186 = vand.u32 %v222, 4294901760
      %v2187 = vsub.f32 %v222, %v2186
      %v2188 = vand.u32 %v2187, 4294901760
      %2189 = vmatpush.msra.mxu0 %v2188
      %v2190 = vand.u32 %v214, 4294901760
      %v2191 = vsub.f32 %v214, %v2190
      %v2192 = vand.u32 %v2191, 4294901760
      %2193 = vmatpush.msra.mxu0 %v2192
      %v2194 = vand.u32 %v206, 4294901760
      %v2195 = vsub.f32 %v206, %v2194
      %v2196 = vand.u32 %v2195, 4294901760
      %2197 = vmatpush.msra.mxu0 %v2196
      %v2198 = vand.u32 %v198, 4294901760
      %v2199 = vsub.f32 %v198, %v2198
      %v2200 = vand.u32 %v2199, 4294901760
      %2201 = vmatpush.msra.mxu0 %v2200
      %v2202 = vand.u32 %v190, 4294901760
      %v2203 = vsub.f32 %v190, %v2202
      %v2204 = vand.u32 %v2203, 4294901760
      %2205 = vmatpush.msra.mxu0 %v2204
      %v2206 = vand.u32 %v182, 4294901760
      %v2207 = vsub.f32 %v182, %v2206
      %v2208 = vand.u32 %v2207, 4294901760
      %2209 = vmatpush.msra.mxu0 %v2208
      %v2210 = vand.u32 %v174, 4294901760
      %v2211 = vsub.f32 %v174, %v2210
      %v2212 = vand.u32 %v2211, 4294901760
      %2213 = vmatpush.msra.mxu0 %v2212
      %v2214 = vand.u32 %v166, 4294901760
      %v2215 = vsub.f32 %v166, %v2214
      %v2216 = vand.u32 %v2215, 4294901760
      %2217 = vmatpush.msra.mxu0 %v2216
      %v2218 = vand.u32 %v158, 4294901760
      %v2219 = vsub.f32 %v158, %v2218
      %v2220 = vand.u32 %v2219, 4294901760
      %2221 = vmatpush.msra.mxu0 %v2220
      %v2222 = vand.u32 %v152, 4294901760
      %2223 = vmatmul.f32.gmra.mxu0 %v2222
      %v2224 = vpop.f32.mrf.mxu0
      %v2225 = vadd.f32 %v2150, %v2224
      %v2226 = vand.u32 %v154, 4294901760
      %2227 = vmatmul.f32.gmra.mxu0 %v2226
      %v2228 = vpop.f32.mrf.mxu0
      %v2229 = vadd.f32 %v2156, %v2228
      %2230 = vdwg.mxu0
      %v2231 = vand.u32 %v278, 4294901760
      %2232 = vmatpush.msra.mxu0 %v2231
      %v2233 = vand.u32 %v270, 4294901760
      %2234 = vmatpush.msra.mxu0 %v2233
      %v2235 = vand.u32 %v262, 4294901760
      %2236 = vmatpush.msra.mxu0 %v2235
      %v2237 = vand.u32 %v254, 4294901760
      %2238 = vmatpush.msra.mxu0 %v2237
      %v2239 = vand.u32 %v246, 4294901760
      %2240 = vmatpush.msra.mxu0 %v2239
      %v2241 = vand.u32 %v238, 4294901760
      %2242 = vmatpush.msra.mxu0 %v2241
      %v2243 = vand.u32 %v230, 4294901760
      %2244 = vmatpush.msra.mxu0 %v2243
      %v2245 = vand.u32 %v222, 4294901760
      %2246 = vmatpush.msra.mxu0 %v2245
      %v2247 = vand.u32 %v214, 4294901760
      %2248 = vmatpush.msra.mxu0 %v2247
      %v2249 = vand.u32 %v206, 4294901760
      %2250 = vmatpush.msra.mxu0 %v2249
      %v2251 = vand.u32 %v198, 4294901760
      %2252 = vmatpush.msra.mxu0 %v2251
      %v2253 = vand.u32 %v190, 4294901760
      %2254 = vmatpush.msra.mxu0 %v2253
      %v2255 = vand.u32 %v182, 4294901760
      %2256 = vmatpush.msra.mxu0 %v2255
      %v2257 = vand.u32 %v174, 4294901760
      %2258 = vmatpush.msra.mxu0 %v2257
      %v2259 = vand.u32 %v166, 4294901760
      %2260 = vmatpush.msra.mxu0 %v2259
      %v2261 = vand.u32 %v158, 4294901760
      %2262 = vmatpush.msra.mxu0 %v2261
      %v2263 = vand.u32 %v152, 4294901760
      %2264 = vmatmul.f32.gmra.mxu0 %v2263
      %v2265 = vpop.f32.mrf.mxu0
      %v2266 = vadd.f32 %v2225, %v2265
      %v2267 = vand.u32 %v154, 4294901760
      %2268 = vmatmul.f32.gmra.mxu0 %v2267
      %v2269 = vpop.f32.mrf.mxu0
      %v2270 = vadd.f32 %v2229, %v2269
      %2271 = vdwg.mxu0
      %v2272 = vand.u32 %v406, 4294901760
      %2273 = vmatpush.msra.mxu0 %v2272
      %v2274 = vand.u32 %v398, 4294901760
      %2275 = vmatpush.msra.mxu0 %v2274
      %v2276 = vand.u32 %v390, 4294901760
      %2277 = vmatpush.msra.mxu0 %v2276
      %v2278 = vand.u32 %v382, 4294901760
      %2279 = vmatpush.msra.mxu0 %v2278
      %v2280 = vand.u32 %v374, 4294901760
      %2281 = vmatpush.msra.mxu0 %v2280
      %v2282 = vand.u32 %v366, 4294901760
      %2283 = vmatpush.msra.mxu0 %v2282
      %v2284 = vand.u32 %v358, 4294901760
      %2285 = vmatpush.msra.mxu0 %v2284
      %v2286 = vand.u32 %v350, 4294901760
      %2287 = vmatpush.msra.mxu0 %v2286
      %v2288 = vand.u32 %v342, 4294901760
      %2289 = vmatpush.msra.mxu0 %v2288
      %v2290 = vand.u32 %v334, 4294901760
      %2291 = vmatpush.msra.mxu0 %v2290
      %v2292 = vand.u32 %v326, 4294901760
      %2293 = vmatpush.msra.mxu0 %v2292
      %v2294 = vand.u32 %v318, 4294901760
      %2295 = vmatpush.msra.mxu0 %v2294
      %v2296 = vand.u32 %v310, 4294901760
      %2297 = vmatpush.msra.mxu0 %v2296
      %v2298 = vand.u32 %v302, 4294901760
      %2299 = vmatpush.msra.mxu0 %v2298
      %v2300 = vand.u32 %v294, 4294901760
      %2301 = vmatpush.msra.mxu0 %v2300
      %v2302 = vand.u32 %v286, 4294901760
      %2303 = vmatpush.msra.mxu0 %v2302
      %v2304 = vand.u32 %v153, 4294901760
      %v2305 = vsub.f32 %v153, %v2304
      %v2306 = vand.u32 %v2305, 4294901760
      %v2307 = vsub.f32 %v2305, %v2306
      %v2308 = vand.u32 %v2307, 4294901760
      %2309 = vmatmul.f32.gmra.mxu0 %v2308
      %v2310 = vpop.f32.mrf.mxu0
      %v2311 = vadd.f32 %v2266, %v2310
      %v2312 = vand.u32 %v155, 4294901760
      %v2313 = vsub.f32 %v155, %v2312
      %v2314 = vand.u32 %v2313, 4294901760
      %v2315 = vsub.f32 %v2313, %v2314
      %v2316 = vand.u32 %v2315, 4294901760
      %2317 = vmatmul.f32.gmra.mxu0 %v2316
      %v2318 = vpop.f32.mrf.mxu0
      %v2319 = vadd.f32 %v2270, %v2318
      %2320 = vdwg.mxu0
      %v2321 = vand.u32 %v406, 4294901760
      %v2322 = vsub.f32 %v406, %v2321
      %v2323 = vand.u32 %v2322, 4294901760
      %v2324 = vsub.f32 %v2322, %v2323
      %v2325 = vand.u32 %v2324, 4294901760
      %2326 = vmatpush.msra.mxu0 %v2325
      %v2327 = vand.u32 %v398, 4294901760
      %v2328 = vsub.f32 %v398, %v2327
      %v2329 = vand.u32 %v2328, 4294901760
      %v2330 = vsub.f32 %v2328, %v2329
      %v2331 = vand.u32 %v2330, 4294901760
      %2332 = vmatpush.msra.mxu0 %v2331
      %v2333 = vand.u32 %v390, 4294901760
      %v2334 = vsub.f32 %v390, %v2333
      %v2335 = vand.u32 %v2334, 4294901760
      %v2336 = vsub.f32 %v2334, %v2335
      %v2337 = vand.u32 %v2336, 4294901760
      %2338 = vmatpush.msra.mxu0 %v2337
      %v2339 = vand.u32 %v382, 4294901760
      %v2340 = vsub.f32 %v382, %v2339
      %v2341 = vand.u32 %v2340, 4294901760
      %v2342 = vsub.f32 %v2340, %v2341
      %v2343 = vand.u32 %v2342, 4294901760
      %2344 = vmatpush.msra.mxu0 %v2343
      %v2345 = vand.u32 %v374, 4294901760
      %v2346 = vsub.f32 %v374, %v2345
      %v2347 = vand.u32 %v2346, 4294901760
      %v2348 = vsub.f32 %v2346, %v2347
      %v2349 = vand.u32 %v2348, 4294901760
      %2350 = vmatpush.msra.mxu0 %v2349
      %v2351 = vand.u32 %v366, 4294901760
      %v2352 = vsub.f32 %v366, %v2351
      %v2353 = vand.u32 %v2352, 4294901760
      %v2354 = vsub.f32 %v2352, %v2353
      %v2355 = vand.u32 %v2354, 4294901760
      %2356 = vmatpush.msra.mxu0 %v2355
      %v2357 = vand.u32 %v358, 4294901760
      %v2358 = vsub.f32 %v358, %v2357
      %v2359 = vand.u32 %v2358, 4294901760
      %v2360 = vsub.f32 %v2358, %v2359
      %v2361 = vand.u32 %v2360, 4294901760
      %2362 = vmatpush.msra.mxu0 %v2361
      %v2363 = vand.u32 %v350, 4294901760
      %v2364 = vsub.f32 %v350, %v2363
      %v2365 = vand.u32 %v2364, 4294901760
      %v2366 = vsub.f32 %v2364, %v2365
      %v2367 = vand.u32 %v2366, 4294901760
      %2368 = vmatpush.msra.mxu0 %v2367
      %v2369 = vand.u32 %v342, 4294901760
      %v2370 = vsub.f32 %v342, %v2369
      %v2371 = vand.u32 %v2370, 4294901760
      %v2372 = vsub.f32 %v2370, %v2371
      %v2373 = vand.u32 %v2372, 4294901760
      %2374 = vmatpush.msra.mxu0 %v2373
      %v2375 = vand.u32 %v334, 4294901760
      %v2376 = vsub.f32 %v334, %v2375
      %v2377 = vand.u32 %v2376, 4294901760
      %v2378 = vsub.f32 %v2376, %v2377
      %v2379 = vand.u32 %v2378, 4294901760
      %2380 = vmatpush.msra.mxu0 %v2379
      %v2381 = vand.u32 %v326, 4294901760
      %v2382 = vsub.f32 %v326, %v2381
      %v2383 = vand.u32 %v2382, 4294901760
      %v2384 = vsub.f32 %v2382, %v2383
      %v2385 = vand.u32 %v2384, 4294901760
      %2386 = vmatpush.msra.mxu0 %v2385
      %v2387 = vand.u32 %v318, 4294901760
      %v2388 = vsub.f32 %v318, %v2387
      %v2389 = vand.u32 %v2388, 4294901760
      %v2390 = vsub.f32 %v2388, %v2389
      %v2391 = vand.u32 %v2390, 4294901760
      %2392 = vmatpush.msra.mxu0 %v2391
      %v2393 = vand.u32 %v310, 4294901760
      %v2394 = vsub.f32 %v310, %v2393
      %v2395 = vand.u32 %v2394, 4294901760
      %v2396 = vsub.f32 %v2394, %v2395
      %v2397 = vand.u32 %v2396, 4294901760
      %2398 = vmatpush.msra.mxu0 %v2397
      %v2399 = vand.u32 %v302, 4294901760
      %v2400 = vsub.f32 %v302, %v2399
      %v2401 = vand.u32 %v2400, 4294901760
      %v2402 = vsub.f32 %v2400, %v2401
      %v2403 = vand.u32 %v2402, 4294901760
      %2404 = vmatpush.msra.mxu0 %v2403
      %v2405 = vand.u32 %v294, 4294901760
      %v2406 = vsub.f32 %v294, %v2405
      %v2407 = vand.u32 %v2406, 4294901760
      %v2408 = vsub.f32 %v2406, %v2407
      %v2409 = vand.u32 %v2408, 4294901760
      %2410 = vmatpush.msra.mxu0 %v2409
      %v2411 = vand.u32 %v286, 4294901760
      %v2412 = vsub.f32 %v286, %v2411
      %v2413 = vand.u32 %v2412, 4294901760
      %v2414 = vsub.f32 %v2412, %v2413
      %v2415 = vand.u32 %v2414, 4294901760
      %2416 = vmatpush.msra.mxu0 %v2415
      %v2417 = vand.u32 %v153, 4294901760
      %2418 = vmatmul.f32.gmra.mxu0 %v2417
      %v2419 = vpop.f32.mrf.mxu0
      %v2420 = vadd.f32 %v2311, %v2419
      %v2421 = vand.u32 %v155, 4294901760
      %2422 = vmatmul.f32.gmra.mxu0 %v2421
      %v2423 = vpop.f32.mrf.mxu0
      %v2424 = vadd.f32 %v2319, %v2423
      %2425 = vdwg.mxu0
      %v2426 = vand.u32 %v406, 4294901760
      %v2427 = vsub.f32 %v406, %v2426
      %2428 = vmatpush.msra.mxu0 %v2427
      %v2429 = vand.u32 %v398, 4294901760
      %v2430 = vsub.f32 %v398, %v2429
      %2431 = vmatpush.msra.mxu0 %v2430
      %v2432 = vand.u32 %v390, 4294901760
      %v2433 = vsub.f32 %v390, %v2432
      %2434 = vmatpush.msra.mxu0 %v2433
      %v2435 = vand.u32 %v382, 4294901760
      %v2436 = vsub.f32 %v382, %v2435
      %2437 = vmatpush.msra.mxu0 %v2436
      %v2438 = vand.u32 %v374, 4294901760
      %v2439 = vsub.f32 %v374, %v2438
      %2440 = vmatpush.msra.mxu0 %v2439
      %v2441 = vand.u32 %v366, 4294901760
      %v2442 = vsub.f32 %v366, %v2441
      %2443 = vmatpush.msra.mxu0 %v2442
      %v2444 = vand.u32 %v358, 4294901760
      %v2445 = vsub.f32 %v358, %v2444
      %2446 = vmatpush.msra.mxu0 %v2445
      %v2447 = vand.u32 %v350, 4294901760
      %v2448 = vsub.f32 %v350, %v2447
      %2449 = vmatpush.msra.mxu0 %v2448
      %v2450 = vand.u32 %v342, 4294901760
      %v2451 = vsub.f32 %v342, %v2450
      %2452 = vmatpush.msra.mxu0 %v2451
      %v2453 = vand.u32 %v334, 4294901760
      %v2454 = vsub.f32 %v334, %v2453
      %2455 = vmatpush.msra.mxu0 %v2454
      %v2456 = vand.u32 %v326, 4294901760
      %v2457 = vsub.f32 %v326, %v2456
      %2458 = vmatpush.msra.mxu0 %v2457
      %v2459 = vand.u32 %v318, 4294901760
      %v2460 = vsub.f32 %v318, %v2459
      %2461 = vmatpush.msra.mxu0 %v2460
      %v2462 = vand.u32 %v310, 4294901760
      %v2463 = vsub.f32 %v310, %v2462
      %2464 = vmatpush.msra.mxu0 %v2463
      %v2465 = vand.u32 %v302, 4294901760
      %v2466 = vsub.f32 %v302, %v2465
      %2467 = vmatpush.msra.mxu0 %v2466
      %v2468 = vand.u32 %v294, 4294901760
      %v2469 = vsub.f32 %v294, %v2468
      %2470 = vmatpush.msra.mxu0 %v2469
      %v2471 = vand.u32 %v286, 4294901760
      %v2472 = vsub.f32 %v286, %v2471
      %2473 = vmatpush.msra.mxu0 %v2472
      %v2474 = vand.u32 %v153, 4294901760
      %v2475 = vsub.f32 %v153, %v2474
      %2476 = vmatmul.f32.gmra.mxu0 %v2475
      %v2477 = vpop.f32.mrf.mxu0
      %v2478 = vadd.f32 %v2420, %v2477
      %v2479 = vand.u32 %v155, 4294901760
      %v2480 = vsub.f32 %v155, %v2479
      %2481 = vmatmul.f32.gmra.mxu0 %v2480
      %v2482 = vpop.f32.mrf.mxu0
      %v2483 = vadd.f32 %v2424, %v2482
      %2484 = vdwg.mxu0
      %v2485 = vand.u32 %v406, 4294901760
      %2486 = vmatpush.msra.mxu0 %v2485
      %v2487 = vand.u32 %v398, 4294901760
      %2488 = vmatpush.msra.mxu0 %v2487
      %v2489 = vand.u32 %v390, 4294901760
      %2490 = vmatpush.msra.mxu0 %v2489
      %v2491 = vand.u32 %v382, 4294901760
      %2492 = vmatpush.msra.mxu0 %v2491
      %v2493 = vand.u32 %v374, 4294901760
      %2494 = vmatpush.msra.mxu0 %v2493
      %v2495 = vand.u32 %v366, 4294901760
      %2496 = vmatpush.msra.mxu0 %v2495
      %v2497 = vand.u32 %v358, 4294901760
      %2498 = vmatpush.msra.mxu0 %v2497
      %v2499 = vand.u32 %v350, 4294901760
      %2500 = vmatpush.msra.mxu0 %v2499
      %v2501 = vand.u32 %v342, 4294901760
      %2502 = vmatpush.msra.mxu0 %v2501
      %v2503 = vand.u32 %v334, 4294901760
      %2504 = vmatpush.msra.mxu0 %v2503
      %v2505 = vand.u32 %v326, 4294901760
      %2506 = vmatpush.msra.mxu0 %v2505
      %v2507 = vand.u32 %v318, 4294901760
      %2508 = vmatpush.msra.mxu0 %v2507
      %v2509 = vand.u32 %v310, 4294901760
      %2510 = vmatpush.msra.mxu0 %v2509
      %v2511 = vand.u32 %v302, 4294901760
      %2512 = vmatpush.msra.mxu0 %v2511
      %v2513 = vand.u32 %v294, 4294901760
      %2514 = vmatpush.msra.mxu0 %v2513
      %v2515 = vand.u32 %v286, 4294901760
      %2516 = vmatpush.msra.mxu0 %v2515
      %v2517 = vand.u32 %v153, 4294901760
      %v2518 = vsub.f32 %v153, %v2517
      %v2519 = vand.u32 %v2518, 4294901760
      %2520 = vmatmul.f32.gmra.mxu0 %v2519
      %v2521 = vpop.f32.mrf.mxu0
      %v2522 = vadd.f32 %v2478, %v2521
      %v2523 = vand.u32 %v155, 4294901760
      %v2524 = vsub.f32 %v155, %v2523
      %v2525 = vand.u32 %v2524, 4294901760
      %2526 = vmatmul.f32.gmra.mxu0 %v2525
      %v2527 = vpop.f32.mrf.mxu0
      %v2528 = vadd.f32 %v2483, %v2527
      %2529 = vdwg.mxu0
      %v2530 = vand.u32 %v406, 4294901760
      %v2531 = vsub.f32 %v406, %v2530
      %v2532 = vand.u32 %v2531, 4294901760
      %2533 = vmatpush.msra.mxu0 %v2532
      %v2534 = vand.u32 %v398, 4294901760
      %v2535 = vsub.f32 %v398, %v2534
      %v2536 = vand.u32 %v2535, 4294901760
      %2537 = vmatpush.msra.mxu0 %v2536
      %v2538 = vand.u32 %v390, 4294901760
      %v2539 = vsub.f32 %v390, %v2538
      %v2540 = vand.u32 %v2539, 4294901760
      %2541 = vmatpush.msra.mxu0 %v2540
      %v2542 = vand.u32 %v382, 4294901760
      %v2543 = vsub.f32 %v382, %v2542
      %v2544 = vand.u32 %v2543, 4294901760
      %2545 = vmatpush.msra.mxu0 %v2544
      %v2546 = vand.u32 %v374, 4294901760
      %v2547 = vsub.f32 %v374, %v2546
      %v2548 = vand.u32 %v2547, 4294901760
      %2549 = vmatpush.msra.mxu0 %v2548
      %v2550 = vand.u32 %v366, 4294901760
      %v2551 = vsub.f32 %v366, %v2550
      %v2552 = vand.u32 %v2551, 4294901760
      %2553 = vmatpush.msra.mxu0 %v2552
      %v2554 = vand.u32 %v358, 4294901760
      %v2555 = vsub.f32 %v358, %v2554
      %v2556 = vand.u32 %v2555, 4294901760
      %2557 = vmatpush.msra.mxu0 %v2556
      %v2558 = vand.u32 %v350, 4294901760
      %v2559 = vsub.f32 %v350, %v2558
      %v2560 = vand.u32 %v2559, 4294901760
      %2561 = vmatpush.msra.mxu0 %v2560
      %v2562 = vand.u32 %v342, 4294901760
      %v2563 = vsub.f32 %v342, %v2562
      %v2564 = vand.u32 %v2563, 4294901760
      %2565 = vmatpush.msra.mxu0 %v2564
      %v2566 = vand.u32 %v334, 4294901760
      %v2567 = vsub.f32 %v334, %v2566
      %v2568 = vand.u32 %v2567, 4294901760
      %2569 = vmatpush.msra.mxu0 %v2568
      %v2570 = vand.u32 %v326, 4294901760
      %v2571 = vsub.f32 %v326, %v2570
      %v2572 = vand.u32 %v2571, 4294901760
      %2573 = vmatpush.msra.mxu0 %v2572
      %v2574 = vand.u32 %v318, 4294901760
      %v2575 = vsub.f32 %v318, %v2574
      %v2576 = vand.u32 %v2575, 4294901760
      %2577 = vmatpush.msra.mxu0 %v2576
      %v2578 = vand.u32 %v310, 4294901760
      %v2579 = vsub.f32 %v310, %v2578
      %v2580 = vand.u32 %v2579, 4294901760
      %2581 = vmatpush.msra.mxu0 %v2580
      %v2582 = vand.u32 %v302, 4294901760
      %v2583 = vsub.f32 %v302, %v2582
      %v2584 = vand.u32 %v2583, 4294901760
      %2585 = vmatpush.msra.mxu0 %v2584
      %v2586 = vand.u32 %v294, 4294901760
      %v2587 = vsub.f32 %v294, %v2586
      %v2588 = vand.u32 %v2587, 4294901760
      %2589 = vmatpush.msra.mxu0 %v2588
      %v2590 = vand.u32 %v286, 4294901760
      %v2591 = vsub.f32 %v286, %v2590
      %v2592 = vand.u32 %v2591, 4294901760
      %2593 = vmatpush.msra.mxu0 %v2592
      %v2594 = vand.u32 %v153, 4294901760
      %2595 = vmatmul.f32.gmra.mxu0 %v2594
      %v2596 = vpop.f32.mrf.mxu0
      %v2597 = vadd.f32 %v2522, %v2596
      %v2598 = vand.u32 %v155, 4294901760
      %2599 = vmatmul.f32.gmra.mxu0 %v2598
      %v2600 = vpop.f32.mrf.mxu0
      %v2601 = vadd.f32 %v2528, %v2600
      %2602 = vdwg.mxu0
      %v2603 = vand.u32 %v406, 4294901760
      %2604 = vmatpush.msra.mxu0 %v2603
      %v2605 = vand.u32 %v398, 4294901760
      %2606 = vmatpush.msra.mxu0 %v2605
      %v2607 = vand.u32 %v390, 4294901760
      %2608 = vmatpush.msra.mxu0 %v2607
      %v2609 = vand.u32 %v382, 4294901760
      %2610 = vmatpush.msra.mxu0 %v2609
      %v2611 = vand.u32 %v374, 4294901760
      %2612 = vmatpush.msra.mxu0 %v2611
      %v2613 = vand.u32 %v366, 4294901760
      %2614 = vmatpush.msra.mxu0 %v2613
      %v2615 = vand.u32 %v358, 4294901760
      %2616 = vmatpush.msra.mxu0 %v2615
      %v2617 = vand.u32 %v350, 4294901760
      %2618 = vmatpush.msra.mxu0 %v2617
      %v2619 = vand.u32 %v342, 4294901760
      %2620 = vmatpush.msra.mxu0 %v2619
      %v2621 = vand.u32 %v334, 4294901760
      %2622 = vmatpush.msra.mxu0 %v2621
      %v2623 = vand.u32 %v326, 4294901760
      %2624 = vmatpush.msra.mxu0 %v2623
      %v2625 = vand.u32 %v318, 4294901760
      %2626 = vmatpush.msra.mxu0 %v2625
      %v2627 = vand.u32 %v310, 4294901760
      %2628 = vmatpush.msra.mxu0 %v2627
      %v2629 = vand.u32 %v302, 4294901760
      %2630 = vmatpush.msra.mxu0 %v2629
      %v2631 = vand.u32 %v294, 4294901760
      %2632 = vmatpush.msra.mxu0 %v2631
      %v2633 = vand.u32 %v286, 4294901760
      %2634 = vmatpush.msra.mxu0 %v2633
      %v2635 = vand.u32 %v153, 4294901760
      %2636 = vmatmul.f32.gmra.mxu0 %v2635
      %v2637 = vpop.f32.mrf.mxu0
      %v2638 = vadd.f32 %v2597, %v2637
      %v2639 = vand.u32 %v155, 4294901760
      %2640 = vmatmul.f32.gmra.mxu0 %v2639
      %v2641 = vpop.f32.mrf.mxu0
      %v2642 = vadd.f32 %v2601, %v2641
      %2643 = vdwg.mxu0
      %v2644 = vand.u32 %v279, 4294901760
      %2645 = vmatpush.msra.mxu0 %v2644
      %v2646 = vand.u32 %v271, 4294901760
      %2647 = vmatpush.msra.mxu0 %v2646
      %v2648 = vand.u32 %v263, 4294901760
      %2649 = vmatpush.msra.mxu0 %v2648
      %v2650 = vand.u32 %v255, 4294901760
      %2651 = vmatpush.msra.mxu0 %v2650
      %v2652 = vand.u32 %v247, 4294901760
      %2653 = vmatpush.msra.mxu0 %v2652
      %v2654 = vand.u32 %v239, 4294901760
      %2655 = vmatpush.msra.mxu0 %v2654
      %v2656 = vand.u32 %v231, 4294901760
      %2657 = vmatpush.msra.mxu0 %v2656
      %v2658 = vand.u32 %v223, 4294901760
      %2659 = vmatpush.msra.mxu0 %v2658
      %v2660 = vand.u32 %v215, 4294901760
      %2661 = vmatpush.msra.mxu0 %v2660
      %v2662 = vand.u32 %v207, 4294901760
      %2663 = vmatpush.msra.mxu0 %v2662
      %v2664 = vand.u32 %v199, 4294901760
      %2665 = vmatpush.msra.mxu0 %v2664
      %v2666 = vand.u32 %v191, 4294901760
      %2667 = vmatpush.msra.mxu0 %v2666
      %v2668 = vand.u32 %v183, 4294901760
      %2669 = vmatpush.msra.mxu0 %v2668
      %v2670 = vand.u32 %v175, 4294901760
      %2671 = vmatpush.msra.mxu0 %v2670
      %v2672 = vand.u32 %v167, 4294901760
      %2673 = vmatpush.msra.mxu0 %v2672
      %v2674 = vand.u32 %v159, 4294901760
      %2675 = vmatpush.msra.mxu0 %v2674
      %v2676 = vand.u32 %v152, 4294901760
      %v2677 = vsub.f32 %v152, %v2676
      %v2678 = vand.u32 %v2677, 4294901760
      %v2679 = vsub.f32 %v2677, %v2678
      %v2680 = vand.u32 %v2679, 4294901760
      %2681 = vmatmul.f32.gmra.mxu0 %v2680
      %v2682 = vpop.f32.mrf.mxu0
      %v2683 = vadd.f32 0.0, %v2682
      %v2684 = vand.u32 %v154, 4294901760
      %v2685 = vsub.f32 %v154, %v2684
      %v2686 = vand.u32 %v2685, 4294901760
      %v2687 = vsub.f32 %v2685, %v2686
      %v2688 = vand.u32 %v2687, 4294901760
      %2689 = vmatmul.f32.gmra.mxu0 %v2688
      %v2690 = vpop.f32.mrf.mxu0
      %v2691 = vadd.f32 0.0, %v2690
      %2692 = vdwg.mxu0
      %v2693 = vand.u32 %v279, 4294901760
      %v2694 = vsub.f32 %v279, %v2693
      %v2695 = vand.u32 %v2694, 4294901760
      %v2696 = vsub.f32 %v2694, %v2695
      %v2697 = vand.u32 %v2696, 4294901760
      %2698 = vmatpush.msra.mxu0 %v2697
      %v2699 = vand.u32 %v271, 4294901760
      %v2700 = vsub.f32 %v271, %v2699
      %v2701 = vand.u32 %v2700, 4294901760
      %v2702 = vsub.f32 %v2700, %v2701
      %v2703 = vand.u32 %v2702, 4294901760
      %2704 = vmatpush.msra.mxu0 %v2703
      %v2705 = vand.u32 %v263, 4294901760
      %v2706 = vsub.f32 %v263, %v2705
      %v2707 = vand.u32 %v2706, 4294901760
      %v2708 = vsub.f32 %v2706, %v2707
      %v2709 = vand.u32 %v2708, 4294901760
      %2710 = vmatpush.msra.mxu0 %v2709
      %v2711 = vand.u32 %v255, 4294901760
      %v2712 = vsub.f32 %v255, %v2711
      %v2713 = vand.u32 %v2712, 4294901760
      %v2714 = vsub.f32 %v2712, %v2713
      %v2715 = vand.u32 %v2714, 4294901760
      %2716 = vmatpush.msra.mxu0 %v2715
      %v2717 = vand.u32 %v247, 4294901760
      %v2718 = vsub.f32 %v247, %v2717
      %v2719 = vand.u32 %v2718, 4294901760
      %v2720 = vsub.f32 %v2718, %v2719
      %v2721 = vand.u32 %v2720, 4294901760
      %2722 = vmatpush.msra.mxu0 %v2721
      %v2723 = vand.u32 %v239, 4294901760
      %v2724 = vsub.f32 %v239, %v2723
      %v2725 = vand.u32 %v2724, 4294901760
      %v2726 = vsub.f32 %v2724, %v2725
      %v2727 = vand.u32 %v2726, 4294901760
      %2728 = vmatpush.msra.mxu0 %v2727
      %v2729 = vand.u32 %v231, 4294901760
      %v2730 = vsub.f32 %v231, %v2729
      %v2731 = vand.u32 %v2730, 4294901760
      %v2732 = vsub.f32 %v2730, %v2731
      %v2733 = vand.u32 %v2732, 4294901760
      %2734 = vmatpush.msra.mxu0 %v2733
      %v2735 = vand.u32 %v223, 4294901760
      %v2736 = vsub.f32 %v223, %v2735
      %v2737 = vand.u32 %v2736, 4294901760
      %v2738 = vsub.f32 %v2736, %v2737
      %v2739 = vand.u32 %v2738, 4294901760
      %2740 = vmatpush.msra.mxu0 %v2739
      %v2741 = vand.u32 %v215, 4294901760
      %v2742 = vsub.f32 %v215, %v2741
      %v2743 = vand.u32 %v2742, 4294901760
      %v2744 = vsub.f32 %v2742, %v2743
      %v2745 = vand.u32 %v2744, 4294901760
      %2746 = vmatpush.msra.mxu0 %v2745
      %v2747 = vand.u32 %v207, 4294901760
      %v2748 = vsub.f32 %v207, %v2747
      %v2749 = vand.u32 %v2748, 4294901760
      %v2750 = vsub.f32 %v2748, %v2749
      %v2751 = vand.u32 %v2750, 4294901760
      %2752 = vmatpush.msra.mxu0 %v2751
      %v2753 = vand.u32 %v199, 4294901760
      %v2754 = vsub.f32 %v199, %v2753
      %v2755 = vand.u32 %v2754, 4294901760
      %v2756 = vsub.f32 %v2754, %v2755
      %v2757 = vand.u32 %v2756, 4294901760
      %2758 = vmatpush.msra.mxu0 %v2757
      %v2759 = vand.u32 %v191, 4294901760
      %v2760 = vsub.f32 %v191, %v2759
      %v2761 = vand.u32 %v2760, 4294901760
      %v2762 = vsub.f32 %v2760, %v2761
      %v2763 = vand.u32 %v2762, 4294901760
      %2764 = vmatpush.msra.mxu0 %v2763
      %v2765 = vand.u32 %v183, 4294901760
      %v2766 = vsub.f32 %v183, %v2765
      %v2767 = vand.u32 %v2766, 4294901760
      %v2768 = vsub.f32 %v2766, %v2767
      %v2769 = vand.u32 %v2768, 4294901760
      %2770 = vmatpush.msra.mxu0 %v2769
      %v2771 = vand.u32 %v175, 4294901760
      %v2772 = vsub.f32 %v175, %v2771
      %v2773 = vand.u32 %v2772, 4294901760
      %v2774 = vsub.f32 %v2772, %v2773
      %v2775 = vand.u32 %v2774, 4294901760
      %2776 = vmatpush.msra.mxu0 %v2775
      %v2777 = vand.u32 %v167, 4294901760
      %v2778 = vsub.f32 %v167, %v2777
      %v2779 = vand.u32 %v2778, 4294901760
      %v2780 = vsub.f32 %v2778, %v2779
      %v2781 = vand.u32 %v2780, 4294901760
      %2782 = vmatpush.msra.mxu0 %v2781
      %v2783 = vand.u32 %v159, 4294901760
      %v2784 = vsub.f32 %v159, %v2783
      %v2785 = vand.u32 %v2784, 4294901760
      %v2786 = vsub.f32 %v2784, %v2785
      %v2787 = vand.u32 %v2786, 4294901760
      %2788 = vmatpush.msra.mxu0 %v2787
      %v2789 = vand.u32 %v152, 4294901760
      %2790 = vmatmul.f32.gmra.mxu0 %v2789
      %v2791 = vpop.f32.mrf.mxu0
      %v2792 = vadd.f32 %v2683, %v2791
      %v2793 = vand.u32 %v154, 4294901760
      %2794 = vmatmul.f32.gmra.mxu0 %v2793
      %v2795 = vpop.f32.mrf.mxu0
      %v2796 = vadd.f32 %v2691, %v2795
      %2797 = vdwg.mxu0
      %v2798 = vand.u32 %v279, 4294901760
      %v2799 = vsub.f32 %v279, %v2798
      %2800 = vmatpush.msra.mxu0 %v2799
      %v2801 = vand.u32 %v271, 4294901760
      %v2802 = vsub.f32 %v271, %v2801
      %2803 = vmatpush.msra.mxu0 %v2802
      %v2804 = vand.u32 %v263, 4294901760
      %v2805 = vsub.f32 %v263, %v2804
      %2806 = vmatpush.msra.mxu0 %v2805
      %v2807 = vand.u32 %v255, 4294901760
      %v2808 = vsub.f32 %v255, %v2807
      %2809 = vmatpush.msra.mxu0 %v2808
      %v2810 = vand.u32 %v247, 4294901760
      %v2811 = vsub.f32 %v247, %v2810
      %2812 = vmatpush.msra.mxu0 %v2811
      %v2813 = vand.u32 %v239, 4294901760
      %v2814 = vsub.f32 %v239, %v2813
      %2815 = vmatpush.msra.mxu0 %v2814
      %v2816 = vand.u32 %v231, 4294901760
      %v2817 = vsub.f32 %v231, %v2816
      %2818 = vmatpush.msra.mxu0 %v2817
      %v2819 = vand.u32 %v223, 4294901760
      %v2820 = vsub.f32 %v223, %v2819
      %2821 = vmatpush.msra.mxu0 %v2820
      %v2822 = vand.u32 %v215, 4294901760
      %v2823 = vsub.f32 %v215, %v2822
      %2824 = vmatpush.msra.mxu0 %v2823
      %v2825 = vand.u32 %v207, 4294901760
      %v2826 = vsub.f32 %v207, %v2825
      %2827 = vmatpush.msra.mxu0 %v2826
      %v2828 = vand.u32 %v199, 4294901760
      %v2829 = vsub.f32 %v199, %v2828
      %2830 = vmatpush.msra.mxu0 %v2829
      %v2831 = vand.u32 %v191, 4294901760
      %v2832 = vsub.f32 %v191, %v2831
      %2833 = vmatpush.msra.mxu0 %v2832
      %v2834 = vand.u32 %v183, 4294901760
      %v2835 = vsub.f32 %v183, %v2834
      %2836 = vmatpush.msra.mxu0 %v2835
      %v2837 = vand.u32 %v175, 4294901760
      %v2838 = vsub.f32 %v175, %v2837
      %2839 = vmatpush.msra.mxu0 %v2838
      %v2840 = vand.u32 %v167, 4294901760
      %v2841 = vsub.f32 %v167, %v2840
      %2842 = vmatpush.msra.mxu0 %v2841
      %v2843 = vand.u32 %v159, 4294901760
      %v2844 = vsub.f32 %v159, %v2843
      %2845 = vmatpush.msra.mxu0 %v2844
      %v2846 = vand.u32 %v152, 4294901760
      %v2847 = vsub.f32 %v152, %v2846
      %2848 = vmatmul.f32.gmra.mxu0 %v2847
      %v2849 = vpop.f32.mrf.mxu0
      %v2850 = vadd.f32 %v2792, %v2849
      %v2851 = vand.u32 %v154, 4294901760
      %v2852 = vsub.f32 %v154, %v2851
      %2853 = vmatmul.f32.gmra.mxu0 %v2852
      %v2854 = vpop.f32.mrf.mxu0
      %v2855 = vadd.f32 %v2796, %v2854
      %2856 = vdwg.mxu0
      %v2857 = vand.u32 %v279, 4294901760
      %2858 = vmatpush.msra.mxu0 %v2857
      %v2859 = vand.u32 %v271, 4294901760
      %2860 = vmatpush.msra.mxu0 %v2859
      %v2861 = vand.u32 %v263, 4294901760
      %2862 = vmatpush.msra.mxu0 %v2861
      %v2863 = vand.u32 %v255, 4294901760
      %2864 = vmatpush.msra.mxu0 %v2863
      %v2865 = vand.u32 %v247, 4294901760
      %2866 = vmatpush.msra.mxu0 %v2865
      %v2867 = vand.u32 %v239, 4294901760
      %2868 = vmatpush.msra.mxu0 %v2867
      %v2869 = vand.u32 %v231, 4294901760
      %2870 = vmatpush.msra.mxu0 %v2869
      %v2871 = vand.u32 %v223, 4294901760
      %2872 = vmatpush.msra.mxu0 %v2871
      %v2873 = vand.u32 %v215, 4294901760
      %2874 = vmatpush.msra.mxu0 %v2873
      %v2875 = vand.u32 %v207, 4294901760
      %2876 = vmatpush.msra.mxu0 %v2875
      %v2877 = vand.u32 %v199, 4294901760
      %2878 = vmatpush.msra.mxu0 %v2877
      %v2879 = vand.u32 %v191, 4294901760
      %2880 = vmatpush.msra.mxu0 %v2879
      %v2881 = vand.u32 %v183, 4294901760
      %2882 = vmatpush.msra.mxu0 %v2881
      %v2883 = vand.u32 %v175, 4294901760
      %2884 = vmatpush.msra.mxu0 %v2883
      %v2885 = vand.u32 %v167, 4294901760
      %2886 = vmatpush.msra.mxu0 %v2885
      %v2887 = vand.u32 %v159, 4294901760
      %2888 = vmatpush.msra.mxu0 %v2887
      %v2889 = vand.u32 %v152, 4294901760
      %v2890 = vsub.f32 %v152, %v2889
      %v2891 = vand.u32 %v2890, 4294901760
      %2892 = vmatmul.f32.gmra.mxu0 %v2891
      %v2893 = vpop.f32.mrf.mxu0
      %v2894 = vadd.f32 %v2850, %v2893
      %v2895 = vand.u32 %v154, 4294901760
      %v2896 = vsub.f32 %v154, %v2895
      %v2897 = vand.u32 %v2896, 4294901760
      %2898 = vmatmul.f32.gmra.mxu0 %v2897
      %v2899 = vpop.f32.mrf.mxu0
      %v2900 = vadd.f32 %v2855, %v2899
      %2901 = vdwg.mxu0
      %v2902 = vand.u32 %v279, 4294901760
      %v2903 = vsub.f32 %v279, %v2902
      %v2904 = vand.u32 %v2903, 4294901760
      %2905 = vmatpush.msra.mxu0 %v2904
      %v2906 = vand.u32 %v271, 4294901760
      %v2907 = vsub.f32 %v271, %v2906
      %v2908 = vand.u32 %v2907, 4294901760
      %2909 = vmatpush.msra.mxu0 %v2908
      %v2910 = vand.u32 %v263, 4294901760
      %v2911 = vsub.f32 %v263, %v2910
      %v2912 = vand.u32 %v2911, 4294901760
      %2913 = vmatpush.msra.mxu0 %v2912
      %v2914 = vand.u32 %v255, 4294901760
      %v2915 = vsub.f32 %v255, %v2914
      %v2916 = vand.u32 %v2915, 4294901760
      %2917 = vmatpush.msra.mxu0 %v2916
      %v2918 = vand.u32 %v247, 4294901760
      %v2919 = vsub.f32 %v247, %v2918
      %v2920 = vand.u32 %v2919, 4294901760
      %2921 = vmatpush.msra.mxu0 %v2920
      %v2922 = vand.u32 %v239, 4294901760
      %v2923 = vsub.f32 %v239, %v2922
      %v2924 = vand.u32 %v2923, 4294901760
      %2925 = vmatpush.msra.mxu0 %v2924
      %v2926 = vand.u32 %v231, 4294901760
      %v2927 = vsub.f32 %v231, %v2926
      %v2928 = vand.u32 %v2927, 4294901760
      %2929 = vmatpush.msra.mxu0 %v2928
      %v2930 = vand.u32 %v223, 4294901760
      %v2931 = vsub.f32 %v223, %v2930
      %v2932 = vand.u32 %v2931, 4294901760
      %2933 = vmatpush.msra.mxu0 %v2932
      %v2934 = vand.u32 %v215, 4294901760
      %v2935 = vsub.f32 %v215, %v2934
      %v2936 = vand.u32 %v2935, 4294901760
      %2937 = vmatpush.msra.mxu0 %v2936
      %v2938 = vand.u32 %v207, 4294901760
      %v2939 = vsub.f32 %v207, %v2938
      %v2940 = vand.u32 %v2939, 4294901760
      %2941 = vmatpush.msra.mxu0 %v2940
      %v2942 = vand.u32 %v199, 4294901760
      %v2943 = vsub.f32 %v199, %v2942
      %v2944 = vand.u32 %v2943, 4294901760
      %2945 = vmatpush.msra.mxu0 %v2944
      %v2946 = vand.u32 %v191, 4294901760
      %v2947 = vsub.f32 %v191, %v2946
      %v2948 = vand.u32 %v2947, 4294901760
      %2949 = vmatpush.msra.mxu0 %v2948
      %v2950 = vand.u32 %v183, 4294901760
      %v2951 = vsub.f32 %v183, %v2950
      %v2952 = vand.u32 %v2951, 4294901760
      %2953 = vmatpush.msra.mxu0 %v2952
      %v2954 = vand.u32 %v175, 4294901760
      %v2955 = vsub.f32 %v175, %v2954
      %v2956 = vand.u32 %v2955, 4294901760
      %2957 = vmatpush.msra.mxu0 %v2956
      %v2958 = vand.u32 %v167, 4294901760
      %v2959 = vsub.f32 %v167, %v2958
      %v2960 = vand.u32 %v2959, 4294901760
      %2961 = vmatpush.msra.mxu0 %v2960
      %v2962 = vand.u32 %v159, 4294901760
      %v2963 = vsub.f32 %v159, %v2962
      %v2964 = vand.u32 %v2963, 4294901760
      %2965 = vmatpush.msra.mxu0 %v2964
      %v2966 = vand.u32 %v152, 4294901760
      %2967 = vmatmul.f32.gmra.mxu0 %v2966
      %v2968 = vpop.f32.mrf.mxu0
      %v2969 = vadd.f32 %v2894, %v2968
      %v2970 = vand.u32 %v154, 4294901760
      %2971 = vmatmul.f32.gmra.mxu0 %v2970
      %v2972 = vpop.f32.mrf.mxu0
      %v2973 = vadd.f32 %v2900, %v2972
      %2974 = vdwg.mxu0
      %v2975 = vand.u32 %v279, 4294901760
      %2976 = vmatpush.msra.mxu0 %v2975
      %v2977 = vand.u32 %v271, 4294901760
      %2978 = vmatpush.msra.mxu0 %v2977
      %v2979 = vand.u32 %v263, 4294901760
      %2980 = vmatpush.msra.mxu0 %v2979
      %v2981 = vand.u32 %v255, 4294901760
      %2982 = vmatpush.msra.mxu0 %v2981
      %v2983 = vand.u32 %v247, 4294901760
      %2984 = vmatpush.msra.mxu0 %v2983
      %v2985 = vand.u32 %v239, 4294901760
      %2986 = vmatpush.msra.mxu0 %v2985
      %v2987 = vand.u32 %v231, 4294901760
      %2988 = vmatpush.msra.mxu0 %v2987
      %v2989 = vand.u32 %v223, 4294901760
      %2990 = vmatpush.msra.mxu0 %v2989
      %v2991 = vand.u32 %v215, 4294901760
      %2992 = vmatpush.msra.mxu0 %v2991
      %v2993 = vand.u32 %v207, 4294901760
      %2994 = vmatpush.msra.mxu0 %v2993
      %v2995 = vand.u32 %v199, 4294901760
      %2996 = vmatpush.msra.mxu0 %v2995
      %v2997 = vand.u32 %v191, 4294901760
      %2998 = vmatpush.msra.mxu0 %v2997
      %v2999 = vand.u32 %v183, 4294901760
      %3000 = vmatpush.msra.mxu0 %v2999
      %v3001 = vand.u32 %v175, 4294901760
      %3002 = vmatpush.msra.mxu0 %v3001
      %v3003 = vand.u32 %v167, 4294901760
      %3004 = vmatpush.msra.mxu0 %v3003
      %v3005 = vand.u32 %v159, 4294901760
      %3006 = vmatpush.msra.mxu0 %v3005
      %v3007 = vand.u32 %v152, 4294901760
      %3008 = vmatmul.f32.gmra.mxu0 %v3007
      %v3009 = vpop.f32.mrf.mxu0
      %v3010 = vadd.f32 %v2969, %v3009
      %v3011 = vand.u32 %v154, 4294901760
      %3012 = vmatmul.f32.gmra.mxu0 %v3011
      %v3013 = vpop.f32.mrf.mxu0
      %v3014 = vadd.f32 %v2973, %v3013
      %3015 = vdwg.mxu0
      %v3016 = vand.u32 %v407, 4294901760
      %3017 = vmatpush.msra.mxu0 %v3016
      %v3018 = vand.u32 %v399, 4294901760
      %3019 = vmatpush.msra.mxu0 %v3018
      %v3020 = vand.u32 %v391, 4294901760
      %3021 = vmatpush.msra.mxu0 %v3020
      %v3022 = vand.u32 %v383, 4294901760
      %3023 = vmatpush.msra.mxu0 %v3022
      %v3024 = vand.u32 %v375, 4294901760
      %3025 = vmatpush.msra.mxu0 %v3024
      %v3026 = vand.u32 %v367, 4294901760
      %3027 = vmatpush.msra.mxu0 %v3026
      %v3028 = vand.u32 %v359, 4294901760
      %3029 = vmatpush.msra.mxu0 %v3028
      %v3030 = vand.u32 %v351, 4294901760
      %3031 = vmatpush.msra.mxu0 %v3030
      %v3032 = vand.u32 %v343, 4294901760
      %3033 = vmatpush.msra.mxu0 %v3032
      %v3034 = vand.u32 %v335, 4294901760
      %3035 = vmatpush.msra.mxu0 %v3034
      %v3036 = vand.u32 %v327, 4294901760
      %3037 = vmatpush.msra.mxu0 %v3036
      %v3038 = vand.u32 %v319, 4294901760
      %3039 = vmatpush.msra.mxu0 %v3038
      %v3040 = vand.u32 %v311, 4294901760
      %3041 = vmatpush.msra.mxu0 %v3040
      %v3042 = vand.u32 %v303, 4294901760
      %3043 = vmatpush.msra.mxu0 %v3042
      %v3044 = vand.u32 %v295, 4294901760
      %3045 = vmatpush.msra.mxu0 %v3044
      %v3046 = vand.u32 %v287, 4294901760
      %3047 = vmatpush.msra.mxu0 %v3046
      %v3048 = vand.u32 %v153, 4294901760
      %v3049 = vsub.f32 %v153, %v3048
      %v3050 = vand.u32 %v3049, 4294901760
      %v3051 = vsub.f32 %v3049, %v3050
      %v3052 = vand.u32 %v3051, 4294901760
      %3053 = vmatmul.f32.gmra.mxu0 %v3052
      %v3054 = vpop.f32.mrf.mxu0
      %v3055 = vadd.f32 %v3010, %v3054
      %v3056 = vand.u32 %v155, 4294901760
      %v3057 = vsub.f32 %v155, %v3056
      %v3058 = vand.u32 %v3057, 4294901760
      %v3059 = vsub.f32 %v3057, %v3058
      %v3060 = vand.u32 %v3059, 4294901760
      %3061 = vmatmul.f32.gmra.mxu0 %v3060
      %v3062 = vpop.f32.mrf.mxu0
      %v3063 = vadd.f32 %v3014, %v3062
      %3064 = vdwg.mxu0
      %v3065 = vand.u32 %v407, 4294901760
      %v3066 = vsub.f32 %v407, %v3065
      %v3067 = vand.u32 %v3066, 4294901760
      %v3068 = vsub.f32 %v3066, %v3067
      %v3069 = vand.u32 %v3068, 4294901760
      %3070 = vmatpush.msra.mxu0 %v3069
      %v3071 = vand.u32 %v399, 4294901760
      %v3072 = vsub.f32 %v399, %v3071
      %v3073 = vand.u32 %v3072, 4294901760
      %v3074 = vsub.f32 %v3072, %v3073
      %v3075 = vand.u32 %v3074, 4294901760
      %3076 = vmatpush.msra.mxu0 %v3075
      %v3077 = vand.u32 %v391, 4294901760
      %v3078 = vsub.f32 %v391, %v3077
      %v3079 = vand.u32 %v3078, 4294901760
      %v3080 = vsub.f32 %v3078, %v3079
      %v3081 = vand.u32 %v3080, 4294901760
      %3082 = vmatpush.msra.mxu0 %v3081
      %v3083 = vand.u32 %v383, 4294901760
      %v3084 = vsub.f32 %v383, %v3083
      %v3085 = vand.u32 %v3084, 4294901760
      %v3086 = vsub.f32 %v3084, %v3085
      %v3087 = vand.u32 %v3086, 4294901760
      %3088 = vmatpush.msra.mxu0 %v3087
      %v3089 = vand.u32 %v375, 4294901760
      %v3090 = vsub.f32 %v375, %v3089
      %v3091 = vand.u32 %v3090, 4294901760
      %v3092 = vsub.f32 %v3090, %v3091
      %v3093 = vand.u32 %v3092, 4294901760
      %3094 = vmatpush.msra.mxu0 %v3093
      %v3095 = vand.u32 %v367, 4294901760
      %v3096 = vsub.f32 %v367, %v3095
      %v3097 = vand.u32 %v3096, 4294901760
      %v3098 = vsub.f32 %v3096, %v3097
      %v3099 = vand.u32 %v3098, 4294901760
      %3100 = vmatpush.msra.mxu0 %v3099
      %v3101 = vand.u32 %v359, 4294901760
      %v3102 = vsub.f32 %v359, %v3101
      %v3103 = vand.u32 %v3102, 4294901760
      %v3104 = vsub.f32 %v3102, %v3103
      %v3105 = vand.u32 %v3104, 4294901760
      %3106 = vmatpush.msra.mxu0 %v3105
      %v3107 = vand.u32 %v351, 4294901760
      %v3108 = vsub.f32 %v351, %v3107
      %v3109 = vand.u32 %v3108, 4294901760
      %v3110 = vsub.f32 %v3108, %v3109
      %v3111 = vand.u32 %v3110, 4294901760
      %3112 = vmatpush.msra.mxu0 %v3111
      %v3113 = vand.u32 %v343, 4294901760
      %v3114 = vsub.f32 %v343, %v3113
      %v3115 = vand.u32 %v3114, 4294901760
      %v3116 = vsub.f32 %v3114, %v3115
      %v3117 = vand.u32 %v3116, 4294901760
      %3118 = vmatpush.msra.mxu0 %v3117
      %v3119 = vand.u32 %v335, 4294901760
      %v3120 = vsub.f32 %v335, %v3119
      %v3121 = vand.u32 %v3120, 4294901760
      %v3122 = vsub.f32 %v3120, %v3121
      %v3123 = vand.u32 %v3122, 4294901760
      %3124 = vmatpush.msra.mxu0 %v3123
      %v3125 = vand.u32 %v327, 4294901760
      %v3126 = vsub.f32 %v327, %v3125
      %v3127 = vand.u32 %v3126, 4294901760
      %v3128 = vsub.f32 %v3126, %v3127
      %v3129 = vand.u32 %v3128, 4294901760
      %3130 = vmatpush.msra.mxu0 %v3129
      %v3131 = vand.u32 %v319, 4294901760
      %v3132 = vsub.f32 %v319, %v3131
      %v3133 = vand.u32 %v3132, 4294901760
      %v3134 = vsub.f32 %v3132, %v3133
      %v3135 = vand.u32 %v3134, 4294901760
      %3136 = vmatpush.msra.mxu0 %v3135
      %v3137 = vand.u32 %v311, 4294901760
      %v3138 = vsub.f32 %v311, %v3137
      %v3139 = vand.u32 %v3138, 4294901760
      %v3140 = vsub.f32 %v3138, %v3139
      %v3141 = vand.u32 %v3140, 4294901760
      %3142 = vmatpush.msra.mxu0 %v3141
      %v3143 = vand.u32 %v303, 4294901760
      %v3144 = vsub.f32 %v303, %v3143
      %v3145 = vand.u32 %v3144, 4294901760
      %v3146 = vsub.f32 %v3144, %v3145
      %v3147 = vand.u32 %v3146, 4294901760
      %3148 = vmatpush.msra.mxu0 %v3147
      %v3149 = vand.u32 %v295, 4294901760
      %v3150 = vsub.f32 %v295, %v3149
      %v3151 = vand.u32 %v3150, 4294901760
      %v3152 = vsub.f32 %v3150, %v3151
      %v3153 = vand.u32 %v3152, 4294901760
      %3154 = vmatpush.msra.mxu0 %v3153
      %v3155 = vand.u32 %v287, 4294901760
      %v3156 = vsub.f32 %v287, %v3155
      %v3157 = vand.u32 %v3156, 4294901760
      %v3158 = vsub.f32 %v3156, %v3157
      %v3159 = vand.u32 %v3158, 4294901760
      %3160 = vmatpush.msra.mxu0 %v3159
      %v3161 = vand.u32 %v153, 4294901760
      %3162 = vmatmul.f32.gmra.mxu0 %v3161
      %v3163 = vpop.f32.mrf.mxu0
      %v3164 = vadd.f32 %v3055, %v3163
      %v3165 = vand.u32 %v155, 4294901760
      %3166 = vmatmul.f32.gmra.mxu0 %v3165
      %v3167 = vpop.f32.mrf.mxu0
      %v3168 = vadd.f32 %v3063, %v3167
      %3169 = vdwg.mxu0
      %v3170 = vand.u32 %v407, 4294901760
      %v3171 = vsub.f32 %v407, %v3170
      %3172 = vmatpush.msra.mxu0 %v3171
      %v3173 = vand.u32 %v399, 4294901760
      %v3174 = vsub.f32 %v399, %v3173
      %3175 = vmatpush.msra.mxu0 %v3174
      %v3176 = vand.u32 %v391, 4294901760
      %v3177 = vsub.f32 %v391, %v3176
      %3178 = vmatpush.msra.mxu0 %v3177
      %v3179 = vand.u32 %v383, 4294901760
      %v3180 = vsub.f32 %v383, %v3179
      %3181 = vmatpush.msra.mxu0 %v3180
      %v3182 = vand.u32 %v375, 4294901760
      %v3183 = vsub.f32 %v375, %v3182
      %3184 = vmatpush.msra.mxu0 %v3183
      %v3185 = vand.u32 %v367, 4294901760
      %v3186 = vsub.f32 %v367, %v3185
      %3187 = vmatpush.msra.mxu0 %v3186
      %v3188 = vand.u32 %v359, 4294901760
      %v3189 = vsub.f32 %v359, %v3188
      %3190 = vmatpush.msra.mxu0 %v3189
      %v3191 = vand.u32 %v351, 4294901760
      %v3192 = vsub.f32 %v351, %v3191
      %3193 = vmatpush.msra.mxu0 %v3192
      %v3194 = vand.u32 %v343, 4294901760
      %v3195 = vsub.f32 %v343, %v3194
      %3196 = vmatpush.msra.mxu0 %v3195
      %v3197 = vand.u32 %v335, 4294901760
      %v3198 = vsub.f32 %v335, %v3197
      %3199 = vmatpush.msra.mxu0 %v3198
      %v3200 = vand.u32 %v327, 4294901760
      %v3201 = vsub.f32 %v327, %v3200
      %3202 = vmatpush.msra.mxu0 %v3201
      %v3203 = vand.u32 %v319, 4294901760
      %v3204 = vsub.f32 %v319, %v3203
      %3205 = vmatpush.msra.mxu0 %v3204
      %v3206 = vand.u32 %v311, 4294901760
      %v3207 = vsub.f32 %v311, %v3206
      %3208 = vmatpush.msra.mxu0 %v3207
      %v3209 = vand.u32 %v303, 4294901760
      %v3210 = vsub.f32 %v303, %v3209
      %3211 = vmatpush.msra.mxu0 %v3210
      %v3212 = vand.u32 %v295, 4294901760
      %v3213 = vsub.f32 %v295, %v3212
      %3214 = vmatpush.msra.mxu0 %v3213
      %v3215 = vand.u32 %v287, 4294901760
      %v3216 = vsub.f32 %v287, %v3215
      %3217 = vmatpush.msra.mxu0 %v3216
      %v3218 = vand.u32 %v153, 4294901760
      %v3219 = vsub.f32 %v153, %v3218
      %3220 = vmatmul.f32.gmra.mxu0 %v3219
      %v3221 = vpop.f32.mrf.mxu0
      %v3222 = vadd.f32 %v3164, %v3221
      %v3223 = vand.u32 %v155, 4294901760
      %v3224 = vsub.f32 %v155, %v3223
      %3225 = vmatmul.f32.gmra.mxu0 %v3224
      %v3226 = vpop.f32.mrf.mxu0
      %v3227 = vadd.f32 %v3168, %v3226
      %3228 = vdwg.mxu0
      %v3229 = vand.u32 %v407, 4294901760
      %3230 = vmatpush.msra.mxu0 %v3229
      %v3231 = vand.u32 %v399, 4294901760
      %3232 = vmatpush.msra.mxu0 %v3231
      %v3233 = vand.u32 %v391, 4294901760
      %3234 = vmatpush.msra.mxu0 %v3233
      %v3235 = vand.u32 %v383, 4294901760
      %3236 = vmatpush.msra.mxu0 %v3235
      %v3237 = vand.u32 %v375, 4294901760
      %3238 = vmatpush.msra.mxu0 %v3237
      %v3239 = vand.u32 %v367, 4294901760
      %3240 = vmatpush.msra.mxu0 %v3239
      %v3241 = vand.u32 %v359, 4294901760
      %3242 = vmatpush.msra.mxu0 %v3241
      %v3243 = vand.u32 %v351, 4294901760
      %3244 = vmatpush.msra.mxu0 %v3243
      %v3245 = vand.u32 %v343, 4294901760
      %3246 = vmatpush.msra.mxu0 %v3245
      %v3247 = vand.u32 %v335, 4294901760
      %3248 = vmatpush.msra.mxu0 %v3247
      %v3249 = vand.u32 %v327, 4294901760
      %3250 = vmatpush.msra.mxu0 %v3249
      %v3251 = vand.u32 %v319, 4294901760
      %3252 = vmatpush.msra.mxu0 %v3251
      %v3253 = vand.u32 %v311, 4294901760
      %3254 = vmatpush.msra.mxu0 %v3253
      %v3255 = vand.u32 %v303, 4294901760
      %3256 = vmatpush.msra.mxu0 %v3255
      %v3257 = vand.u32 %v295, 4294901760
      %3258 = vmatpush.msra.mxu0 %v3257
      %v3259 = vand.u32 %v287, 4294901760
      %3260 = vmatpush.msra.mxu0 %v3259
      %v3261 = vand.u32 %v153, 4294901760
      %v3262 = vsub.f32 %v153, %v3261
      %v3263 = vand.u32 %v3262, 4294901760
      %3264 = vmatmul.f32.gmra.mxu0 %v3263
      %v3265 = vpop.f32.mrf.mxu0
      %v3266 = vadd.f32 %v3222, %v3265
      %v3267 = vand.u32 %v155, 4294901760
      %v3268 = vsub.f32 %v155, %v3267
      %v3269 = vand.u32 %v3268, 4294901760
      %3270 = vmatmul.f32.gmra.mxu0 %v3269
      %v3271 = vpop.f32.mrf.mxu0
      %v3272 = vadd.f32 %v3227, %v3271
      %3273 = vdwg.mxu0
      %v3274 = vand.u32 %v407, 4294901760
      %v3275 = vsub.f32 %v407, %v3274
      %v3276 = vand.u32 %v3275, 4294901760
      %3277 = vmatpush.msra.mxu0 %v3276
      %v3278 = vand.u32 %v399, 4294901760
      %v3279 = vsub.f32 %v399, %v3278
      %v3280 = vand.u32 %v3279, 4294901760
      %3281 = vmatpush.msra.mxu0 %v3280
      %v3282 = vand.u32 %v391, 4294901760
      %v3283 = vsub.f32 %v391, %v3282
      %v3284 = vand.u32 %v3283, 4294901760
      %3285 = vmatpush.msra.mxu0 %v3284
      %v3286 = vand.u32 %v383, 4294901760
      %v3287 = vsub.f32 %v383, %v3286
      %v3288 = vand.u32 %v3287, 4294901760
      %3289 = vmatpush.msra.mxu0 %v3288
      %v3290 = vand.u32 %v375, 4294901760
      %v3291 = vsub.f32 %v375, %v3290
      %v3292 = vand.u32 %v3291, 4294901760
      %3293 = vmatpush.msra.mxu0 %v3292
      %v3294 = vand.u32 %v367, 4294901760
      %v3295 = vsub.f32 %v367, %v3294
      %v3296 = vand.u32 %v3295, 4294901760
      %3297 = vmatpush.msra.mxu0 %v3296
      %v3298 = vand.u32 %v359, 4294901760
      %v3299 = vsub.f32 %v359, %v3298
      %v3300 = vand.u32 %v3299, 4294901760
      %3301 = vmatpush.msra.mxu0 %v3300
      %v3302 = vand.u32 %v351, 4294901760
      %v3303 = vsub.f32 %v351, %v3302
      %v3304 = vand.u32 %v3303, 4294901760
      %3305 = vmatpush.msra.mxu0 %v3304
      %v3306 = vand.u32 %v343, 4294901760
      %v3307 = vsub.f32 %v343, %v3306
      %v3308 = vand.u32 %v3307, 4294901760
      %3309 = vmatpush.msra.mxu0 %v3308
      %v3310 = vand.u32 %v335, 4294901760
      %v3311 = vsub.f32 %v335, %v3310
      %v3312 = vand.u32 %v3311, 4294901760
      %3313 = vmatpush.msra.mxu0 %v3312
      %v3314 = vand.u32 %v327, 4294901760
      %v3315 = vsub.f32 %v327, %v3314
      %v3316 = vand.u32 %v3315, 4294901760
      %3317 = vmatpush.msra.mxu0 %v3316
      %v3318 = vand.u32 %v319, 4294901760
      %v3319 = vsub.f32 %v319, %v3318
      %v3320 = vand.u32 %v3319, 4294901760
      %3321 = vmatpush.msra.mxu0 %v3320
      %v3322 = vand.u32 %v311, 4294901760
      %v3323 = vsub.f32 %v311, %v3322
      %v3324 = vand.u32 %v3323, 4294901760
      %3325 = vmatpush.msra.mxu0 %v3324
      %v3326 = vand.u32 %v303, 4294901760
      %v3327 = vsub.f32 %v303, %v3326
      %v3328 = vand.u32 %v3327, 4294901760
      %3329 = vmatpush.msra.mxu0 %v3328
      %v3330 = vand.u32 %v295, 4294901760
      %v3331 = vsub.f32 %v295, %v3330
      %v3332 = vand.u32 %v3331, 4294901760
      %3333 = vmatpush.msra.mxu0 %v3332
      %v3334 = vand.u32 %v287, 4294901760
      %v3335 = vsub.f32 %v287, %v3334
      %v3336 = vand.u32 %v3335, 4294901760
      %3337 = vmatpush.msra.mxu0 %v3336
      %v3338 = vand.u32 %v153, 4294901760
      %3339 = vmatmul.f32.gmra.mxu0 %v3338
      %v3340 = vpop.f32.mrf.mxu0
      %v3341 = vadd.f32 %v3266, %v3340
      %v3342 = vand.u32 %v155, 4294901760
      %3343 = vmatmul.f32.gmra.mxu0 %v3342
      %v3344 = vpop.f32.mrf.mxu0
      %v3345 = vadd.f32 %v3272, %v3344
      %3346 = vdwg.mxu0
      %v3347 = vand.u32 %v407, 4294901760
      %3348 = vmatpush.msra.mxu0 %v3347
      %v3349 = vand.u32 %v399, 4294901760
      %3350 = vmatpush.msra.mxu0 %v3349
      %v3351 = vand.u32 %v391, 4294901760
      %3352 = vmatpush.msra.mxu0 %v3351
      %v3353 = vand.u32 %v383, 4294901760
      %3354 = vmatpush.msra.mxu0 %v3353
      %v3355 = vand.u32 %v375, 4294901760
      %3356 = vmatpush.msra.mxu0 %v3355
      %v3357 = vand.u32 %v367, 4294901760
      %3358 = vmatpush.msra.mxu0 %v3357
      %v3359 = vand.u32 %v359, 4294901760
      %3360 = vmatpush.msra.mxu0 %v3359
      %v3361 = vand.u32 %v351, 4294901760
      %3362 = vmatpush.msra.mxu0 %v3361
      %v3363 = vand.u32 %v343, 4294901760
      %3364 = vmatpush.msra.mxu0 %v3363
      %v3365 = vand.u32 %v335, 4294901760
      %3366 = vmatpush.msra.mxu0 %v3365
      %v3367 = vand.u32 %v327, 4294901760
      %3368 = vmatpush.msra.mxu0 %v3367
      %v3369 = vand.u32 %v319, 4294901760
      %3370 = vmatpush.msra.mxu0 %v3369
      %v3371 = vand.u32 %v311, 4294901760
      %3372 = vmatpush.msra.mxu0 %v3371
      %v3373 = vand.u32 %v303, 4294901760
      %3374 = vmatpush.msra.mxu0 %v3373
      %v3375 = vand.u32 %v295, 4294901760
      %3376 = vmatpush.msra.mxu0 %v3375
      %v3377 = vand.u32 %v287, 4294901760
      %3378 = vmatpush.msra.mxu0 %v3377
      %v3379 = vand.u32 %v153, 4294901760
      %3380 = vmatmul.f32.gmra.mxu0 %v3379
      %v3381 = vpop.f32.mrf.mxu0
      %v3382 = vadd.f32 %v3341, %v3381
      %v3383 = vand.u32 %v155, 4294901760
      %3384 = vmatmul.f32.gmra.mxu0 %v3383
      %v3385 = vpop.f32.mrf.mxu0
      %v3386 = vadd.f32 %v3345, %v3385
      %3387 = vdwg.mxu0
      %v3388 = vand.u32 %v280, 4294901760
      %3389 = vmatpush.msra.mxu0 %v3388
      %v3390 = vand.u32 %v272, 4294901760
      %3391 = vmatpush.msra.mxu0 %v3390
      %v3392 = vand.u32 %v264, 4294901760
      %3393 = vmatpush.msra.mxu0 %v3392
      %v3394 = vand.u32 %v256, 4294901760
      %3395 = vmatpush.msra.mxu0 %v3394
      %v3396 = vand.u32 %v248, 4294901760
      %3397 = vmatpush.msra.mxu0 %v3396
      %v3398 = vand.u32 %v240, 4294901760
      %3399 = vmatpush.msra.mxu0 %v3398
      %v3400 = vand.u32 %v232, 4294901760
      %3401 = vmatpush.msra.mxu0 %v3400
      %v3402 = vand.u32 %v224, 4294901760
      %3403 = vmatpush.msra.mxu0 %v3402
      %v3404 = vand.u32 %v216, 4294901760
      %3405 = vmatpush.msra.mxu0 %v3404
      %v3406 = vand.u32 %v208, 4294901760
      %3407 = vmatpush.msra.mxu0 %v3406
      %v3408 = vand.u32 %v200, 4294901760
      %3409 = vmatpush.msra.mxu0 %v3408
      %v3410 = vand.u32 %v192, 4294901760
      %3411 = vmatpush.msra.mxu0 %v3410
      %v3412 = vand.u32 %v184, 4294901760
      %3413 = vmatpush.msra.mxu0 %v3412
      %v3414 = vand.u32 %v176, 4294901760
      %3415 = vmatpush.msra.mxu0 %v3414
      %v3416 = vand.u32 %v168, 4294901760
      %3417 = vmatpush.msra.mxu0 %v3416
      %v3418 = vand.u32 %v160, 4294901760
      %3419 = vmatpush.msra.mxu0 %v3418
      %v3420 = vand.u32 %v152, 4294901760
      %v3421 = vsub.f32 %v152, %v3420
      %v3422 = vand.u32 %v3421, 4294901760
      %v3423 = vsub.f32 %v3421, %v3422
      %v3424 = vand.u32 %v3423, 4294901760
      %3425 = vmatmul.f32.gmra.mxu0 %v3424
      %v3426 = vpop.f32.mrf.mxu0
      %v3427 = vadd.f32 0.0, %v3426
      %v3428 = vand.u32 %v154, 4294901760
      %v3429 = vsub.f32 %v154, %v3428
      %v3430 = vand.u32 %v3429, 4294901760
      %v3431 = vsub.f32 %v3429, %v3430
      %v3432 = vand.u32 %v3431, 4294901760
      %3433 = vmatmul.f32.gmra.mxu0 %v3432
      %v3434 = vpop.f32.mrf.mxu0
      %v3435 = vadd.f32 0.0, %v3434
      %3436 = vdwg.mxu0
      %v3437 = vand.u32 %v280, 4294901760
      %v3438 = vsub.f32 %v280, %v3437
      %v3439 = vand.u32 %v3438, 4294901760
      %v3440 = vsub.f32 %v3438, %v3439
      %v3441 = vand.u32 %v3440, 4294901760
      %3442 = vmatpush.msra.mxu0 %v3441
      %v3443 = vand.u32 %v272, 4294901760
      %v3444 = vsub.f32 %v272, %v3443
      %v3445 = vand.u32 %v3444, 4294901760
      %v3446 = vsub.f32 %v3444, %v3445
      %v3447 = vand.u32 %v3446, 4294901760
      %3448 = vmatpush.msra.mxu0 %v3447
      %v3449 = vand.u32 %v264, 4294901760
      %v3450 = vsub.f32 %v264, %v3449
      %v3451 = vand.u32 %v3450, 4294901760
      %v3452 = vsub.f32 %v3450, %v3451
      %v3453 = vand.u32 %v3452, 4294901760
      %3454 = vmatpush.msra.mxu0 %v3453
      %v3455 = vand.u32 %v256, 4294901760
      %v3456 = vsub.f32 %v256, %v3455
      %v3457 = vand.u32 %v3456, 4294901760
      %v3458 = vsub.f32 %v3456, %v3457
      %v3459 = vand.u32 %v3458, 4294901760
      %3460 = vmatpush.msra.mxu0 %v3459
      %v3461 = vand.u32 %v248, 4294901760
      %v3462 = vsub.f32 %v248, %v3461
      %v3463 = vand.u32 %v3462, 4294901760
      %v3464 = vsub.f32 %v3462, %v3463
      %v3465 = vand.u32 %v3464, 4294901760
      %3466 = vmatpush.msra.mxu0 %v3465
      %v3467 = vand.u32 %v240, 4294901760
      %v3468 = vsub.f32 %v240, %v3467
      %v3469 = vand.u32 %v3468, 4294901760
      %v3470 = vsub.f32 %v3468, %v3469
      %v3471 = vand.u32 %v3470, 4294901760
      %3472 = vmatpush.msra.mxu0 %v3471
      %v3473 = vand.u32 %v232, 4294901760
      %v3474 = vsub.f32 %v232, %v3473
      %v3475 = vand.u32 %v3474, 4294901760
      %v3476 = vsub.f32 %v3474, %v3475
      %v3477 = vand.u32 %v3476, 4294901760
      %3478 = vmatpush.msra.mxu0 %v3477
      %v3479 = vand.u32 %v224, 4294901760
      %v3480 = vsub.f32 %v224, %v3479
      %v3481 = vand.u32 %v3480, 4294901760
      %v3482 = vsub.f32 %v3480, %v3481
      %v3483 = vand.u32 %v3482, 4294901760
      %3484 = vmatpush.msra.mxu0 %v3483
      %v3485 = vand.u32 %v216, 4294901760
      %v3486 = vsub.f32 %v216, %v3485
      %v3487 = vand.u32 %v3486, 4294901760
      %v3488 = vsub.f32 %v3486, %v3487
      %v3489 = vand.u32 %v3488, 4294901760
      %3490 = vmatpush.msra.mxu0 %v3489
      %v3491 = vand.u32 %v208, 4294901760
      %v3492 = vsub.f32 %v208, %v3491
      %v3493 = vand.u32 %v3492, 4294901760
      %v3494 = vsub.f32 %v3492, %v3493
      %v3495 = vand.u32 %v3494, 4294901760
      %3496 = vmatpush.msra.mxu0 %v3495
      %v3497 = vand.u32 %v200, 4294901760
      %v3498 = vsub.f32 %v200, %v3497
      %v3499 = vand.u32 %v3498, 4294901760
      %v3500 = vsub.f32 %v3498, %v3499
      %v3501 = vand.u32 %v3500, 4294901760
      %3502 = vmatpush.msra.mxu0 %v3501
      %v3503 = vand.u32 %v192, 4294901760
      %v3504 = vsub.f32 %v192, %v3503
      %v3505 = vand.u32 %v3504, 4294901760
      %v3506 = vsub.f32 %v3504, %v3505
      %v3507 = vand.u32 %v3506, 4294901760
      %3508 = vmatpush.msra.mxu0 %v3507
      %v3509 = vand.u32 %v184, 4294901760
      %v3510 = vsub.f32 %v184, %v3509
      %v3511 = vand.u32 %v3510, 4294901760
      %v3512 = vsub.f32 %v3510, %v3511
      %v3513 = vand.u32 %v3512, 4294901760
      %3514 = vmatpush.msra.mxu0 %v3513
      %v3515 = vand.u32 %v176, 4294901760
      %v3516 = vsub.f32 %v176, %v3515
      %v3517 = vand.u32 %v3516, 4294901760
      %v3518 = vsub.f32 %v3516, %v3517
      %v3519 = vand.u32 %v3518, 4294901760
      %3520 = vmatpush.msra.mxu0 %v3519
      %v3521 = vand.u32 %v168, 4294901760
      %v3522 = vsub.f32 %v168, %v3521
      %v3523 = vand.u32 %v3522, 4294901760
      %v3524 = vsub.f32 %v3522, %v3523
      %v3525 = vand.u32 %v3524, 4294901760
      %3526 = vmatpush.msra.mxu0 %v3525
      %v3527 = vand.u32 %v160, 4294901760
      %v3528 = vsub.f32 %v160, %v3527
      %v3529 = vand.u32 %v3528, 4294901760
      %v3530 = vsub.f32 %v3528, %v3529
      %v3531 = vand.u32 %v3530, 4294901760
      %3532 = vmatpush.msra.mxu0 %v3531
      %v3533 = vand.u32 %v152, 4294901760
      %3534 = vmatmul.f32.gmra.mxu0 %v3533
      %v3535 = vpop.f32.mrf.mxu0
      %v3536 = vadd.f32 %v3427, %v3535
      %v3537 = vand.u32 %v154, 4294901760
      %3538 = vmatmul.f32.gmra.mxu0 %v3537
      %v3539 = vpop.f32.mrf.mxu0
      %v3540 = vadd.f32 %v3435, %v3539
      %3541 = vdwg.mxu0
      %v3542 = vand.u32 %v280, 4294901760
      %v3543 = vsub.f32 %v280, %v3542
      %3544 = vmatpush.msra.mxu0 %v3543
      %v3545 = vand.u32 %v272, 4294901760
      %v3546 = vsub.f32 %v272, %v3545
      %3547 = vmatpush.msra.mxu0 %v3546
      %v3548 = vand.u32 %v264, 4294901760
      %v3549 = vsub.f32 %v264, %v3548
      %3550 = vmatpush.msra.mxu0 %v3549
      %v3551 = vand.u32 %v256, 4294901760
      %v3552 = vsub.f32 %v256, %v3551
      %3553 = vmatpush.msra.mxu0 %v3552
      %v3554 = vand.u32 %v248, 4294901760
      %v3555 = vsub.f32 %v248, %v3554
      %3556 = vmatpush.msra.mxu0 %v3555
      %v3557 = vand.u32 %v240, 4294901760
      %v3558 = vsub.f32 %v240, %v3557
      %3559 = vmatpush.msra.mxu0 %v3558
      %v3560 = vand.u32 %v232, 4294901760
      %v3561 = vsub.f32 %v232, %v3560
      %3562 = vmatpush.msra.mxu0 %v3561
      %v3563 = vand.u32 %v224, 4294901760
      %v3564 = vsub.f32 %v224, %v3563
      %3565 = vmatpush.msra.mxu0 %v3564
      %v3566 = vand.u32 %v216, 4294901760
      %v3567 = vsub.f32 %v216, %v3566
      %3568 = vmatpush.msra.mxu0 %v3567
      %v3569 = vand.u32 %v208, 4294901760
      %v3570 = vsub.f32 %v208, %v3569
      %3571 = vmatpush.msra.mxu0 %v3570
      %v3572 = vand.u32 %v200, 4294901760
      %v3573 = vsub.f32 %v200, %v3572
      %3574 = vmatpush.msra.mxu0 %v3573
      %v3575 = vand.u32 %v192, 4294901760
      %v3576 = vsub.f32 %v192, %v3575
      %3577 = vmatpush.msra.mxu0 %v3576
      %v3578 = vand.u32 %v184, 4294901760
      %v3579 = vsub.f32 %v184, %v3578
      %3580 = vmatpush.msra.mxu0 %v3579
      %v3581 = vand.u32 %v176, 4294901760
      %v3582 = vsub.f32 %v176, %v3581
      %3583 = vmatpush.msra.mxu0 %v3582
      %v3584 = vand.u32 %v168, 4294901760
      %v3585 = vsub.f32 %v168, %v3584
      %3586 = vmatpush.msra.mxu0 %v3585
      %v3587 = vand.u32 %v160, 4294901760
      %v3588 = vsub.f32 %v160, %v3587
      %3589 = vmatpush.msra.mxu0 %v3588
      %v3590 = vand.u32 %v152, 4294901760
      %v3591 = vsub.f32 %v152, %v3590
      %3592 = vmatmul.f32.gmra.mxu0 %v3591
      %v3593 = vpop.f32.mrf.mxu0
      %v3594 = vadd.f32 %v3536, %v3593
      %v3595 = vand.u32 %v154, 4294901760
      %v3596 = vsub.f32 %v154, %v3595
      %3597 = vmatmul.f32.gmra.mxu0 %v3596
      %v3598 = vpop.f32.mrf.mxu0
      %v3599 = vadd.f32 %v3540, %v3598
      %3600 = vdwg.mxu0
      %v3601 = vand.u32 %v280, 4294901760
      %3602 = vmatpush.msra.mxu0 %v3601
      %v3603 = vand.u32 %v272, 4294901760
      %3604 = vmatpush.msra.mxu0 %v3603
      %v3605 = vand.u32 %v264, 4294901760
      %3606 = vmatpush.msra.mxu0 %v3605
      %v3607 = vand.u32 %v256, 4294901760
      %3608 = vmatpush.msra.mxu0 %v3607
      %v3609 = vand.u32 %v248, 4294901760
      %3610 = vmatpush.msra.mxu0 %v3609
      %v3611 = vand.u32 %v240, 4294901760
      %3612 = vmatpush.msra.mxu0 %v3611
      %v3613 = vand.u32 %v232, 4294901760
      %3614 = vmatpush.msra.mxu0 %v3613
      %v3615 = vand.u32 %v224, 4294901760
      %3616 = vmatpush.msra.mxu0 %v3615
      %v3617 = vand.u32 %v216, 4294901760
      %3618 = vmatpush.msra.mxu0 %v3617
      %v3619 = vand.u32 %v208, 4294901760
      %3620 = vmatpush.msra.mxu0 %v3619
      %v3621 = vand.u32 %v200, 4294901760
      %3622 = vmatpush.msra.mxu0 %v3621
      %v3623 = vand.u32 %v192, 4294901760
      %3624 = vmatpush.msra.mxu0 %v3623
      %v3625 = vand.u32 %v184, 4294901760
      %3626 = vmatpush.msra.mxu0 %v3625
      %v3627 = vand.u32 %v176, 4294901760
      %3628 = vmatpush.msra.mxu0 %v3627
      %v3629 = vand.u32 %v168, 4294901760
      %3630 = vmatpush.msra.mxu0 %v3629
      %v3631 = vand.u32 %v160, 4294901760
      %3632 = vmatpush.msra.mxu0 %v3631
      %v3633 = vand.u32 %v152, 4294901760
      %v3634 = vsub.f32 %v152, %v3633
      %v3635 = vand.u32 %v3634, 4294901760
      %3636 = vmatmul.f32.gmra.mxu0 %v3635
      %v3637 = vpop.f32.mrf.mxu0
      %v3638 = vadd.f32 %v3594, %v3637
      %v3639 = vand.u32 %v154, 4294901760
      %v3640 = vsub.f32 %v154, %v3639
      %v3641 = vand.u32 %v3640, 4294901760
      %3642 = vmatmul.f32.gmra.mxu0 %v3641
      %v3643 = vpop.f32.mrf.mxu0
      %v3644 = vadd.f32 %v3599, %v3643
      %3645 = vdwg.mxu0
      %v3646 = vand.u32 %v280, 4294901760
      %v3647 = vsub.f32 %v280, %v3646
      %v3648 = vand.u32 %v3647, 4294901760
      %3649 = vmatpush.msra.mxu0 %v3648
      %v3650 = vand.u32 %v272, 4294901760
      %v3651 = vsub.f32 %v272, %v3650
      %v3652 = vand.u32 %v3651, 4294901760
      %3653 = vmatpush.msra.mxu0 %v3652
      %v3654 = vand.u32 %v264, 4294901760
      %v3655 = vsub.f32 %v264, %v3654
      %v3656 = vand.u32 %v3655, 4294901760
      %3657 = vmatpush.msra.mxu0 %v3656
      %v3658 = vand.u32 %v256, 4294901760
      %v3659 = vsub.f32 %v256, %v3658
      %v3660 = vand.u32 %v3659, 4294901760
      %3661 = vmatpush.msra.mxu0 %v3660
      %v3662 = vand.u32 %v248, 4294901760
      %v3663 = vsub.f32 %v248, %v3662
      %v3664 = vand.u32 %v3663, 4294901760
      %3665 = vmatpush.msra.mxu0 %v3664
      %v3666 = vand.u32 %v240, 4294901760
      %v3667 = vsub.f32 %v240, %v3666
      %v3668 = vand.u32 %v3667, 4294901760
      %3669 = vmatpush.msra.mxu0 %v3668
      %v3670 = vand.u32 %v232, 4294901760
      %v3671 = vsub.f32 %v232, %v3670
      %v3672 = vand.u32 %v3671, 4294901760
      %3673 = vmatpush.msra.mxu0 %v3672
      %v3674 = vand.u32 %v224, 4294901760
      %v3675 = vsub.f32 %v224, %v3674
      %v3676 = vand.u32 %v3675, 4294901760
      %3677 = vmatpush.msra.mxu0 %v3676
      %v3678 = vand.u32 %v216, 4294901760
      %v3679 = vsub.f32 %v216, %v3678
      %v3680 = vand.u32 %v3679, 4294901760
      %3681 = vmatpush.msra.mxu0 %v3680
      %v3682 = vand.u32 %v208, 4294901760
      %v3683 = vsub.f32 %v208, %v3682
      %v3684 = vand.u32 %v3683, 4294901760
      %3685 = vmatpush.msra.mxu0 %v3684
      %v3686 = vand.u32 %v200, 4294901760
      %v3687 = vsub.f32 %v200, %v3686
      %v3688 = vand.u32 %v3687, 4294901760
      %3689 = vmatpush.msra.mxu0 %v3688
      %v3690 = vand.u32 %v192, 4294901760
      %v3691 = vsub.f32 %v192, %v3690
      %v3692 = vand.u32 %v3691, 4294901760
      %3693 = vmatpush.msra.mxu0 %v3692
      %v3694 = vand.u32 %v184, 4294901760
      %v3695 = vsub.f32 %v184, %v3694
      %v3696 = vand.u32 %v3695, 4294901760
      %3697 = vmatpush.msra.mxu0 %v3696
      %v3698 = vand.u32 %v176, 4294901760
      %v3699 = vsub.f32 %v176, %v3698
      %v3700 = vand.u32 %v3699, 4294901760
      %3701 = vmatpush.msra.mxu0 %v3700
      %v3702 = vand.u32 %v168, 4294901760
      %v3703 = vsub.f32 %v168, %v3702
      %v3704 = vand.u32 %v3703, 4294901760
      %3705 = vmatpush.msra.mxu0 %v3704
      %v3706 = vand.u32 %v160, 4294901760
      %v3707 = vsub.f32 %v160, %v3706
      %v3708 = vand.u32 %v3707, 4294901760
      %3709 = vmatpush.msra.mxu0 %v3708
      %v3710 = vand.u32 %v152, 4294901760
      %3711 = vmatmul.f32.gmra.mxu0 %v3710
      %v3712 = vpop.f32.mrf.mxu0
      %v3713 = vadd.f32 %v3638, %v3712
      %v3714 = vand.u32 %v154, 4294901760
      %3715 = vmatmul.f32.gmra.mxu0 %v3714
      %v3716 = vpop.f32.mrf.mxu0
      %v3717 = vadd.f32 %v3644, %v3716
      %3718 = vdwg.mxu0
      %v3719 = vand.u32 %v280, 4294901760
      %3720 = vmatpush.msra.mxu0 %v3719
      %v3721 = vand.u32 %v272, 4294901760
      %3722 = vmatpush.msra.mxu0 %v3721
      %v3723 = vand.u32 %v264, 4294901760
      %3724 = vmatpush.msra.mxu0 %v3723
      %v3725 = vand.u32 %v256, 4294901760
      %3726 = vmatpush.msra.mxu0 %v3725
      %v3727 = vand.u32 %v248, 4294901760
      %3728 = vmatpush.msra.mxu0 %v3727
      %v3729 = vand.u32 %v240, 4294901760
      %3730 = vmatpush.msra.mxu0 %v3729
      %v3731 = vand.u32 %v232, 4294901760
      %3732 = vmatpush.msra.mxu0 %v3731
      %v3733 = vand.u32 %v224, 4294901760
      %3734 = vmatpush.msra.mxu0 %v3733
      %v3735 = vand.u32 %v216, 4294901760
      %3736 = vmatpush.msra.mxu0 %v3735
      %v3737 = vand.u32 %v208, 4294901760
      %3738 = vmatpush.msra.mxu0 %v3737
      %v3739 = vand.u32 %v200, 4294901760
      %3740 = vmatpush.msra.mxu0 %v3739
      %v3741 = vand.u32 %v192, 4294901760
      %3742 = vmatpush.msra.mxu0 %v3741
      %v3743 = vand.u32 %v184, 4294901760
      %3744 = vmatpush.msra.mxu0 %v3743
      %v3745 = vand.u32 %v176, 4294901760
      %3746 = vmatpush.msra.mxu0 %v3745
      %v3747 = vand.u32 %v168, 4294901760
      %3748 = vmatpush.msra.mxu0 %v3747
      %v3749 = vand.u32 %v160, 4294901760
      %3750 = vmatpush.msra.mxu0 %v3749
      %v3751 = vand.u32 %v152, 4294901760
      %3752 = vmatmul.f32.gmra.mxu0 %v3751
      %v3753 = vpop.f32.mrf.mxu0
      %v3754 = vadd.f32 %v3713, %v3753
      %v3755 = vand.u32 %v154, 4294901760
      %3756 = vmatmul.f32.gmra.mxu0 %v3755
      %v3757 = vpop.f32.mrf.mxu0
      %v3758 = vadd.f32 %v3717, %v3757
      %3759 = vdwg.mxu0
      %v3760 = vand.u32 %v408, 4294901760
      %3761 = vmatpush.msra.mxu0 %v3760
      %v3762 = vand.u32 %v400, 4294901760
      %3763 = vmatpush.msra.mxu0 %v3762
      %v3764 = vand.u32 %v392, 4294901760
      %3765 = vmatpush.msra.mxu0 %v3764
      %v3766 = vand.u32 %v384, 4294901760
      %3767 = vmatpush.msra.mxu0 %v3766
      %v3768 = vand.u32 %v376, 4294901760
      %3769 = vmatpush.msra.mxu0 %v3768
      %v3770 = vand.u32 %v368, 4294901760
      %3771 = vmatpush.msra.mxu0 %v3770
      %v3772 = vand.u32 %v360, 4294901760
      %3773 = vmatpush.msra.mxu0 %v3772
      %v3774 = vand.u32 %v352, 4294901760
      %3775 = vmatpush.msra.mxu0 %v3774
      %v3776 = vand.u32 %v344, 4294901760
      %3777 = vmatpush.msra.mxu0 %v3776
      %v3778 = vand.u32 %v336, 4294901760
      %3779 = vmatpush.msra.mxu0 %v3778
      %v3780 = vand.u32 %v328, 4294901760
      %3781 = vmatpush.msra.mxu0 %v3780
      %v3782 = vand.u32 %v320, 4294901760
      %3783 = vmatpush.msra.mxu0 %v3782
      %v3784 = vand.u32 %v312, 4294901760
      %3785 = vmatpush.msra.mxu0 %v3784
      %v3786 = vand.u32 %v304, 4294901760
      %3787 = vmatpush.msra.mxu0 %v3786
      %v3788 = vand.u32 %v296, 4294901760
      %3789 = vmatpush.msra.mxu0 %v3788
      %v3790 = vand.u32 %v288, 4294901760
      %3791 = vmatpush.msra.mxu0 %v3790
      %v3792 = vand.u32 %v153, 4294901760
      %v3793 = vsub.f32 %v153, %v3792
      %v3794 = vand.u32 %v3793, 4294901760
      %v3795 = vsub.f32 %v3793, %v3794
      %v3796 = vand.u32 %v3795, 4294901760
      %3797 = vmatmul.f32.gmra.mxu0 %v3796
      %v3798 = vpop.f32.mrf.mxu0
      %v3799 = vadd.f32 %v3754, %v3798
      %v3800 = vand.u32 %v155, 4294901760
      %v3801 = vsub.f32 %v155, %v3800
      %v3802 = vand.u32 %v3801, 4294901760
      %v3803 = vsub.f32 %v3801, %v3802
      %v3804 = vand.u32 %v3803, 4294901760
      %3805 = vmatmul.f32.gmra.mxu0 %v3804
      %v3806 = vpop.f32.mrf.mxu0
      %v3807 = vadd.f32 %v3758, %v3806
      %3808 = vdwg.mxu0
      %v3809 = vand.u32 %v408, 4294901760
      %v3810 = vsub.f32 %v408, %v3809
      %v3811 = vand.u32 %v3810, 4294901760
      %v3812 = vsub.f32 %v3810, %v3811
      %v3813 = vand.u32 %v3812, 4294901760
      %3814 = vmatpush.msra.mxu0 %v3813
      %v3815 = vand.u32 %v400, 4294901760
      %v3816 = vsub.f32 %v400, %v3815
      %v3817 = vand.u32 %v3816, 4294901760
      %v3818 = vsub.f32 %v3816, %v3817
      %v3819 = vand.u32 %v3818, 4294901760
      %3820 = vmatpush.msra.mxu0 %v3819
      %v3821 = vand.u32 %v392, 4294901760
      %v3822 = vsub.f32 %v392, %v3821
      %v3823 = vand.u32 %v3822, 4294901760
      %v3824 = vsub.f32 %v3822, %v3823
      %v3825 = vand.u32 %v3824, 4294901760
      %3826 = vmatpush.msra.mxu0 %v3825
      %v3827 = vand.u32 %v384, 4294901760
      %v3828 = vsub.f32 %v384, %v3827
      %v3829 = vand.u32 %v3828, 4294901760
      %v3830 = vsub.f32 %v3828, %v3829
      %v3831 = vand.u32 %v3830, 4294901760
      %3832 = vmatpush.msra.mxu0 %v3831
      %v3833 = vand.u32 %v376, 4294901760
      %v3834 = vsub.f32 %v376, %v3833
      %v3835 = vand.u32 %v3834, 4294901760
      %v3836 = vsub.f32 %v3834, %v3835
      %v3837 = vand.u32 %v3836, 4294901760
      %3838 = vmatpush.msra.mxu0 %v3837
      %v3839 = vand.u32 %v368, 4294901760
      %v3840 = vsub.f32 %v368, %v3839
      %v3841 = vand.u32 %v3840, 4294901760
      %v3842 = vsub.f32 %v3840, %v3841
      %v3843 = vand.u32 %v3842, 4294901760
      %3844 = vmatpush.msra.mxu0 %v3843
      %v3845 = vand.u32 %v360, 4294901760
      %v3846 = vsub.f32 %v360, %v3845
      %v3847 = vand.u32 %v3846, 4294901760
      %v3848 = vsub.f32 %v3846, %v3847
      %v3849 = vand.u32 %v3848, 4294901760
      %3850 = vmatpush.msra.mxu0 %v3849
      %v3851 = vand.u32 %v352, 4294901760
      %v3852 = vsub.f32 %v352, %v3851
      %v3853 = vand.u32 %v3852, 4294901760
      %v3854 = vsub.f32 %v3852, %v3853
      %v3855 = vand.u32 %v3854, 4294901760
      %3856 = vmatpush.msra.mxu0 %v3855
      %v3857 = vand.u32 %v344, 4294901760
      %v3858 = vsub.f32 %v344, %v3857
      %v3859 = vand.u32 %v3858, 4294901760
      %v3860 = vsub.f32 %v3858, %v3859
      %v3861 = vand.u32 %v3860, 4294901760
      %3862 = vmatpush.msra.mxu0 %v3861
      %v3863 = vand.u32 %v336, 4294901760
      %v3864 = vsub.f32 %v336, %v3863
      %v3865 = vand.u32 %v3864, 4294901760
      %v3866 = vsub.f32 %v3864, %v3865
      %v3867 = vand.u32 %v3866, 4294901760
      %3868 = vmatpush.msra.mxu0 %v3867
      %v3869 = vand.u32 %v328, 4294901760
      %v3870 = vsub.f32 %v328, %v3869
      %v3871 = vand.u32 %v3870, 4294901760
      %v3872 = vsub.f32 %v3870, %v3871
      %v3873 = vand.u32 %v3872, 4294901760
      %3874 = vmatpush.msra.mxu0 %v3873
      %v3875 = vand.u32 %v320, 4294901760
      %v3876 = vsub.f32 %v320, %v3875
      %v3877 = vand.u32 %v3876, 4294901760
      %v3878 = vsub.f32 %v3876, %v3877
      %v3879 = vand.u32 %v3878, 4294901760
      %3880 = vmatpush.msra.mxu0 %v3879
      %v3881 = vand.u32 %v312, 4294901760
      %v3882 = vsub.f32 %v312, %v3881
      %v3883 = vand.u32 %v3882, 4294901760
      %v3884 = vsub.f32 %v3882, %v3883
      %v3885 = vand.u32 %v3884, 4294901760
      %3886 = vmatpush.msra.mxu0 %v3885
      %v3887 = vand.u32 %v304, 4294901760
      %v3888 = vsub.f32 %v304, %v3887
      %v3889 = vand.u32 %v3888, 4294901760
      %v3890 = vsub.f32 %v3888, %v3889
      %v3891 = vand.u32 %v3890, 4294901760
      %3892 = vmatpush.msra.mxu0 %v3891
      %v3893 = vand.u32 %v296, 4294901760
      %v3894 = vsub.f32 %v296, %v3893
      %v3895 = vand.u32 %v3894, 4294901760
      %v3896 = vsub.f32 %v3894, %v3895
      %v3897 = vand.u32 %v3896, 4294901760
      %3898 = vmatpush.msra.mxu0 %v3897
      %v3899 = vand.u32 %v288, 4294901760
      %v3900 = vsub.f32 %v288, %v3899
      %v3901 = vand.u32 %v3900, 4294901760
      %v3902 = vsub.f32 %v3900, %v3901
      %v3903 = vand.u32 %v3902, 4294901760
      %3904 = vmatpush.msra.mxu0 %v3903
      %v3905 = vand.u32 %v153, 4294901760
      %3906 = vmatmul.f32.gmra.mxu0 %v3905
      %v3907 = vpop.f32.mrf.mxu0
      %v3908 = vadd.f32 %v3799, %v3907
      %v3909 = vand.u32 %v155, 4294901760
      %3910 = vmatmul.f32.gmra.mxu0 %v3909
      %v3911 = vpop.f32.mrf.mxu0
      %v3912 = vadd.f32 %v3807, %v3911
      %3913 = vdwg.mxu0
      %v3914 = vand.u32 %v408, 4294901760
      %v3915 = vsub.f32 %v408, %v3914
      %3916 = vmatpush.msra.mxu0 %v3915
      %v3917 = vand.u32 %v400, 4294901760
      %v3918 = vsub.f32 %v400, %v3917
      %3919 = vmatpush.msra.mxu0 %v3918
      %v3920 = vand.u32 %v392, 4294901760
      %v3921 = vsub.f32 %v392, %v3920
      %3922 = vmatpush.msra.mxu0 %v3921
      %v3923 = vand.u32 %v384, 4294901760
      %v3924 = vsub.f32 %v384, %v3923
      %3925 = vmatpush.msra.mxu0 %v3924
      %v3926 = vand.u32 %v376, 4294901760
      %v3927 = vsub.f32 %v376, %v3926
      %3928 = vmatpush.msra.mxu0 %v3927
      %v3929 = vand.u32 %v368, 4294901760
      %v3930 = vsub.f32 %v368, %v3929
      %3931 = vmatpush.msra.mxu0 %v3930
      %v3932 = vand.u32 %v360, 4294901760
      %v3933 = vsub.f32 %v360, %v3932
      %3934 = vmatpush.msra.mxu0 %v3933
      %v3935 = vand.u32 %v352, 4294901760
      %v3936 = vsub.f32 %v352, %v3935
      %3937 = vmatpush.msra.mxu0 %v3936
      %v3938 = vand.u32 %v344, 4294901760
      %v3939 = vsub.f32 %v344, %v3938
      %3940 = vmatpush.msra.mxu0 %v3939
      %v3941 = vand.u32 %v336, 4294901760
      %v3942 = vsub.f32 %v336, %v3941
      %3943 = vmatpush.msra.mxu0 %v3942
      %v3944 = vand.u32 %v328, 4294901760
      %v3945 = vsub.f32 %v328, %v3944
      %3946 = vmatpush.msra.mxu0 %v3945
      %v3947 = vand.u32 %v320, 4294901760
      %v3948 = vsub.f32 %v320, %v3947
      %3949 = vmatpush.msra.mxu0 %v3948
      %v3950 = vand.u32 %v312, 4294901760
      %v3951 = vsub.f32 %v312, %v3950
      %3952 = vmatpush.msra.mxu0 %v3951
      %v3953 = vand.u32 %v304, 4294901760
      %v3954 = vsub.f32 %v304, %v3953
      %3955 = vmatpush.msra.mxu0 %v3954
      %v3956 = vand.u32 %v296, 4294901760
      %v3957 = vsub.f32 %v296, %v3956
      %3958 = vmatpush.msra.mxu0 %v3957
      %v3959 = vand.u32 %v288, 4294901760
      %v3960 = vsub.f32 %v288, %v3959
      %3961 = vmatpush.msra.mxu0 %v3960
      %v3962 = vand.u32 %v153, 4294901760
      %v3963 = vsub.f32 %v153, %v3962
      %3964 = vmatmul.f32.gmra.mxu0 %v3963
      %v3965 = vpop.f32.mrf.mxu0
      %v3966 = vadd.f32 %v3908, %v3965
      %v3967 = vand.u32 %v155, 4294901760
      %v3968 = vsub.f32 %v155, %v3967
      %3969 = vmatmul.f32.gmra.mxu0 %v3968
      %v3970 = vpop.f32.mrf.mxu0
      %v3971 = vadd.f32 %v3912, %v3970
      %3972 = vdwg.mxu0
      %v3973 = vand.u32 %v408, 4294901760
      %3974 = vmatpush.msra.mxu0 %v3973
      %v3975 = vand.u32 %v400, 4294901760
      %3976 = vmatpush.msra.mxu0 %v3975
      %v3977 = vand.u32 %v392, 4294901760
      %3978 = vmatpush.msra.mxu0 %v3977
      %v3979 = vand.u32 %v384, 4294901760
      %3980 = vmatpush.msra.mxu0 %v3979
      %v3981 = vand.u32 %v376, 4294901760
      %3982 = vmatpush.msra.mxu0 %v3981
      %v3983 = vand.u32 %v368, 4294901760
      %3984 = vmatpush.msra.mxu0 %v3983
      %v3985 = vand.u32 %v360, 4294901760
      %3986 = vmatpush.msra.mxu0 %v3985
      %v3987 = vand.u32 %v352, 4294901760
      %3988 = vmatpush.msra.mxu0 %v3987
      %v3989 = vand.u32 %v344, 4294901760
      %3990 = vmatpush.msra.mxu0 %v3989
      %v3991 = vand.u32 %v336, 4294901760
      %3992 = vmatpush.msra.mxu0 %v3991
      %v3993 = vand.u32 %v328, 4294901760
      %3994 = vmatpush.msra.mxu0 %v3993
      %v3995 = vand.u32 %v320, 4294901760
      %3996 = vmatpush.msra.mxu0 %v3995
      %v3997 = vand.u32 %v312, 4294901760
      %3998 = vmatpush.msra.mxu0 %v3997
      %v3999 = vand.u32 %v304, 4294901760
      %4000 = vmatpush.msra.mxu0 %v3999
      %v4001 = vand.u32 %v296, 4294901760
      %4002 = vmatpush.msra.mxu0 %v4001
      %v4003 = vand.u32 %v288, 4294901760
      %4004 = vmatpush.msra.mxu0 %v4003
      %v4005 = vand.u32 %v153, 4294901760
      %v4006 = vsub.f32 %v153, %v4005
      %v4007 = vand.u32 %v4006, 4294901760
      %4008 = vmatmul.f32.gmra.mxu0 %v4007
      %v4009 = vpop.f32.mrf.mxu0
      %v4010 = vadd.f32 %v3966, %v4009
      %v4011 = vand.u32 %v155, 4294901760
      %v4012 = vsub.f32 %v155, %v4011
      %v4013 = vand.u32 %v4012, 4294901760
      %4014 = vmatmul.f32.gmra.mxu0 %v4013
      %v4015 = vpop.f32.mrf.mxu0
      %v4016 = vadd.f32 %v3971, %v4015
      %4017 = vdwg.mxu0
      %v4018 = vand.u32 %v408, 4294901760
      %v4019 = vsub.f32 %v408, %v4018
      %v4020 = vand.u32 %v4019, 4294901760
      %4021 = vmatpush.msra.mxu0 %v4020
      %v4022 = vand.u32 %v400, 4294901760
      %v4023 = vsub.f32 %v400, %v4022
      %v4024 = vand.u32 %v4023, 4294901760
      %4025 = vmatpush.msra.mxu0 %v4024
      %v4026 = vand.u32 %v392, 4294901760
      %v4027 = vsub.f32 %v392, %v4026
      %v4028 = vand.u32 %v4027, 4294901760
      %4029 = vmatpush.msra.mxu0 %v4028
      %v4030 = vand.u32 %v384, 4294901760
      %v4031 = vsub.f32 %v384, %v4030
      %v4032 = vand.u32 %v4031, 4294901760
      %4033 = vmatpush.msra.mxu0 %v4032
      %v4034 = vand.u32 %v376, 4294901760
      %v4035 = vsub.f32 %v376, %v4034
      %v4036 = vand.u32 %v4035, 4294901760
      %4037 = vmatpush.msra.mxu0 %v4036
      %v4038 = vand.u32 %v368, 4294901760
      %v4039 = vsub.f32 %v368, %v4038
      %v4040 = vand.u32 %v4039, 4294901760
      %4041 = vmatpush.msra.mxu0 %v4040
      %v4042 = vand.u32 %v360, 4294901760
      %v4043 = vsub.f32 %v360, %v4042
      %v4044 = vand.u32 %v4043, 4294901760
      %4045 = vmatpush.msra.mxu0 %v4044
      %v4046 = vand.u32 %v352, 4294901760
      %v4047 = vsub.f32 %v352, %v4046
      %v4048 = vand.u32 %v4047, 4294901760
      %4049 = vmatpush.msra.mxu0 %v4048
      %v4050 = vand.u32 %v344, 4294901760
      %v4051 = vsub.f32 %v344, %v4050
      %v4052 = vand.u32 %v4051, 4294901760
      %4053 = vmatpush.msra.mxu0 %v4052
      %v4054 = vand.u32 %v336, 4294901760
      %v4055 = vsub.f32 %v336, %v4054
      %v4056 = vand.u32 %v4055, 4294901760
      %4057 = vmatpush.msra.mxu0 %v4056
      %v4058 = vand.u32 %v328, 4294901760
      %v4059 = vsub.f32 %v328, %v4058
      %v4060 = vand.u32 %v4059, 4294901760
      %4061 = vmatpush.msra.mxu0 %v4060
      %v4062 = vand.u32 %v320, 4294901760
      %v4063 = vsub.f32 %v320, %v4062
      %v4064 = vand.u32 %v4063, 4294901760
      %4065 = vmatpush.msra.mxu0 %v4064
      %v4066 = vand.u32 %v312, 4294901760
      %v4067 = vsub.f32 %v312, %v4066
      %v4068 = vand.u32 %v4067, 4294901760
      %4069 = vmatpush.msra.mxu0 %v4068
      %v4070 = vand.u32 %v304, 4294901760
      %v4071 = vsub.f32 %v304, %v4070
      %v4072 = vand.u32 %v4071, 4294901760
      %4073 = vmatpush.msra.mxu0 %v4072
      %v4074 = vand.u32 %v296, 4294901760
      %v4075 = vsub.f32 %v296, %v4074
      %v4076 = vand.u32 %v4075, 4294901760
      %4077 = vmatpush.msra.mxu0 %v4076
      %v4078 = vand.u32 %v288, 4294901760
      %v4079 = vsub.f32 %v288, %v4078
      %v4080 = vand.u32 %v4079, 4294901760
      %4081 = vmatpush.msra.mxu0 %v4080
      %v4082 = vand.u32 %v153, 4294901760
      %4083 = vmatmul.f32.gmra.mxu0 %v4082
      %v4084 = vpop.f32.mrf.mxu0
      %v4085 = vadd.f32 %v4010, %v4084
      %v4086 = vand.u32 %v155, 4294901760
      %4087 = vmatmul.f32.gmra.mxu0 %v4086
      %v4088 = vpop.f32.mrf.mxu0
      %v4089 = vadd.f32 %v4016, %v4088
      %4090 = vdwg.mxu0
      %v4091 = vand.u32 %v408, 4294901760
      %4092 = vmatpush.msra.mxu0 %v4091
      %v4093 = vand.u32 %v400, 4294901760
      %4094 = vmatpush.msra.mxu0 %v4093
      %v4095 = vand.u32 %v392, 4294901760
      %4096 = vmatpush.msra.mxu0 %v4095
      %v4097 = vand.u32 %v384, 4294901760
      %4098 = vmatpush.msra.mxu0 %v4097
      %v4099 = vand.u32 %v376, 4294901760
      %4100 = vmatpush.msra.mxu0 %v4099
      %v4101 = vand.u32 %v368, 4294901760
      %4102 = vmatpush.msra.mxu0 %v4101
      %v4103 = vand.u32 %v360, 4294901760
      %4104 = vmatpush.msra.mxu0 %v4103
      %v4105 = vand.u32 %v352, 4294901760
      %4106 = vmatpush.msra.mxu0 %v4105
      %v4107 = vand.u32 %v344, 4294901760
      %4108 = vmatpush.msra.mxu0 %v4107
      %v4109 = vand.u32 %v336, 4294901760
      %4110 = vmatpush.msra.mxu0 %v4109
      %v4111 = vand.u32 %v328, 4294901760
      %4112 = vmatpush.msra.mxu0 %v4111
      %v4113 = vand.u32 %v320, 4294901760
      %4114 = vmatpush.msra.mxu0 %v4113
      %v4115 = vand.u32 %v312, 4294901760
      %4116 = vmatpush.msra.mxu0 %v4115
      %v4117 = vand.u32 %v304, 4294901760
      %4118 = vmatpush.msra.mxu0 %v4117
      %v4119 = vand.u32 %v296, 4294901760
      %4120 = vmatpush.msra.mxu0 %v4119
      %v4121 = vand.u32 %v288, 4294901760
      %4122 = vmatpush.msra.mxu0 %v4121
      %v4123 = vand.u32 %v153, 4294901760
      %4124 = vmatmul.f32.gmra.mxu0 %v4123
      %v4125 = vpop.f32.mrf.mxu0
      %v4126 = vadd.f32 %v4085, %v4125
      %v4127 = vand.u32 %v155, 4294901760
      %4128 = vmatmul.f32.gmra.mxu0 %v4127
      %v4129 = vpop.f32.mrf.mxu0
      %v4130 = vadd.f32 %v4089, %v4129
      %4131 = vdwg.mxu0
      %v4132 = vand.u32 %v281, 4294901760
      %4133 = vmatpush.msra.mxu0 %v4132
      %v4134 = vand.u32 %v273, 4294901760
      %4135 = vmatpush.msra.mxu0 %v4134
      %v4136 = vand.u32 %v265, 4294901760
      %4137 = vmatpush.msra.mxu0 %v4136
      %v4138 = vand.u32 %v257, 4294901760
      %4139 = vmatpush.msra.mxu0 %v4138
      %v4140 = vand.u32 %v249, 4294901760
      %4141 = vmatpush.msra.mxu0 %v4140
      %v4142 = vand.u32 %v241, 4294901760
      %4143 = vmatpush.msra.mxu0 %v4142
      %v4144 = vand.u32 %v233, 4294901760
      %4145 = vmatpush.msra.mxu0 %v4144
      %v4146 = vand.u32 %v225, 4294901760
      %4147 = vmatpush.msra.mxu0 %v4146
      %v4148 = vand.u32 %v217, 4294901760
      %4149 = vmatpush.msra.mxu0 %v4148
      %v4150 = vand.u32 %v209, 4294901760
      %4151 = vmatpush.msra.mxu0 %v4150
      %v4152 = vand.u32 %v201, 4294901760
      %4153 = vmatpush.msra.mxu0 %v4152
      %v4154 = vand.u32 %v193, 4294901760
      %4155 = vmatpush.msra.mxu0 %v4154
      %v4156 = vand.u32 %v185, 4294901760
      %4157 = vmatpush.msra.mxu0 %v4156
      %v4158 = vand.u32 %v177, 4294901760
      %4159 = vmatpush.msra.mxu0 %v4158
      %v4160 = vand.u32 %v169, 4294901760
      %4161 = vmatpush.msra.mxu0 %v4160
      %v4162 = vand.u32 %v161, 4294901760
      %4163 = vmatpush.msra.mxu0 %v4162
      %v4164 = vand.u32 %v152, 4294901760
      %v4165 = vsub.f32 %v152, %v4164
      %v4166 = vand.u32 %v4165, 4294901760
      %v4167 = vsub.f32 %v4165, %v4166
      %v4168 = vand.u32 %v4167, 4294901760
      %4169 = vmatmul.f32.gmra.mxu0 %v4168
      %v4170 = vpop.f32.mrf.mxu0
      %v4171 = vadd.f32 0.0, %v4170
      %v4172 = vand.u32 %v154, 4294901760
      %v4173 = vsub.f32 %v154, %v4172
      %v4174 = vand.u32 %v4173, 4294901760
      %v4175 = vsub.f32 %v4173, %v4174
      %v4176 = vand.u32 %v4175, 4294901760
      %4177 = vmatmul.f32.gmra.mxu0 %v4176
      %v4178 = vpop.f32.mrf.mxu0
      %v4179 = vadd.f32 0.0, %v4178
      %4180 = vdwg.mxu0
      %v4181 = vand.u32 %v281, 4294901760
      %v4182 = vsub.f32 %v281, %v4181
      %v4183 = vand.u32 %v4182, 4294901760
      %v4184 = vsub.f32 %v4182, %v4183
      %v4185 = vand.u32 %v4184, 4294901760
      %4186 = vmatpush.msra.mxu0 %v4185
      %v4187 = vand.u32 %v273, 4294901760
      %v4188 = vsub.f32 %v273, %v4187
      %v4189 = vand.u32 %v4188, 4294901760
      %v4190 = vsub.f32 %v4188, %v4189
      %v4191 = vand.u32 %v4190, 4294901760
      %4192 = vmatpush.msra.mxu0 %v4191
      %v4193 = vand.u32 %v265, 4294901760
      %v4194 = vsub.f32 %v265, %v4193
      %v4195 = vand.u32 %v4194, 4294901760
      %v4196 = vsub.f32 %v4194, %v4195
      %v4197 = vand.u32 %v4196, 4294901760
      %4198 = vmatpush.msra.mxu0 %v4197
      %v4199 = vand.u32 %v257, 4294901760
      %v4200 = vsub.f32 %v257, %v4199
      %v4201 = vand.u32 %v4200, 4294901760
      %v4202 = vsub.f32 %v4200, %v4201
      %v4203 = vand.u32 %v4202, 4294901760
      %4204 = vmatpush.msra.mxu0 %v4203
      %v4205 = vand.u32 %v249, 4294901760
      %v4206 = vsub.f32 %v249, %v4205
      %v4207 = vand.u32 %v4206, 4294901760
      %v4208 = vsub.f32 %v4206, %v4207
      %v4209 = vand.u32 %v4208, 4294901760
      %4210 = vmatpush.msra.mxu0 %v4209
      %v4211 = vand.u32 %v241, 4294901760
      %v4212 = vsub.f32 %v241, %v4211
      %v4213 = vand.u32 %v4212, 4294901760
      %v4214 = vsub.f32 %v4212, %v4213
      %v4215 = vand.u32 %v4214, 4294901760
      %4216 = vmatpush.msra.mxu0 %v4215
      %v4217 = vand.u32 %v233, 4294901760
      %v4218 = vsub.f32 %v233, %v4217
      %v4219 = vand.u32 %v4218, 4294901760
      %v4220 = vsub.f32 %v4218, %v4219
      %v4221 = vand.u32 %v4220, 4294901760
      %4222 = vmatpush.msra.mxu0 %v4221
      %v4223 = vand.u32 %v225, 4294901760
      %v4224 = vsub.f32 %v225, %v4223
      %v4225 = vand.u32 %v4224, 4294901760
      %v4226 = vsub.f32 %v4224, %v4225
      %v4227 = vand.u32 %v4226, 4294901760
      %4228 = vmatpush.msra.mxu0 %v4227
      %v4229 = vand.u32 %v217, 4294901760
      %v4230 = vsub.f32 %v217, %v4229
      %v4231 = vand.u32 %v4230, 4294901760
      %v4232 = vsub.f32 %v4230, %v4231
      %v4233 = vand.u32 %v4232, 4294901760
      %4234 = vmatpush.msra.mxu0 %v4233
      %v4235 = vand.u32 %v209, 4294901760
      %v4236 = vsub.f32 %v209, %v4235
      %v4237 = vand.u32 %v4236, 4294901760
      %v4238 = vsub.f32 %v4236, %v4237
      %v4239 = vand.u32 %v4238, 4294901760
      %4240 = vmatpush.msra.mxu0 %v4239
      %v4241 = vand.u32 %v201, 4294901760
      %v4242 = vsub.f32 %v201, %v4241
      %v4243 = vand.u32 %v4242, 4294901760
      %v4244 = vsub.f32 %v4242, %v4243
      %v4245 = vand.u32 %v4244, 4294901760
      %4246 = vmatpush.msra.mxu0 %v4245
      %v4247 = vand.u32 %v193, 4294901760
      %v4248 = vsub.f32 %v193, %v4247
      %v4249 = vand.u32 %v4248, 4294901760
      %v4250 = vsub.f32 %v4248, %v4249
      %v4251 = vand.u32 %v4250, 4294901760
      %4252 = vmatpush.msra.mxu0 %v4251
      %v4253 = vand.u32 %v185, 4294901760
      %v4254 = vsub.f32 %v185, %v4253
      %v4255 = vand.u32 %v4254, 4294901760
      %v4256 = vsub.f32 %v4254, %v4255
      %v4257 = vand.u32 %v4256, 4294901760
      %4258 = vmatpush.msra.mxu0 %v4257
      %v4259 = vand.u32 %v177, 4294901760
      %v4260 = vsub.f32 %v177, %v4259
      %v4261 = vand.u32 %v4260, 4294901760
      %v4262 = vsub.f32 %v4260, %v4261
      %v4263 = vand.u32 %v4262, 4294901760
      %4264 = vmatpush.msra.mxu0 %v4263
      %v4265 = vand.u32 %v169, 4294901760
      %v4266 = vsub.f32 %v169, %v4265
      %v4267 = vand.u32 %v4266, 4294901760
      %v4268 = vsub.f32 %v4266, %v4267
      %v4269 = vand.u32 %v4268, 4294901760
      %4270 = vmatpush.msra.mxu0 %v4269
      %v4271 = vand.u32 %v161, 4294901760
      %v4272 = vsub.f32 %v161, %v4271
      %v4273 = vand.u32 %v4272, 4294901760
      %v4274 = vsub.f32 %v4272, %v4273
      %v4275 = vand.u32 %v4274, 4294901760
      %4276 = vmatpush.msra.mxu0 %v4275
      %v4277 = vand.u32 %v152, 4294901760
      %4278 = vmatmul.f32.gmra.mxu0 %v4277
      %v4279 = vpop.f32.mrf.mxu0
      %v4280 = vadd.f32 %v4171, %v4279
      %v4281 = vand.u32 %v154, 4294901760
      %4282 = vmatmul.f32.gmra.mxu0 %v4281
      %v4283 = vpop.f32.mrf.mxu0
      %v4284 = vadd.f32 %v4179, %v4283
      %4285 = vdwg.mxu0
      %v4286 = vand.u32 %v281, 4294901760
      %v4287 = vsub.f32 %v281, %v4286
      %4288 = vmatpush.msra.mxu0 %v4287
      %v4289 = vand.u32 %v273, 4294901760
      %v4290 = vsub.f32 %v273, %v4289
      %4291 = vmatpush.msra.mxu0 %v4290
      %v4292 = vand.u32 %v265, 4294901760
      %v4293 = vsub.f32 %v265, %v4292
      %4294 = vmatpush.msra.mxu0 %v4293
      %v4295 = vand.u32 %v257, 4294901760
      %v4296 = vsub.f32 %v257, %v4295
      %4297 = vmatpush.msra.mxu0 %v4296
      %v4298 = vand.u32 %v249, 4294901760
      %v4299 = vsub.f32 %v249, %v4298
      %4300 = vmatpush.msra.mxu0 %v4299
      %v4301 = vand.u32 %v241, 4294901760
      %v4302 = vsub.f32 %v241, %v4301
      %4303 = vmatpush.msra.mxu0 %v4302
      %v4304 = vand.u32 %v233, 4294901760
      %v4305 = vsub.f32 %v233, %v4304
      %4306 = vmatpush.msra.mxu0 %v4305
      %v4307 = vand.u32 %v225, 4294901760
      %v4308 = vsub.f32 %v225, %v4307
      %4309 = vmatpush.msra.mxu0 %v4308
      %v4310 = vand.u32 %v217, 4294901760
      %v4311 = vsub.f32 %v217, %v4310
      %4312 = vmatpush.msra.mxu0 %v4311
      %v4313 = vand.u32 %v209, 4294901760
      %v4314 = vsub.f32 %v209, %v4313
      %4315 = vmatpush.msra.mxu0 %v4314
      %v4316 = vand.u32 %v201, 4294901760
      %v4317 = vsub.f32 %v201, %v4316
      %4318 = vmatpush.msra.mxu0 %v4317
      %v4319 = vand.u32 %v193, 4294901760
      %v4320 = vsub.f32 %v193, %v4319
      %4321 = vmatpush.msra.mxu0 %v4320
      %v4322 = vand.u32 %v185, 4294901760
      %v4323 = vsub.f32 %v185, %v4322
      %4324 = vmatpush.msra.mxu0 %v4323
      %v4325 = vand.u32 %v177, 4294901760
      %v4326 = vsub.f32 %v177, %v4325
      %4327 = vmatpush.msra.mxu0 %v4326
      %v4328 = vand.u32 %v169, 4294901760
      %v4329 = vsub.f32 %v169, %v4328
      %4330 = vmatpush.msra.mxu0 %v4329
      %v4331 = vand.u32 %v161, 4294901760
      %v4332 = vsub.f32 %v161, %v4331
      %4333 = vmatpush.msra.mxu0 %v4332
      %v4334 = vand.u32 %v152, 4294901760
      %v4335 = vsub.f32 %v152, %v4334
      %4336 = vmatmul.f32.gmra.mxu0 %v4335
      %v4337 = vpop.f32.mrf.mxu0
      %v4338 = vadd.f32 %v4280, %v4337
      %v4339 = vand.u32 %v154, 4294901760
      %v4340 = vsub.f32 %v154, %v4339
      %4341 = vmatmul.f32.gmra.mxu0 %v4340
      %v4342 = vpop.f32.mrf.mxu0
      %v4343 = vadd.f32 %v4284, %v4342
      %4344 = vdwg.mxu0
      %v4345 = vand.u32 %v281, 4294901760
      %4346 = vmatpush.msra.mxu0 %v4345
      %v4347 = vand.u32 %v273, 4294901760
      %4348 = vmatpush.msra.mxu0 %v4347
      %v4349 = vand.u32 %v265, 4294901760
      %4350 = vmatpush.msra.mxu0 %v4349
      %v4351 = vand.u32 %v257, 4294901760
      %4352 = vmatpush.msra.mxu0 %v4351
      %v4353 = vand.u32 %v249, 4294901760
      %4354 = vmatpush.msra.mxu0 %v4353
      %v4355 = vand.u32 %v241, 4294901760
      %4356 = vmatpush.msra.mxu0 %v4355
      %v4357 = vand.u32 %v233, 4294901760
      %4358 = vmatpush.msra.mxu0 %v4357
      %v4359 = vand.u32 %v225, 4294901760
      %4360 = vmatpush.msra.mxu0 %v4359
      %v4361 = vand.u32 %v217, 4294901760
      %4362 = vmatpush.msra.mxu0 %v4361
      %v4363 = vand.u32 %v209, 4294901760
      %4364 = vmatpush.msra.mxu0 %v4363
      %v4365 = vand.u32 %v201, 4294901760
      %4366 = vmatpush.msra.mxu0 %v4365
      %v4367 = vand.u32 %v193, 4294901760
      %4368 = vmatpush.msra.mxu0 %v4367
      %v4369 = vand.u32 %v185, 4294901760
      %4370 = vmatpush.msra.mxu0 %v4369
      %v4371 = vand.u32 %v177, 4294901760
      %4372 = vmatpush.msra.mxu0 %v4371
      %v4373 = vand.u32 %v169, 4294901760
      %4374 = vmatpush.msra.mxu0 %v4373
      %v4375 = vand.u32 %v161, 4294901760
      %4376 = vmatpush.msra.mxu0 %v4375
      %v4377 = vand.u32 %v152, 4294901760
      %v4378 = vsub.f32 %v152, %v4377
      %v4379 = vand.u32 %v4378, 4294901760
      %4380 = vmatmul.f32.gmra.mxu0 %v4379
      %v4381 = vpop.f32.mrf.mxu0
      %v4382 = vadd.f32 %v4338, %v4381
      %v4383 = vand.u32 %v154, 4294901760
      %v4384 = vsub.f32 %v154, %v4383
      %v4385 = vand.u32 %v4384, 4294901760
      %4386 = vmatmul.f32.gmra.mxu0 %v4385
      %v4387 = vpop.f32.mrf.mxu0
      %v4388 = vadd.f32 %v4343, %v4387
      %4389 = vdwg.mxu0
      %v4390 = vand.u32 %v281, 4294901760
      %v4391 = vsub.f32 %v281, %v4390
      %v4392 = vand.u32 %v4391, 4294901760
      %4393 = vmatpush.msra.mxu0 %v4392
      %v4394 = vand.u32 %v273, 4294901760
      %v4395 = vsub.f32 %v273, %v4394
      %v4396 = vand.u32 %v4395, 4294901760
      %4397 = vmatpush.msra.mxu0 %v4396
      %v4398 = vand.u32 %v265, 4294901760
      %v4399 = vsub.f32 %v265, %v4398
      %v4400 = vand.u32 %v4399, 4294901760
      %4401 = vmatpush.msra.mxu0 %v4400
      %v4402 = vand.u32 %v257, 4294901760
      %v4403 = vsub.f32 %v257, %v4402
      %v4404 = vand.u32 %v4403, 4294901760
      %4405 = vmatpush.msra.mxu0 %v4404
      %v4406 = vand.u32 %v249, 4294901760
      %v4407 = vsub.f32 %v249, %v4406
      %v4408 = vand.u32 %v4407, 4294901760
      %4409 = vmatpush.msra.mxu0 %v4408
      %v4410 = vand.u32 %v241, 4294901760
      %v4411 = vsub.f32 %v241, %v4410
      %v4412 = vand.u32 %v4411, 4294901760
      %4413 = vmatpush.msra.mxu0 %v4412
      %v4414 = vand.u32 %v233, 4294901760
      %v4415 = vsub.f32 %v233, %v4414
      %v4416 = vand.u32 %v4415, 4294901760
      %4417 = vmatpush.msra.mxu0 %v4416
      %v4418 = vand.u32 %v225, 4294901760
      %v4419 = vsub.f32 %v225, %v4418
      %v4420 = vand.u32 %v4419, 4294901760
      %4421 = vmatpush.msra.mxu0 %v4420
      %v4422 = vand.u32 %v217, 4294901760
      %v4423 = vsub.f32 %v217, %v4422
      %v4424 = vand.u32 %v4423, 4294901760
      %4425 = vmatpush.msra.mxu0 %v4424
      %v4426 = vand.u32 %v209, 4294901760
      %v4427 = vsub.f32 %v209, %v4426
      %v4428 = vand.u32 %v4427, 4294901760
      %4429 = vmatpush.msra.mxu0 %v4428
      %v4430 = vand.u32 %v201, 4294901760
      %v4431 = vsub.f32 %v201, %v4430
      %v4432 = vand.u32 %v4431, 4294901760
      %4433 = vmatpush.msra.mxu0 %v4432
      %v4434 = vand.u32 %v193, 4294901760
      %v4435 = vsub.f32 %v193, %v4434
      %v4436 = vand.u32 %v4435, 4294901760
      %4437 = vmatpush.msra.mxu0 %v4436
      %v4438 = vand.u32 %v185, 4294901760
      %v4439 = vsub.f32 %v185, %v4438
      %v4440 = vand.u32 %v4439, 4294901760
      %4441 = vmatpush.msra.mxu0 %v4440
      %v4442 = vand.u32 %v177, 4294901760
      %v4443 = vsub.f32 %v177, %v4442
      %v4444 = vand.u32 %v4443, 4294901760
      %4445 = vmatpush.msra.mxu0 %v4444
      %v4446 = vand.u32 %v169, 4294901760
      %v4447 = vsub.f32 %v169, %v4446
      %v4448 = vand.u32 %v4447, 4294901760
      %4449 = vmatpush.msra.mxu0 %v4448
      %v4450 = vand.u32 %v161, 4294901760
      %v4451 = vsub.f32 %v161, %v4450
      %v4452 = vand.u32 %v4451, 4294901760
      %4453 = vmatpush.msra.mxu0 %v4452
      %v4454 = vand.u32 %v152, 4294901760
      %4455 = vmatmul.f32.gmra.mxu0 %v4454
      %v4456 = vpop.f32.mrf.mxu0
      %v4457 = vadd.f32 %v4382, %v4456
      %v4458 = vand.u32 %v154, 4294901760
      %4459 = vmatmul.f32.gmra.mxu0 %v4458
      %v4460 = vpop.f32.mrf.mxu0
      %v4461 = vadd.f32 %v4388, %v4460
      %4462 = vdwg.mxu0
      %v4463 = vand.u32 %v281, 4294901760
      %4464 = vmatpush.msra.mxu0 %v4463
      %v4465 = vand.u32 %v273, 4294901760
      %4466 = vmatpush.msra.mxu0 %v4465
      %v4467 = vand.u32 %v265, 4294901760
      %4468 = vmatpush.msra.mxu0 %v4467
      %v4469 = vand.u32 %v257, 4294901760
      %4470 = vmatpush.msra.mxu0 %v4469
      %v4471 = vand.u32 %v249, 4294901760
      %4472 = vmatpush.msra.mxu0 %v4471
      %v4473 = vand.u32 %v241, 4294901760
      %4474 = vmatpush.msra.mxu0 %v4473
      %v4475 = vand.u32 %v233, 4294901760
      %4476 = vmatpush.msra.mxu0 %v4475
      %v4477 = vand.u32 %v225, 4294901760
      %4478 = vmatpush.msra.mxu0 %v4477
      %v4479 = vand.u32 %v217, 4294901760
      %4480 = vmatpush.msra.mxu0 %v4479
      %v4481 = vand.u32 %v209, 4294901760
      %4482 = vmatpush.msra.mxu0 %v4481
      %v4483 = vand.u32 %v201, 4294901760
      %4484 = vmatpush.msra.mxu0 %v4483
      %v4485 = vand.u32 %v193, 4294901760
      %4486 = vmatpush.msra.mxu0 %v4485
      %v4487 = vand.u32 %v185, 4294901760
      %4488 = vmatpush.msra.mxu0 %v4487
      %v4489 = vand.u32 %v177, 4294901760
      %4490 = vmatpush.msra.mxu0 %v4489
      %v4491 = vand.u32 %v169, 4294901760
      %4492 = vmatpush.msra.mxu0 %v4491
      %v4493 = vand.u32 %v161, 4294901760
      %4494 = vmatpush.msra.mxu0 %v4493
      %v4495 = vand.u32 %v152, 4294901760
      %4496 = vmatmul.f32.gmra.mxu0 %v4495
      %v4497 = vpop.f32.mrf.mxu0
      %v4498 = vadd.f32 %v4457, %v4497
      %v4499 = vand.u32 %v154, 4294901760
      %4500 = vmatmul.f32.gmra.mxu0 %v4499
      %v4501 = vpop.f32.mrf.mxu0
      %v4502 = vadd.f32 %v4461, %v4501
      %4503 = vdwg.mxu0
      %v4504 = vand.u32 %v409, 4294901760
      %4505 = vmatpush.msra.mxu0 %v4504
      %v4506 = vand.u32 %v401, 4294901760
      %4507 = vmatpush.msra.mxu0 %v4506
      %v4508 = vand.u32 %v393, 4294901760
      %4509 = vmatpush.msra.mxu0 %v4508
      %v4510 = vand.u32 %v385, 4294901760
      %4511 = vmatpush.msra.mxu0 %v4510
      %v4512 = vand.u32 %v377, 4294901760
      %4513 = vmatpush.msra.mxu0 %v4512
      %v4514 = vand.u32 %v369, 4294901760
      %4515 = vmatpush.msra.mxu0 %v4514
      %v4516 = vand.u32 %v361, 4294901760
      %4517 = vmatpush.msra.mxu0 %v4516
      %v4518 = vand.u32 %v353, 4294901760
      %4519 = vmatpush.msra.mxu0 %v4518
      %v4520 = vand.u32 %v345, 4294901760
      %4521 = vmatpush.msra.mxu0 %v4520
      %v4522 = vand.u32 %v337, 4294901760
      %4523 = vmatpush.msra.mxu0 %v4522
      %v4524 = vand.u32 %v329, 4294901760
      %4525 = vmatpush.msra.mxu0 %v4524
      %v4526 = vand.u32 %v321, 4294901760
      %4527 = vmatpush.msra.mxu0 %v4526
      %v4528 = vand.u32 %v313, 4294901760
      %4529 = vmatpush.msra.mxu0 %v4528
      %v4530 = vand.u32 %v305, 4294901760
      %4531 = vmatpush.msra.mxu0 %v4530
      %v4532 = vand.u32 %v297, 4294901760
      %4533 = vmatpush.msra.mxu0 %v4532
      %v4534 = vand.u32 %v289, 4294901760
      %4535 = vmatpush.msra.mxu0 %v4534
      %v4536 = vand.u32 %v153, 4294901760
      %v4537 = vsub.f32 %v153, %v4536
      %v4538 = vand.u32 %v4537, 4294901760
      %v4539 = vsub.f32 %v4537, %v4538
      %v4540 = vand.u32 %v4539, 4294901760
      %4541 = vmatmul.f32.gmra.mxu0 %v4540
      %v4542 = vpop.f32.mrf.mxu0
      %v4543 = vadd.f32 %v4498, %v4542
      %v4544 = vand.u32 %v155, 4294901760
      %v4545 = vsub.f32 %v155, %v4544
      %v4546 = vand.u32 %v4545, 4294901760
      %v4547 = vsub.f32 %v4545, %v4546
      %v4548 = vand.u32 %v4547, 4294901760
      %4549 = vmatmul.f32.gmra.mxu0 %v4548
      %v4550 = vpop.f32.mrf.mxu0
      %v4551 = vadd.f32 %v4502, %v4550
      %4552 = vdwg.mxu0
      %v4553 = vand.u32 %v409, 4294901760
      %v4554 = vsub.f32 %v409, %v4553
      %v4555 = vand.u32 %v4554, 4294901760
      %v4556 = vsub.f32 %v4554, %v4555
      %v4557 = vand.u32 %v4556, 4294901760
      %4558 = vmatpush.msra.mxu0 %v4557
      %v4559 = vand.u32 %v401, 4294901760
      %v4560 = vsub.f32 %v401, %v4559
      %v4561 = vand.u32 %v4560, 4294901760
      %v4562 = vsub.f32 %v4560, %v4561
      %v4563 = vand.u32 %v4562, 4294901760
      %4564 = vmatpush.msra.mxu0 %v4563
      %v4565 = vand.u32 %v393, 4294901760
      %v4566 = vsub.f32 %v393, %v4565
      %v4567 = vand.u32 %v4566, 4294901760
      %v4568 = vsub.f32 %v4566, %v4567
      %v4569 = vand.u32 %v4568, 4294901760
      %4570 = vmatpush.msra.mxu0 %v4569
      %v4571 = vand.u32 %v385, 4294901760
      %v4572 = vsub.f32 %v385, %v4571
      %v4573 = vand.u32 %v4572, 4294901760
      %v4574 = vsub.f32 %v4572, %v4573
      %v4575 = vand.u32 %v4574, 4294901760
      %4576 = vmatpush.msra.mxu0 %v4575
      %v4577 = vand.u32 %v377, 4294901760
      %v4578 = vsub.f32 %v377, %v4577
      %v4579 = vand.u32 %v4578, 4294901760
      %v4580 = vsub.f32 %v4578, %v4579
      %v4581 = vand.u32 %v4580, 4294901760
      %4582 = vmatpush.msra.mxu0 %v4581
      %v4583 = vand.u32 %v369, 4294901760
      %v4584 = vsub.f32 %v369, %v4583
      %v4585 = vand.u32 %v4584, 4294901760
      %v4586 = vsub.f32 %v4584, %v4585
      %v4587 = vand.u32 %v4586, 4294901760
      %4588 = vmatpush.msra.mxu0 %v4587
      %v4589 = vand.u32 %v361, 4294901760
      %v4590 = vsub.f32 %v361, %v4589
      %v4591 = vand.u32 %v4590, 4294901760
      %v4592 = vsub.f32 %v4590, %v4591
      %v4593 = vand.u32 %v4592, 4294901760
      %4594 = vmatpush.msra.mxu0 %v4593
      %v4595 = vand.u32 %v353, 4294901760
      %v4596 = vsub.f32 %v353, %v4595
      %v4597 = vand.u32 %v4596, 4294901760
      %v4598 = vsub.f32 %v4596, %v4597
      %v4599 = vand.u32 %v4598, 4294901760
      %4600 = vmatpush.msra.mxu0 %v4599
      %v4601 = vand.u32 %v345, 4294901760
      %v4602 = vsub.f32 %v345, %v4601
      %v4603 = vand.u32 %v4602, 4294901760
      %v4604 = vsub.f32 %v4602, %v4603
      %v4605 = vand.u32 %v4604, 4294901760
      %4606 = vmatpush.msra.mxu0 %v4605
      %v4607 = vand.u32 %v337, 4294901760
      %v4608 = vsub.f32 %v337, %v4607
      %v4609 = vand.u32 %v4608, 4294901760
      %v4610 = vsub.f32 %v4608, %v4609
      %v4611 = vand.u32 %v4610, 4294901760
      %4612 = vmatpush.msra.mxu0 %v4611
      %v4613 = vand.u32 %v329, 4294901760
      %v4614 = vsub.f32 %v329, %v4613
      %v4615 = vand.u32 %v4614, 4294901760
      %v4616 = vsub.f32 %v4614, %v4615
      %v4617 = vand.u32 %v4616, 4294901760
      %4618 = vmatpush.msra.mxu0 %v4617
      %v4619 = vand.u32 %v321, 4294901760
      %v4620 = vsub.f32 %v321, %v4619
      %v4621 = vand.u32 %v4620, 4294901760
      %v4622 = vsub.f32 %v4620, %v4621
      %v4623 = vand.u32 %v4622, 4294901760
      %4624 = vmatpush.msra.mxu0 %v4623
      %v4625 = vand.u32 %v313, 4294901760
      %v4626 = vsub.f32 %v313, %v4625
      %v4627 = vand.u32 %v4626, 4294901760
      %v4628 = vsub.f32 %v4626, %v4627
      %v4629 = vand.u32 %v4628, 4294901760
      %4630 = vmatpush.msra.mxu0 %v4629
      %v4631 = vand.u32 %v305, 4294901760
      %v4632 = vsub.f32 %v305, %v4631
      %v4633 = vand.u32 %v4632, 4294901760
      %v4634 = vsub.f32 %v4632, %v4633
      %v4635 = vand.u32 %v4634, 4294901760
      %4636 = vmatpush.msra.mxu0 %v4635
      %v4637 = vand.u32 %v297, 4294901760
      %v4638 = vsub.f32 %v297, %v4637
      %v4639 = vand.u32 %v4638, 4294901760
      %v4640 = vsub.f32 %v4638, %v4639
      %v4641 = vand.u32 %v4640, 4294901760
      %4642 = vmatpush.msra.mxu0 %v4641
      %v4643 = vand.u32 %v289, 4294901760
      %v4644 = vsub.f32 %v289, %v4643
      %v4645 = vand.u32 %v4644, 4294901760
      %v4646 = vsub.f32 %v4644, %v4645
      %v4647 = vand.u32 %v4646, 4294901760
      %4648 = vmatpush.msra.mxu0 %v4647
      %v4649 = vand.u32 %v153, 4294901760
      %4650 = vmatmul.f32.gmra.mxu0 %v4649
      %v4651 = vpop.f32.mrf.mxu0
      %v4652 = vadd.f32 %v4543, %v4651
      %v4653 = vand.u32 %v155, 4294901760
      %4654 = vmatmul.f32.gmra.mxu0 %v4653
      %v4655 = vpop.f32.mrf.mxu0
      %v4656 = vadd.f32 %v4551, %v4655
      %4657 = vdwg.mxu0
      %v4658 = vand.u32 %v409, 4294901760
      %v4659 = vsub.f32 %v409, %v4658
      %4660 = vmatpush.msra.mxu0 %v4659
      %v4661 = vand.u32 %v401, 4294901760
      %v4662 = vsub.f32 %v401, %v4661
      %4663 = vmatpush.msra.mxu0 %v4662
      %v4664 = vand.u32 %v393, 4294901760
      %v4665 = vsub.f32 %v393, %v4664
      %4666 = vmatpush.msra.mxu0 %v4665
      %v4667 = vand.u32 %v385, 4294901760
      %v4668 = vsub.f32 %v385, %v4667
      %4669 = vmatpush.msra.mxu0 %v4668
      %v4670 = vand.u32 %v377, 4294901760
      %v4671 = vsub.f32 %v377, %v4670
      %4672 = vmatpush.msra.mxu0 %v4671
      %v4673 = vand.u32 %v369, 4294901760
      %v4674 = vsub.f32 %v369, %v4673
      %4675 = vmatpush.msra.mxu0 %v4674
      %v4676 = vand.u32 %v361, 4294901760
      %v4677 = vsub.f32 %v361, %v4676
      %4678 = vmatpush.msra.mxu0 %v4677
      %v4679 = vand.u32 %v353, 4294901760
      %v4680 = vsub.f32 %v353, %v4679
      %4681 = vmatpush.msra.mxu0 %v4680
      %v4682 = vand.u32 %v345, 4294901760
      %v4683 = vsub.f32 %v345, %v4682
      %4684 = vmatpush.msra.mxu0 %v4683
      %v4685 = vand.u32 %v337, 4294901760
      %v4686 = vsub.f32 %v337, %v4685
      %4687 = vmatpush.msra.mxu0 %v4686
      %v4688 = vand.u32 %v329, 4294901760
      %v4689 = vsub.f32 %v329, %v4688
      %4690 = vmatpush.msra.mxu0 %v4689
      %v4691 = vand.u32 %v321, 4294901760
      %v4692 = vsub.f32 %v321, %v4691
      %4693 = vmatpush.msra.mxu0 %v4692
      %v4694 = vand.u32 %v313, 4294901760
      %v4695 = vsub.f32 %v313, %v4694
      %4696 = vmatpush.msra.mxu0 %v4695
      %v4697 = vand.u32 %v305, 4294901760
      %v4698 = vsub.f32 %v305, %v4697
      %4699 = vmatpush.msra.mxu0 %v4698
      %v4700 = vand.u32 %v297, 4294901760
      %v4701 = vsub.f32 %v297, %v4700
      %4702 = vmatpush.msra.mxu0 %v4701
      %v4703 = vand.u32 %v289, 4294901760
      %v4704 = vsub.f32 %v289, %v4703
      %4705 = vmatpush.msra.mxu0 %v4704
      %v4706 = vand.u32 %v153, 4294901760
      %v4707 = vsub.f32 %v153, %v4706
      %4708 = vmatmul.f32.gmra.mxu0 %v4707
      %v4709 = vpop.f32.mrf.mxu0
      %v4710 = vadd.f32 %v4652, %v4709
      %v4711 = vand.u32 %v155, 4294901760
      %v4712 = vsub.f32 %v155, %v4711
      %4713 = vmatmul.f32.gmra.mxu0 %v4712
      %v4714 = vpop.f32.mrf.mxu0
      %v4715 = vadd.f32 %v4656, %v4714
      %4716 = vdwg.mxu0
      %v4717 = vand.u32 %v409, 4294901760
      %4718 = vmatpush.msra.mxu0 %v4717
      %v4719 = vand.u32 %v401, 4294901760
      %4720 = vmatpush.msra.mxu0 %v4719
      %v4721 = vand.u32 %v393, 4294901760
      %4722 = vmatpush.msra.mxu0 %v4721
      %v4723 = vand.u32 %v385, 4294901760
      %4724 = vmatpush.msra.mxu0 %v4723
      %v4725 = vand.u32 %v377, 4294901760
      %4726 = vmatpush.msra.mxu0 %v4725
      %v4727 = vand.u32 %v369, 4294901760
      %4728 = vmatpush.msra.mxu0 %v4727
      %v4729 = vand.u32 %v361, 4294901760
      %4730 = vmatpush.msra.mxu0 %v4729
      %v4731 = vand.u32 %v353, 4294901760
      %4732 = vmatpush.msra.mxu0 %v4731
      %v4733 = vand.u32 %v345, 4294901760
      %4734 = vmatpush.msra.mxu0 %v4733
      %v4735 = vand.u32 %v337, 4294901760
      %4736 = vmatpush.msra.mxu0 %v4735
      %v4737 = vand.u32 %v329, 4294901760
      %4738 = vmatpush.msra.mxu0 %v4737
      %v4739 = vand.u32 %v321, 4294901760
      %4740 = vmatpush.msra.mxu0 %v4739
      %v4741 = vand.u32 %v313, 4294901760
      %4742 = vmatpush.msra.mxu0 %v4741
      %v4743 = vand.u32 %v305, 4294901760
      %4744 = vmatpush.msra.mxu0 %v4743
      %v4745 = vand.u32 %v297, 4294901760
      %4746 = vmatpush.msra.mxu0 %v4745
      %v4747 = vand.u32 %v289, 4294901760
      %4748 = vmatpush.msra.mxu0 %v4747
      %v4749 = vand.u32 %v153, 4294901760
      %v4750 = vsub.f32 %v153, %v4749
      %v4751 = vand.u32 %v4750, 4294901760
      %4752 = vmatmul.f32.gmra.mxu0 %v4751
      %v4753 = vpop.f32.mrf.mxu0
      %v4754 = vadd.f32 %v4710, %v4753
      %v4755 = vand.u32 %v155, 4294901760
      %v4756 = vsub.f32 %v155, %v4755
      %v4757 = vand.u32 %v4756, 4294901760
      %4758 = vmatmul.f32.gmra.mxu0 %v4757
      %v4759 = vpop.f32.mrf.mxu0
      %v4760 = vadd.f32 %v4715, %v4759
      %4761 = vdwg.mxu0
      %v4762 = vand.u32 %v409, 4294901760
      %v4763 = vsub.f32 %v409, %v4762
      %v4764 = vand.u32 %v4763, 4294901760
      %4765 = vmatpush.msra.mxu0 %v4764
      %v4766 = vand.u32 %v401, 4294901760
      %v4767 = vsub.f32 %v401, %v4766
      %v4768 = vand.u32 %v4767, 4294901760
      %4769 = vmatpush.msra.mxu0 %v4768
      %v4770 = vand.u32 %v393, 4294901760
      %v4771 = vsub.f32 %v393, %v4770
      %v4772 = vand.u32 %v4771, 4294901760
      %4773 = vmatpush.msra.mxu0 %v4772
      %v4774 = vand.u32 %v385, 4294901760
      %v4775 = vsub.f32 %v385, %v4774
      %v4776 = vand.u32 %v4775, 4294901760
      %4777 = vmatpush.msra.mxu0 %v4776
      %v4778 = vand.u32 %v377, 4294901760
      %v4779 = vsub.f32 %v377, %v4778
      %v4780 = vand.u32 %v4779, 4294901760
      %4781 = vmatpush.msra.mxu0 %v4780
      %v4782 = vand.u32 %v369, 4294901760
      %v4783 = vsub.f32 %v369, %v4782
      %v4784 = vand.u32 %v4783, 4294901760
      %4785 = vmatpush.msra.mxu0 %v4784
      %v4786 = vand.u32 %v361, 4294901760
      %v4787 = vsub.f32 %v361, %v4786
      %v4788 = vand.u32 %v4787, 4294901760
      %4789 = vmatpush.msra.mxu0 %v4788
      %v4790 = vand.u32 %v353, 4294901760
      %v4791 = vsub.f32 %v353, %v4790
      %v4792 = vand.u32 %v4791, 4294901760
      %4793 = vmatpush.msra.mxu0 %v4792
      %v4794 = vand.u32 %v345, 4294901760
      %v4795 = vsub.f32 %v345, %v4794
      %v4796 = vand.u32 %v4795, 4294901760
      %4797 = vmatpush.msra.mxu0 %v4796
      %v4798 = vand.u32 %v337, 4294901760
      %v4799 = vsub.f32 %v337, %v4798
      %v4800 = vand.u32 %v4799, 4294901760
      %4801 = vmatpush.msra.mxu0 %v4800
      %v4802 = vand.u32 %v329, 4294901760
      %v4803 = vsub.f32 %v329, %v4802
      %v4804 = vand.u32 %v4803, 4294901760
      %4805 = vmatpush.msra.mxu0 %v4804
      %v4806 = vand.u32 %v321, 4294901760
      %v4807 = vsub.f32 %v321, %v4806
      %v4808 = vand.u32 %v4807, 4294901760
      %4809 = vmatpush.msra.mxu0 %v4808
      %v4810 = vand.u32 %v313, 4294901760
      %v4811 = vsub.f32 %v313, %v4810
      %v4812 = vand.u32 %v4811, 4294901760
      %4813 = vmatpush.msra.mxu0 %v4812
      %v4814 = vand.u32 %v305, 4294901760
      %v4815 = vsub.f32 %v305, %v4814
      %v4816 = vand.u32 %v4815, 4294901760
      %4817 = vmatpush.msra.mxu0 %v4816
      %v4818 = vand.u32 %v297, 4294901760
      %v4819 = vsub.f32 %v297, %v4818
      %v4820 = vand.u32 %v4819, 4294901760
      %4821 = vmatpush.msra.mxu0 %v4820
      %v4822 = vand.u32 %v289, 4294901760
      %v4823 = vsub.f32 %v289, %v4822
      %v4824 = vand.u32 %v4823, 4294901760
      %4825 = vmatpush.msra.mxu0 %v4824
      %v4826 = vand.u32 %v153, 4294901760
      %4827 = vmatmul.f32.gmra.mxu0 %v4826
      %v4828 = vpop.f32.mrf.mxu0
      %v4829 = vadd.f32 %v4754, %v4828
      %v4830 = vand.u32 %v155, 4294901760
      %4831 = vmatmul.f32.gmra.mxu0 %v4830
      %v4832 = vpop.f32.mrf.mxu0
      %v4833 = vadd.f32 %v4760, %v4832
      %4834 = vdwg.mxu0
      %v4835 = vand.u32 %v409, 4294901760
      %4836 = vmatpush.msra.mxu0 %v4835
      %v4837 = vand.u32 %v401, 4294901760
      %4838 = vmatpush.msra.mxu0 %v4837
      %v4839 = vand.u32 %v393, 4294901760
      %4840 = vmatpush.msra.mxu0 %v4839
      %v4841 = vand.u32 %v385, 4294901760
      %4842 = vmatpush.msra.mxu0 %v4841
      %v4843 = vand.u32 %v377, 4294901760
      %4844 = vmatpush.msra.mxu0 %v4843
      %v4845 = vand.u32 %v369, 4294901760
      %4846 = vmatpush.msra.mxu0 %v4845
      %v4847 = vand.u32 %v361, 4294901760
      %4848 = vmatpush.msra.mxu0 %v4847
      %v4849 = vand.u32 %v353, 4294901760
      %4850 = vmatpush.msra.mxu0 %v4849
      %v4851 = vand.u32 %v345, 4294901760
      %4852 = vmatpush.msra.mxu0 %v4851
      %v4853 = vand.u32 %v337, 4294901760
      %4854 = vmatpush.msra.mxu0 %v4853
      %v4855 = vand.u32 %v329, 4294901760
      %4856 = vmatpush.msra.mxu0 %v4855
      %v4857 = vand.u32 %v321, 4294901760
      %4858 = vmatpush.msra.mxu0 %v4857
      %v4859 = vand.u32 %v313, 4294901760
      %4860 = vmatpush.msra.mxu0 %v4859
      %v4861 = vand.u32 %v305, 4294901760
      %4862 = vmatpush.msra.mxu0 %v4861
      %v4863 = vand.u32 %v297, 4294901760
      %4864 = vmatpush.msra.mxu0 %v4863
      %v4865 = vand.u32 %v289, 4294901760
      %4866 = vmatpush.msra.mxu0 %v4865
      %v4867 = vand.u32 %v153, 4294901760
      %4868 = vmatmul.f32.gmra.mxu0 %v4867
      %v4869 = vpop.f32.mrf.mxu0
      %v4870 = vadd.f32 %v4829, %v4869
      %v4871 = vand.u32 %v155, 4294901760
      %4872 = vmatmul.f32.gmra.mxu0 %v4871
      %v4873 = vpop.f32.mrf.mxu0
      %v4874 = vadd.f32 %v4833, %v4873
      %4875 = vdwg.mxu0
      %v4876 = vand.u32 %v282, 4294901760
      %4877 = vmatpush.msra.mxu0 %v4876
      %v4878 = vand.u32 %v274, 4294901760
      %4879 = vmatpush.msra.mxu0 %v4878
      %v4880 = vand.u32 %v266, 4294901760
      %4881 = vmatpush.msra.mxu0 %v4880
      %v4882 = vand.u32 %v258, 4294901760
      %4883 = vmatpush.msra.mxu0 %v4882
      %v4884 = vand.u32 %v250, 4294901760
      %4885 = vmatpush.msra.mxu0 %v4884
      %v4886 = vand.u32 %v242, 4294901760
      %4887 = vmatpush.msra.mxu0 %v4886
      %v4888 = vand.u32 %v234, 4294901760
      %4889 = vmatpush.msra.mxu0 %v4888
      %v4890 = vand.u32 %v226, 4294901760
      %4891 = vmatpush.msra.mxu0 %v4890
      %v4892 = vand.u32 %v218, 4294901760
      %4893 = vmatpush.msra.mxu0 %v4892
      %v4894 = vand.u32 %v210, 4294901760
      %4895 = vmatpush.msra.mxu0 %v4894
      %v4896 = vand.u32 %v202, 4294901760
      %4897 = vmatpush.msra.mxu0 %v4896
      %v4898 = vand.u32 %v194, 4294901760
      %4899 = vmatpush.msra.mxu0 %v4898
      %v4900 = vand.u32 %v186, 4294901760
      %4901 = vmatpush.msra.mxu0 %v4900
      %v4902 = vand.u32 %v178, 4294901760
      %4903 = vmatpush.msra.mxu0 %v4902
      %v4904 = vand.u32 %v170, 4294901760
      %4905 = vmatpush.msra.mxu0 %v4904
      %v4906 = vand.u32 %v162, 4294901760
      %4907 = vmatpush.msra.mxu0 %v4906
      %v4908 = vand.u32 %v152, 4294901760
      %v4909 = vsub.f32 %v152, %v4908
      %v4910 = vand.u32 %v4909, 4294901760
      %v4911 = vsub.f32 %v4909, %v4910
      %v4912 = vand.u32 %v4911, 4294901760
      %4913 = vmatmul.f32.gmra.mxu0 %v4912
      %v4914 = vpop.f32.mrf.mxu0
      %v4915 = vadd.f32 0.0, %v4914
      %v4916 = vand.u32 %v154, 4294901760
      %v4917 = vsub.f32 %v154, %v4916
      %v4918 = vand.u32 %v4917, 4294901760
      %v4919 = vsub.f32 %v4917, %v4918
      %v4920 = vand.u32 %v4919, 4294901760
      %4921 = vmatmul.f32.gmra.mxu0 %v4920
      %v4922 = vpop.f32.mrf.mxu0
      %v4923 = vadd.f32 0.0, %v4922
      %4924 = vdwg.mxu0
      %v4925 = vand.u32 %v282, 4294901760
      %v4926 = vsub.f32 %v282, %v4925
      %v4927 = vand.u32 %v4926, 4294901760
      %v4928 = vsub.f32 %v4926, %v4927
      %v4929 = vand.u32 %v4928, 4294901760
      %4930 = vmatpush.msra.mxu0 %v4929
      %v4931 = vand.u32 %v274, 4294901760
      %v4932 = vsub.f32 %v274, %v4931
      %v4933 = vand.u32 %v4932, 4294901760
      %v4934 = vsub.f32 %v4932, %v4933
      %v4935 = vand.u32 %v4934, 4294901760
      %4936 = vmatpush.msra.mxu0 %v4935
      %v4937 = vand.u32 %v266, 4294901760
      %v4938 = vsub.f32 %v266, %v4937
      %v4939 = vand.u32 %v4938, 4294901760
      %v4940 = vsub.f32 %v4938, %v4939
      %v4941 = vand.u32 %v4940, 4294901760
      %4942 = vmatpush.msra.mxu0 %v4941
      %v4943 = vand.u32 %v258, 4294901760
      %v4944 = vsub.f32 %v258, %v4943
      %v4945 = vand.u32 %v4944, 4294901760
      %v4946 = vsub.f32 %v4944, %v4945
      %v4947 = vand.u32 %v4946, 4294901760
      %4948 = vmatpush.msra.mxu0 %v4947
      %v4949 = vand.u32 %v250, 4294901760
      %v4950 = vsub.f32 %v250, %v4949
      %v4951 = vand.u32 %v4950, 4294901760
      %v4952 = vsub.f32 %v4950, %v4951
      %v4953 = vand.u32 %v4952, 4294901760
      %4954 = vmatpush.msra.mxu0 %v4953
      %v4955 = vand.u32 %v242, 4294901760
      %v4956 = vsub.f32 %v242, %v4955
      %v4957 = vand.u32 %v4956, 4294901760
      %v4958 = vsub.f32 %v4956, %v4957
      %v4959 = vand.u32 %v4958, 4294901760
      %4960 = vmatpush.msra.mxu0 %v4959
      %v4961 = vand.u32 %v234, 4294901760
      %v4962 = vsub.f32 %v234, %v4961
      %v4963 = vand.u32 %v4962, 4294901760
      %v4964 = vsub.f32 %v4962, %v4963
      %v4965 = vand.u32 %v4964, 4294901760
      %4966 = vmatpush.msra.mxu0 %v4965
      %v4967 = vand.u32 %v226, 4294901760
      %v4968 = vsub.f32 %v226, %v4967
      %v4969 = vand.u32 %v4968, 4294901760
      %v4970 = vsub.f32 %v4968, %v4969
      %v4971 = vand.u32 %v4970, 4294901760
      %4972 = vmatpush.msra.mxu0 %v4971
      %v4973 = vand.u32 %v218, 4294901760
      %v4974 = vsub.f32 %v218, %v4973
      %v4975 = vand.u32 %v4974, 4294901760
      %v4976 = vsub.f32 %v4974, %v4975
      %v4977 = vand.u32 %v4976, 4294901760
      %4978 = vmatpush.msra.mxu0 %v4977
      %v4979 = vand.u32 %v210, 4294901760
      %v4980 = vsub.f32 %v210, %v4979
      %v4981 = vand.u32 %v4980, 4294901760
      %v4982 = vsub.f32 %v4980, %v4981
      %v4983 = vand.u32 %v4982, 4294901760
      %4984 = vmatpush.msra.mxu0 %v4983
      %v4985 = vand.u32 %v202, 4294901760
      %v4986 = vsub.f32 %v202, %v4985
      %v4987 = vand.u32 %v4986, 4294901760
      %v4988 = vsub.f32 %v4986, %v4987
      %v4989 = vand.u32 %v4988, 4294901760
      %4990 = vmatpush.msra.mxu0 %v4989
      %v4991 = vand.u32 %v194, 4294901760
      %v4992 = vsub.f32 %v194, %v4991
      %v4993 = vand.u32 %v4992, 4294901760
      %v4994 = vsub.f32 %v4992, %v4993
      %v4995 = vand.u32 %v4994, 4294901760
      %4996 = vmatpush.msra.mxu0 %v4995
      %v4997 = vand.u32 %v186, 4294901760
      %v4998 = vsub.f32 %v186, %v4997
      %v4999 = vand.u32 %v4998, 4294901760
      %v5000 = vsub.f32 %v4998, %v4999
      %v5001 = vand.u32 %v5000, 4294901760
      %5002 = vmatpush.msra.mxu0 %v5001
      %v5003 = vand.u32 %v178, 4294901760
      %v5004 = vsub.f32 %v178, %v5003
      %v5005 = vand.u32 %v5004, 4294901760
      %v5006 = vsub.f32 %v5004, %v5005
      %v5007 = vand.u32 %v5006, 4294901760
      %5008 = vmatpush.msra.mxu0 %v5007
      %v5009 = vand.u32 %v170, 4294901760
      %v5010 = vsub.f32 %v170, %v5009
      %v5011 = vand.u32 %v5010, 4294901760
      %v5012 = vsub.f32 %v5010, %v5011
      %v5013 = vand.u32 %v5012, 4294901760
      %5014 = vmatpush.msra.mxu0 %v5013
      %v5015 = vand.u32 %v162, 4294901760
      %v5016 = vsub.f32 %v162, %v5015
      %v5017 = vand.u32 %v5016, 4294901760
      %v5018 = vsub.f32 %v5016, %v5017
      %v5019 = vand.u32 %v5018, 4294901760
      %5020 = vmatpush.msra.mxu0 %v5019
      %v5021 = vand.u32 %v152, 4294901760
      %5022 = vmatmul.f32.gmra.mxu0 %v5021
      %v5023 = vpop.f32.mrf.mxu0
      %v5024 = vadd.f32 %v4915, %v5023
      %v5025 = vand.u32 %v154, 4294901760
      %5026 = vmatmul.f32.gmra.mxu0 %v5025
      %v5027 = vpop.f32.mrf.mxu0
      %v5028 = vadd.f32 %v4923, %v5027
      %5029 = vdwg.mxu0
      %v5030 = vand.u32 %v282, 4294901760
      %v5031 = vsub.f32 %v282, %v5030
      %5032 = vmatpush.msra.mxu0 %v5031
      %v5033 = vand.u32 %v274, 4294901760
      %v5034 = vsub.f32 %v274, %v5033
      %5035 = vmatpush.msra.mxu0 %v5034
      %v5036 = vand.u32 %v266, 4294901760
      %v5037 = vsub.f32 %v266, %v5036
      %5038 = vmatpush.msra.mxu0 %v5037
      %v5039 = vand.u32 %v258, 4294901760
      %v5040 = vsub.f32 %v258, %v5039
      %5041 = vmatpush.msra.mxu0 %v5040
      %v5042 = vand.u32 %v250, 4294901760
      %v5043 = vsub.f32 %v250, %v5042
      %5044 = vmatpush.msra.mxu0 %v5043
      %v5045 = vand.u32 %v242, 4294901760
      %v5046 = vsub.f32 %v242, %v5045
      %5047 = vmatpush.msra.mxu0 %v5046
      %v5048 = vand.u32 %v234, 4294901760
      %v5049 = vsub.f32 %v234, %v5048
      %5050 = vmatpush.msra.mxu0 %v5049
      %v5051 = vand.u32 %v226, 4294901760
      %v5052 = vsub.f32 %v226, %v5051
      %5053 = vmatpush.msra.mxu0 %v5052
      %v5054 = vand.u32 %v218, 4294901760
      %v5055 = vsub.f32 %v218, %v5054
      %5056 = vmatpush.msra.mxu0 %v5055
      %v5057 = vand.u32 %v210, 4294901760
      %v5058 = vsub.f32 %v210, %v5057
      %5059 = vmatpush.msra.mxu0 %v5058
      %v5060 = vand.u32 %v202, 4294901760
      %v5061 = vsub.f32 %v202, %v5060
      %5062 = vmatpush.msra.mxu0 %v5061
      %v5063 = vand.u32 %v194, 4294901760
      %v5064 = vsub.f32 %v194, %v5063
      %5065 = vmatpush.msra.mxu0 %v5064
      %v5066 = vand.u32 %v186, 4294901760
      %v5067 = vsub.f32 %v186, %v5066
      %5068 = vmatpush.msra.mxu0 %v5067
      %v5069 = vand.u32 %v178, 4294901760
      %v5070 = vsub.f32 %v178, %v5069
      %5071 = vmatpush.msra.mxu0 %v5070
      %v5072 = vand.u32 %v170, 4294901760
      %v5073 = vsub.f32 %v170, %v5072
      %5074 = vmatpush.msra.mxu0 %v5073
      %v5075 = vand.u32 %v162, 4294901760
      %v5076 = vsub.f32 %v162, %v5075
      %5077 = vmatpush.msra.mxu0 %v5076
      %v5078 = vand.u32 %v152, 4294901760
      %v5079 = vsub.f32 %v152, %v5078
      %5080 = vmatmul.f32.gmra.mxu0 %v5079
      %v5081 = vpop.f32.mrf.mxu0
      %v5082 = vadd.f32 %v5024, %v5081
      %v5083 = vand.u32 %v154, 4294901760
      %v5084 = vsub.f32 %v154, %v5083
      %5085 = vmatmul.f32.gmra.mxu0 %v5084
      %v5086 = vpop.f32.mrf.mxu0
      %v5087 = vadd.f32 %v5028, %v5086
      %5088 = vdwg.mxu0
      %v5089 = vand.u32 %v282, 4294901760
      %5090 = vmatpush.msra.mxu0 %v5089
      %v5091 = vand.u32 %v274, 4294901760
      %5092 = vmatpush.msra.mxu0 %v5091
      %v5093 = vand.u32 %v266, 4294901760
      %5094 = vmatpush.msra.mxu0 %v5093
      %v5095 = vand.u32 %v258, 4294901760
      %5096 = vmatpush.msra.mxu0 %v5095
      %v5097 = vand.u32 %v250, 4294901760
      %5098 = vmatpush.msra.mxu0 %v5097
      %v5099 = vand.u32 %v242, 4294901760
      %5100 = vmatpush.msra.mxu0 %v5099
      %v5101 = vand.u32 %v234, 4294901760
      %5102 = vmatpush.msra.mxu0 %v5101
      %v5103 = vand.u32 %v226, 4294901760
      %5104 = vmatpush.msra.mxu0 %v5103
      %v5105 = vand.u32 %v218, 4294901760
      %5106 = vmatpush.msra.mxu0 %v5105
      %v5107 = vand.u32 %v210, 4294901760
      %5108 = vmatpush.msra.mxu0 %v5107
      %v5109 = vand.u32 %v202, 4294901760
      %5110 = vmatpush.msra.mxu0 %v5109
      %v5111 = vand.u32 %v194, 4294901760
      %5112 = vmatpush.msra.mxu0 %v5111
      %v5113 = vand.u32 %v186, 4294901760
      %5114 = vmatpush.msra.mxu0 %v5113
      %v5115 = vand.u32 %v178, 4294901760
      %5116 = vmatpush.msra.mxu0 %v5115
      %v5117 = vand.u32 %v170, 4294901760
      %5118 = vmatpush.msra.mxu0 %v5117
      %v5119 = vand.u32 %v162, 4294901760
      %5120 = vmatpush.msra.mxu0 %v5119
      %v5121 = vand.u32 %v152, 4294901760
      %v5122 = vsub.f32 %v152, %v5121
      %v5123 = vand.u32 %v5122, 4294901760
      %5124 = vmatmul.f32.gmra.mxu0 %v5123
      %v5125 = vpop.f32.mrf.mxu0
      %v5126 = vadd.f32 %v5082, %v5125
      %v5127 = vand.u32 %v154, 4294901760
      %v5128 = vsub.f32 %v154, %v5127
      %v5129 = vand.u32 %v5128, 4294901760
      %5130 = vmatmul.f32.gmra.mxu0 %v5129
      %v5131 = vpop.f32.mrf.mxu0
      %v5132 = vadd.f32 %v5087, %v5131
      %5133 = vdwg.mxu0
      %v5134 = vand.u32 %v282, 4294901760
      %v5135 = vsub.f32 %v282, %v5134
      %v5136 = vand.u32 %v5135, 4294901760
      %5137 = vmatpush.msra.mxu0 %v5136
      %v5138 = vand.u32 %v274, 4294901760
      %v5139 = vsub.f32 %v274, %v5138
      %v5140 = vand.u32 %v5139, 4294901760
      %5141 = vmatpush.msra.mxu0 %v5140
      %v5142 = vand.u32 %v266, 4294901760
      %v5143 = vsub.f32 %v266, %v5142
      %v5144 = vand.u32 %v5143, 4294901760
      %5145 = vmatpush.msra.mxu0 %v5144
      %v5146 = vand.u32 %v258, 4294901760
      %v5147 = vsub.f32 %v258, %v5146
      %v5148 = vand.u32 %v5147, 4294901760
      %5149 = vmatpush.msra.mxu0 %v5148
      %v5150 = vand.u32 %v250, 4294901760
      %v5151 = vsub.f32 %v250, %v5150
      %v5152 = vand.u32 %v5151, 4294901760
      %5153 = vmatpush.msra.mxu0 %v5152
      %v5154 = vand.u32 %v242, 4294901760
      %v5155 = vsub.f32 %v242, %v5154
      %v5156 = vand.u32 %v5155, 4294901760
      %5157 = vmatpush.msra.mxu0 %v5156
      %v5158 = vand.u32 %v234, 4294901760
      %v5159 = vsub.f32 %v234, %v5158
      %v5160 = vand.u32 %v5159, 4294901760
      %5161 = vmatpush.msra.mxu0 %v5160
      %v5162 = vand.u32 %v226, 4294901760
      %v5163 = vsub.f32 %v226, %v5162
      %v5164 = vand.u32 %v5163, 4294901760
      %5165 = vmatpush.msra.mxu0 %v5164
      %v5166 = vand.u32 %v218, 4294901760
      %v5167 = vsub.f32 %v218, %v5166
      %v5168 = vand.u32 %v5167, 4294901760
      %5169 = vmatpush.msra.mxu0 %v5168
      %v5170 = vand.u32 %v210, 4294901760
      %v5171 = vsub.f32 %v210, %v5170
      %v5172 = vand.u32 %v5171, 4294901760
      %5173 = vmatpush.msra.mxu0 %v5172
      %v5174 = vand.u32 %v202, 4294901760
      %v5175 = vsub.f32 %v202, %v5174
      %v5176 = vand.u32 %v5175, 4294901760
      %5177 = vmatpush.msra.mxu0 %v5176
      %v5178 = vand.u32 %v194, 4294901760
      %v5179 = vsub.f32 %v194, %v5178
      %v5180 = vand.u32 %v5179, 4294901760
      %5181 = vmatpush.msra.mxu0 %v5180
      %v5182 = vand.u32 %v186, 4294901760
      %v5183 = vsub.f32 %v186, %v5182
      %v5184 = vand.u32 %v5183, 4294901760
      %5185 = vmatpush.msra.mxu0 %v5184
      %v5186 = vand.u32 %v178, 4294901760
      %v5187 = vsub.f32 %v178, %v5186
      %v5188 = vand.u32 %v5187, 4294901760
      %5189 = vmatpush.msra.mxu0 %v5188
      %v5190 = vand.u32 %v170, 4294901760
      %v5191 = vsub.f32 %v170, %v5190
      %v5192 = vand.u32 %v5191, 4294901760
      %5193 = vmatpush.msra.mxu0 %v5192
      %v5194 = vand.u32 %v162, 4294901760
      %v5195 = vsub.f32 %v162, %v5194
      %v5196 = vand.u32 %v5195, 4294901760
      %5197 = vmatpush.msra.mxu0 %v5196
      %v5198 = vand.u32 %v152, 4294901760
      %5199 = vmatmul.f32.gmra.mxu0 %v5198
      %v5200 = vpop.f32.mrf.mxu0
      %v5201 = vadd.f32 %v5126, %v5200
      %v5202 = vand.u32 %v154, 4294901760
      %5203 = vmatmul.f32.gmra.mxu0 %v5202
      %v5204 = vpop.f32.mrf.mxu0
      %v5205 = vadd.f32 %v5132, %v5204
      %5206 = vdwg.mxu0
      %v5207 = vand.u32 %v282, 4294901760
      %5208 = vmatpush.msra.mxu0 %v5207
      %v5209 = vand.u32 %v274, 4294901760
      %5210 = vmatpush.msra.mxu0 %v5209
      %v5211 = vand.u32 %v266, 4294901760
      %5212 = vmatpush.msra.mxu0 %v5211
      %v5213 = vand.u32 %v258, 4294901760
      %5214 = vmatpush.msra.mxu0 %v5213
      %v5215 = vand.u32 %v250, 4294901760
      %5216 = vmatpush.msra.mxu0 %v5215
      %v5217 = vand.u32 %v242, 4294901760
      %5218 = vmatpush.msra.mxu0 %v5217
      %v5219 = vand.u32 %v234, 4294901760
      %5220 = vmatpush.msra.mxu0 %v5219
      %v5221 = vand.u32 %v226, 4294901760
      %5222 = vmatpush.msra.mxu0 %v5221
      %v5223 = vand.u32 %v218, 4294901760
      %5224 = vmatpush.msra.mxu0 %v5223
      %v5225 = vand.u32 %v210, 4294901760
      %5226 = vmatpush.msra.mxu0 %v5225
      %v5227 = vand.u32 %v202, 4294901760
      %5228 = vmatpush.msra.mxu0 %v5227
      %v5229 = vand.u32 %v194, 4294901760
      %5230 = vmatpush.msra.mxu0 %v5229
      %v5231 = vand.u32 %v186, 4294901760
      %5232 = vmatpush.msra.mxu0 %v5231
      %v5233 = vand.u32 %v178, 4294901760
      %5234 = vmatpush.msra.mxu0 %v5233
      %v5235 = vand.u32 %v170, 4294901760
      %5236 = vmatpush.msra.mxu0 %v5235
      %v5237 = vand.u32 %v162, 4294901760
      %5238 = vmatpush.msra.mxu0 %v5237
      %v5239 = vand.u32 %v152, 4294901760
      %5240 = vmatmul.f32.gmra.mxu0 %v5239
      %v5241 = vpop.f32.mrf.mxu0
      %v5242 = vadd.f32 %v5201, %v5241
      %v5243 = vand.u32 %v154, 4294901760
      %5244 = vmatmul.f32.gmra.mxu0 %v5243
      %v5245 = vpop.f32.mrf.mxu0
      %v5246 = vadd.f32 %v5205, %v5245
      %5247 = vdwg.mxu0
      %v5248 = vand.u32 %v410, 4294901760
      %5249 = vmatpush.msra.mxu0 %v5248
      %v5250 = vand.u32 %v402, 4294901760
      %5251 = vmatpush.msra.mxu0 %v5250
      %v5252 = vand.u32 %v394, 4294901760
      %5253 = vmatpush.msra.mxu0 %v5252
      %v5254 = vand.u32 %v386, 4294901760
      %5255 = vmatpush.msra.mxu0 %v5254
      %v5256 = vand.u32 %v378, 4294901760
      %5257 = vmatpush.msra.mxu0 %v5256
      %v5258 = vand.u32 %v370, 4294901760
      %5259 = vmatpush.msra.mxu0 %v5258
      %v5260 = vand.u32 %v362, 4294901760
      %5261 = vmatpush.msra.mxu0 %v5260
      %v5262 = vand.u32 %v354, 4294901760
      %5263 = vmatpush.msra.mxu0 %v5262
      %v5264 = vand.u32 %v346, 4294901760
      %5265 = vmatpush.msra.mxu0 %v5264
      %v5266 = vand.u32 %v338, 4294901760
      %5267 = vmatpush.msra.mxu0 %v5266
      %v5268 = vand.u32 %v330, 4294901760
      %5269 = vmatpush.msra.mxu0 %v5268
      %v5270 = vand.u32 %v322, 4294901760
      %5271 = vmatpush.msra.mxu0 %v5270
      %v5272 = vand.u32 %v314, 4294901760
      %5273 = vmatpush.msra.mxu0 %v5272
      %v5274 = vand.u32 %v306, 4294901760
      %5275 = vmatpush.msra.mxu0 %v5274
      %v5276 = vand.u32 %v298, 4294901760
      %5277 = vmatpush.msra.mxu0 %v5276
      %v5278 = vand.u32 %v290, 4294901760
      %5279 = vmatpush.msra.mxu0 %v5278
      %v5280 = vand.u32 %v153, 4294901760
      %v5281 = vsub.f32 %v153, %v5280
      %v5282 = vand.u32 %v5281, 4294901760
      %v5283 = vsub.f32 %v5281, %v5282
      %v5284 = vand.u32 %v5283, 4294901760
      %5285 = vmatmul.f32.gmra.mxu0 %v5284
      %v5286 = vpop.f32.mrf.mxu0
      %v5287 = vadd.f32 %v5242, %v5286
      %v5288 = vand.u32 %v155, 4294901760
      %v5289 = vsub.f32 %v155, %v5288
      %v5290 = vand.u32 %v5289, 4294901760
      %v5291 = vsub.f32 %v5289, %v5290
      %v5292 = vand.u32 %v5291, 4294901760
      %5293 = vmatmul.f32.gmra.mxu0 %v5292
      %v5294 = vpop.f32.mrf.mxu0
      %v5295 = vadd.f32 %v5246, %v5294
      %5296 = vdwg.mxu0
      %v5297 = vand.u32 %v410, 4294901760
      %v5298 = vsub.f32 %v410, %v5297
      %v5299 = vand.u32 %v5298, 4294901760
      %v5300 = vsub.f32 %v5298, %v5299
      %v5301 = vand.u32 %v5300, 4294901760
      %5302 = vmatpush.msra.mxu0 %v5301
      %v5303 = vand.u32 %v402, 4294901760
      %v5304 = vsub.f32 %v402, %v5303
      %v5305 = vand.u32 %v5304, 4294901760
      %v5306 = vsub.f32 %v5304, %v5305
      %v5307 = vand.u32 %v5306, 4294901760
      %5308 = vmatpush.msra.mxu0 %v5307
      %v5309 = vand.u32 %v394, 4294901760
      %v5310 = vsub.f32 %v394, %v5309
      %v5311 = vand.u32 %v5310, 4294901760
      %v5312 = vsub.f32 %v5310, %v5311
      %v5313 = vand.u32 %v5312, 4294901760
      %5314 = vmatpush.msra.mxu0 %v5313
      %v5315 = vand.u32 %v386, 4294901760
      %v5316 = vsub.f32 %v386, %v5315
      %v5317 = vand.u32 %v5316, 4294901760
      %v5318 = vsub.f32 %v5316, %v5317
      %v5319 = vand.u32 %v5318, 4294901760
      %5320 = vmatpush.msra.mxu0 %v5319
      %v5321 = vand.u32 %v378, 4294901760
      %v5322 = vsub.f32 %v378, %v5321
      %v5323 = vand.u32 %v5322, 4294901760
      %v5324 = vsub.f32 %v5322, %v5323
      %v5325 = vand.u32 %v5324, 4294901760
      %5326 = vmatpush.msra.mxu0 %v5325
      %v5327 = vand.u32 %v370, 4294901760
      %v5328 = vsub.f32 %v370, %v5327
      %v5329 = vand.u32 %v5328, 4294901760
      %v5330 = vsub.f32 %v5328, %v5329
      %v5331 = vand.u32 %v5330, 4294901760
      %5332 = vmatpush.msra.mxu0 %v5331
      %v5333 = vand.u32 %v362, 4294901760
      %v5334 = vsub.f32 %v362, %v5333
      %v5335 = vand.u32 %v5334, 4294901760
      %v5336 = vsub.f32 %v5334, %v5335
      %v5337 = vand.u32 %v5336, 4294901760
      %5338 = vmatpush.msra.mxu0 %v5337
      %v5339 = vand.u32 %v354, 4294901760
      %v5340 = vsub.f32 %v354, %v5339
      %v5341 = vand.u32 %v5340, 4294901760
      %v5342 = vsub.f32 %v5340, %v5341
      %v5343 = vand.u32 %v5342, 4294901760
      %5344 = vmatpush.msra.mxu0 %v5343
      %v5345 = vand.u32 %v346, 4294901760
      %v5346 = vsub.f32 %v346, %v5345
      %v5347 = vand.u32 %v5346, 4294901760
      %v5348 = vsub.f32 %v5346, %v5347
      %v5349 = vand.u32 %v5348, 4294901760
      %5350 = vmatpush.msra.mxu0 %v5349
      %v5351 = vand.u32 %v338, 4294901760
      %v5352 = vsub.f32 %v338, %v5351
      %v5353 = vand.u32 %v5352, 4294901760
      %v5354 = vsub.f32 %v5352, %v5353
      %v5355 = vand.u32 %v5354, 4294901760
      %5356 = vmatpush.msra.mxu0 %v5355
      %v5357 = vand.u32 %v330, 4294901760
      %v5358 = vsub.f32 %v330, %v5357
      %v5359 = vand.u32 %v5358, 4294901760
      %v5360 = vsub.f32 %v5358, %v5359
      %v5361 = vand.u32 %v5360, 4294901760
      %5362 = vmatpush.msra.mxu0 %v5361
      %v5363 = vand.u32 %v322, 4294901760
      %v5364 = vsub.f32 %v322, %v5363
      %v5365 = vand.u32 %v5364, 4294901760
      %v5366 = vsub.f32 %v5364, %v5365
      %v5367 = vand.u32 %v5366, 4294901760
      %5368 = vmatpush.msra.mxu0 %v5367
      %v5369 = vand.u32 %v314, 4294901760
      %v5370 = vsub.f32 %v314, %v5369
      %v5371 = vand.u32 %v5370, 4294901760
      %v5372 = vsub.f32 %v5370, %v5371
      %v5373 = vand.u32 %v5372, 4294901760
      %5374 = vmatpush.msra.mxu0 %v5373
      %v5375 = vand.u32 %v306, 4294901760
      %v5376 = vsub.f32 %v306, %v5375
      %v5377 = vand.u32 %v5376, 4294901760
      %v5378 = vsub.f32 %v5376, %v5377
      %v5379 = vand.u32 %v5378, 4294901760
      %5380 = vmatpush.msra.mxu0 %v5379
      %v5381 = vand.u32 %v298, 4294901760
      %v5382 = vsub.f32 %v298, %v5381
      %v5383 = vand.u32 %v5382, 4294901760
      %v5384 = vsub.f32 %v5382, %v5383
      %v5385 = vand.u32 %v5384, 4294901760
      %5386 = vmatpush.msra.mxu0 %v5385
      %v5387 = vand.u32 %v290, 4294901760
      %v5388 = vsub.f32 %v290, %v5387
      %v5389 = vand.u32 %v5388, 4294901760
      %v5390 = vsub.f32 %v5388, %v5389
      %v5391 = vand.u32 %v5390, 4294901760
      %5392 = vmatpush.msra.mxu0 %v5391
      %v5393 = vand.u32 %v153, 4294901760
      %5394 = vmatmul.f32.gmra.mxu0 %v5393
      %v5395 = vpop.f32.mrf.mxu0
      %v5396 = vadd.f32 %v5287, %v5395
      %v5397 = vand.u32 %v155, 4294901760
      %5398 = vmatmul.f32.gmra.mxu0 %v5397
      %v5399 = vpop.f32.mrf.mxu0
      %v5400 = vadd.f32 %v5295, %v5399
      %5401 = vdwg.mxu0
      %v5402 = vand.u32 %v410, 4294901760
      %v5403 = vsub.f32 %v410, %v5402
      %5404 = vmatpush.msra.mxu0 %v5403
      %v5405 = vand.u32 %v402, 4294901760
      %v5406 = vsub.f32 %v402, %v5405
      %5407 = vmatpush.msra.mxu0 %v5406
      %v5408 = vand.u32 %v394, 4294901760
      %v5409 = vsub.f32 %v394, %v5408
      %5410 = vmatpush.msra.mxu0 %v5409
      %v5411 = vand.u32 %v386, 4294901760
      %v5412 = vsub.f32 %v386, %v5411
      %5413 = vmatpush.msra.mxu0 %v5412
      %v5414 = vand.u32 %v378, 4294901760
      %v5415 = vsub.f32 %v378, %v5414
      %5416 = vmatpush.msra.mxu0 %v5415
      %v5417 = vand.u32 %v370, 4294901760
      %v5418 = vsub.f32 %v370, %v5417
      %5419 = vmatpush.msra.mxu0 %v5418
      %v5420 = vand.u32 %v362, 4294901760
      %v5421 = vsub.f32 %v362, %v5420
      %5422 = vmatpush.msra.mxu0 %v5421
      %v5423 = vand.u32 %v354, 4294901760
      %v5424 = vsub.f32 %v354, %v5423
      %5425 = vmatpush.msra.mxu0 %v5424
      %v5426 = vand.u32 %v346, 4294901760
      %v5427 = vsub.f32 %v346, %v5426
      %5428 = vmatpush.msra.mxu0 %v5427
      %v5429 = vand.u32 %v338, 4294901760
      %v5430 = vsub.f32 %v338, %v5429
      %5431 = vmatpush.msra.mxu0 %v5430
      %v5432 = vand.u32 %v330, 4294901760
      %v5433 = vsub.f32 %v330, %v5432
      %5434 = vmatpush.msra.mxu0 %v5433
      %v5435 = vand.u32 %v322, 4294901760
      %v5436 = vsub.f32 %v322, %v5435
      %5437 = vmatpush.msra.mxu0 %v5436
      %v5438 = vand.u32 %v314, 4294901760
      %v5439 = vsub.f32 %v314, %v5438
      %5440 = vmatpush.msra.mxu0 %v5439
      %v5441 = vand.u32 %v306, 4294901760
      %v5442 = vsub.f32 %v306, %v5441
      %5443 = vmatpush.msra.mxu0 %v5442
      %v5444 = vand.u32 %v298, 4294901760
      %v5445 = vsub.f32 %v298, %v5444
      %5446 = vmatpush.msra.mxu0 %v5445
      %v5447 = vand.u32 %v290, 4294901760
      %v5448 = vsub.f32 %v290, %v5447
      %5449 = vmatpush.msra.mxu0 %v5448
      %v5450 = vand.u32 %v153, 4294901760
      %v5451 = vsub.f32 %v153, %v5450
      %5452 = vmatmul.f32.gmra.mxu0 %v5451
      %v5453 = vpop.f32.mrf.mxu0
      %v5454 = vadd.f32 %v5396, %v5453
      %v5455 = vand.u32 %v155, 4294901760
      %v5456 = vsub.f32 %v155, %v5455
      %5457 = vmatmul.f32.gmra.mxu0 %v5456
      %v5458 = vpop.f32.mrf.mxu0
      %v5459 = vadd.f32 %v5400, %v5458
      %5460 = vdwg.mxu0
      %v5461 = vand.u32 %v410, 4294901760
      %5462 = vmatpush.msra.mxu0 %v5461
      %v5463 = vand.u32 %v402, 4294901760
      %5464 = vmatpush.msra.mxu0 %v5463
      %v5465 = vand.u32 %v394, 4294901760
      %5466 = vmatpush.msra.mxu0 %v5465
      %v5467 = vand.u32 %v386, 4294901760
      %5468 = vmatpush.msra.mxu0 %v5467
      %v5469 = vand.u32 %v378, 4294901760
      %5470 = vmatpush.msra.mxu0 %v5469
      %v5471 = vand.u32 %v370, 4294901760
      %5472 = vmatpush.msra.mxu0 %v5471
      %v5473 = vand.u32 %v362, 4294901760
      %5474 = vmatpush.msra.mxu0 %v5473
      %v5475 = vand.u32 %v354, 4294901760
      %5476 = vmatpush.msra.mxu0 %v5475
      %v5477 = vand.u32 %v346, 4294901760
      %5478 = vmatpush.msra.mxu0 %v5477
      %v5479 = vand.u32 %v338, 4294901760
      %5480 = vmatpush.msra.mxu0 %v5479
      %v5481 = vand.u32 %v330, 4294901760
      %5482 = vmatpush.msra.mxu0 %v5481
      %v5483 = vand.u32 %v322, 4294901760
      %5484 = vmatpush.msra.mxu0 %v5483
      %v5485 = vand.u32 %v314, 4294901760
      %5486 = vmatpush.msra.mxu0 %v5485
      %v5487 = vand.u32 %v306, 4294901760
      %5488 = vmatpush.msra.mxu0 %v5487
      %v5489 = vand.u32 %v298, 4294901760
      %5490 = vmatpush.msra.mxu0 %v5489
      %v5491 = vand.u32 %v290, 4294901760
      %5492 = vmatpush.msra.mxu0 %v5491
      %v5493 = vand.u32 %v153, 4294901760
      %v5494 = vsub.f32 %v153, %v5493
      %v5495 = vand.u32 %v5494, 4294901760
      %5496 = vmatmul.f32.gmra.mxu0 %v5495
      %v5497 = vpop.f32.mrf.mxu0
      %v5498 = vadd.f32 %v5454, %v5497
      %v5499 = vand.u32 %v155, 4294901760
      %v5500 = vsub.f32 %v155, %v5499
      %v5501 = vand.u32 %v5500, 4294901760
      %5502 = vmatmul.f32.gmra.mxu0 %v5501
      %v5503 = vpop.f32.mrf.mxu0
      %v5504 = vadd.f32 %v5459, %v5503
      %5505 = vdwg.mxu0
      %v5506 = vand.u32 %v410, 4294901760
      %v5507 = vsub.f32 %v410, %v5506
      %v5508 = vand.u32 %v5507, 4294901760
      %5509 = vmatpush.msra.mxu0 %v5508
      %v5510 = vand.u32 %v402, 4294901760
      %v5511 = vsub.f32 %v402, %v5510
      %v5512 = vand.u32 %v5511, 4294901760
      %5513 = vmatpush.msra.mxu0 %v5512
      %v5514 = vand.u32 %v394, 4294901760
      %v5515 = vsub.f32 %v394, %v5514
      %v5516 = vand.u32 %v5515, 4294901760
      %5517 = vmatpush.msra.mxu0 %v5516
      %v5518 = vand.u32 %v386, 4294901760
      %v5519 = vsub.f32 %v386, %v5518
      %v5520 = vand.u32 %v5519, 4294901760
      %5521 = vmatpush.msra.mxu0 %v5520
      %v5522 = vand.u32 %v378, 4294901760
      %v5523 = vsub.f32 %v378, %v5522
      %v5524 = vand.u32 %v5523, 4294901760
      %5525 = vmatpush.msra.mxu0 %v5524
      %v5526 = vand.u32 %v370, 4294901760
      %v5527 = vsub.f32 %v370, %v5526
      %v5528 = vand.u32 %v5527, 4294901760
      %5529 = vmatpush.msra.mxu0 %v5528
      %v5530 = vand.u32 %v362, 4294901760
      %v5531 = vsub.f32 %v362, %v5530
      %v5532 = vand.u32 %v5531, 4294901760
      %5533 = vmatpush.msra.mxu0 %v5532
      %v5534 = vand.u32 %v354, 4294901760
      %v5535 = vsub.f32 %v354, %v5534
      %v5536 = vand.u32 %v5535, 4294901760
      %5537 = vmatpush.msra.mxu0 %v5536
      %v5538 = vand.u32 %v346, 4294901760
      %v5539 = vsub.f32 %v346, %v5538
      %v5540 = vand.u32 %v5539, 4294901760
      %5541 = vmatpush.msra.mxu0 %v5540
      %v5542 = vand.u32 %v338, 4294901760
      %v5543 = vsub.f32 %v338, %v5542
      %v5544 = vand.u32 %v5543, 4294901760
      %5545 = vmatpush.msra.mxu0 %v5544
      %v5546 = vand.u32 %v330, 4294901760
      %v5547 = vsub.f32 %v330, %v5546
      %v5548 = vand.u32 %v5547, 4294901760
      %5549 = vmatpush.msra.mxu0 %v5548
      %v5550 = vand.u32 %v322, 4294901760
      %v5551 = vsub.f32 %v322, %v5550
      %v5552 = vand.u32 %v5551, 4294901760
      %5553 = vmatpush.msra.mxu0 %v5552
      %v5554 = vand.u32 %v314, 4294901760
      %v5555 = vsub.f32 %v314, %v5554
      %v5556 = vand.u32 %v5555, 4294901760
      %5557 = vmatpush.msra.mxu0 %v5556
      %v5558 = vand.u32 %v306, 4294901760
      %v5559 = vsub.f32 %v306, %v5558
      %v5560 = vand.u32 %v5559, 4294901760
      %5561 = vmatpush.msra.mxu0 %v5560
      %v5562 = vand.u32 %v298, 4294901760
      %v5563 = vsub.f32 %v298, %v5562
      %v5564 = vand.u32 %v5563, 4294901760
      %5565 = vmatpush.msra.mxu0 %v5564
      %v5566 = vand.u32 %v290, 4294901760
      %v5567 = vsub.f32 %v290, %v5566
      %v5568 = vand.u32 %v5567, 4294901760
      %5569 = vmatpush.msra.mxu0 %v5568
      %v5570 = vand.u32 %v153, 4294901760
      %5571 = vmatmul.f32.gmra.mxu0 %v5570
      %v5572 = vpop.f32.mrf.mxu0
      %v5573 = vadd.f32 %v5498, %v5572
      %v5574 = vand.u32 %v155, 4294901760
      %5575 = vmatmul.f32.gmra.mxu0 %v5574
      %v5576 = vpop.f32.mrf.mxu0
      %v5577 = vadd.f32 %v5504, %v5576
      %5578 = vdwg.mxu0
      %v5579 = vand.u32 %v410, 4294901760
      %5580 = vmatpush.msra.mxu0 %v5579
      %v5581 = vand.u32 %v402, 4294901760
      %5582 = vmatpush.msra.mxu0 %v5581
      %v5583 = vand.u32 %v394, 4294901760
      %5584 = vmatpush.msra.mxu0 %v5583
      %v5585 = vand.u32 %v386, 4294901760
      %5586 = vmatpush.msra.mxu0 %v5585
      %v5587 = vand.u32 %v378, 4294901760
      %5588 = vmatpush.msra.mxu0 %v5587
      %v5589 = vand.u32 %v370, 4294901760
      %5590 = vmatpush.msra.mxu0 %v5589
      %v5591 = vand.u32 %v362, 4294901760
      %5592 = vmatpush.msra.mxu0 %v5591
      %v5593 = vand.u32 %v354, 4294901760
      %5594 = vmatpush.msra.mxu0 %v5593
      %v5595 = vand.u32 %v346, 4294901760
      %5596 = vmatpush.msra.mxu0 %v5595
      %v5597 = vand.u32 %v338, 4294901760
      %5598 = vmatpush.msra.mxu0 %v5597
      %v5599 = vand.u32 %v330, 4294901760
      %5600 = vmatpush.msra.mxu0 %v5599
      %v5601 = vand.u32 %v322, 4294901760
      %5602 = vmatpush.msra.mxu0 %v5601
      %v5603 = vand.u32 %v314, 4294901760
      %5604 = vmatpush.msra.mxu0 %v5603
      %v5605 = vand.u32 %v306, 4294901760
      %5606 = vmatpush.msra.mxu0 %v5605
      %v5607 = vand.u32 %v298, 4294901760
      %5608 = vmatpush.msra.mxu0 %v5607
      %v5609 = vand.u32 %v290, 4294901760
      %5610 = vmatpush.msra.mxu0 %v5609
      %v5611 = vand.u32 %v153, 4294901760
      %5612 = vmatmul.f32.gmra.mxu0 %v5611
      %v5613 = vpop.f32.mrf.mxu0
      %v5614 = vadd.f32 %v5573, %v5613
      %v5615 = vand.u32 %v155, 4294901760
      %5616 = vmatmul.f32.gmra.mxu0 %v5615
      %v5617 = vpop.f32.mrf.mxu0
      %v5618 = vadd.f32 %v5577, %v5617
      %5619 = vdwg.mxu0
      %v5620 = vand.u32 %v283, 4294901760
      %5621 = vmatpush.msra.mxu0 %v5620
      %v5622 = vand.u32 %v275, 4294901760
      %5623 = vmatpush.msra.mxu0 %v5622
      %v5624 = vand.u32 %v267, 4294901760
      %5625 = vmatpush.msra.mxu0 %v5624
      %v5626 = vand.u32 %v259, 4294901760
      %5627 = vmatpush.msra.mxu0 %v5626
      %v5628 = vand.u32 %v251, 4294901760
      %5629 = vmatpush.msra.mxu0 %v5628
      %v5630 = vand.u32 %v243, 4294901760
      %5631 = vmatpush.msra.mxu0 %v5630
      %v5632 = vand.u32 %v235, 4294901760
      %5633 = vmatpush.msra.mxu0 %v5632
      %v5634 = vand.u32 %v227, 4294901760
      %5635 = vmatpush.msra.mxu0 %v5634
      %v5636 = vand.u32 %v219, 4294901760
      %5637 = vmatpush.msra.mxu0 %v5636
      %v5638 = vand.u32 %v211, 4294901760
      %5639 = vmatpush.msra.mxu0 %v5638
      %v5640 = vand.u32 %v203, 4294901760
      %5641 = vmatpush.msra.mxu0 %v5640
      %v5642 = vand.u32 %v195, 4294901760
      %5643 = vmatpush.msra.mxu0 %v5642
      %v5644 = vand.u32 %v187, 4294901760
      %5645 = vmatpush.msra.mxu0 %v5644
      %v5646 = vand.u32 %v179, 4294901760
      %5647 = vmatpush.msra.mxu0 %v5646
      %v5648 = vand.u32 %v171, 4294901760
      %5649 = vmatpush.msra.mxu0 %v5648
      %v5650 = vand.u32 %v163, 4294901760
      %5651 = vmatpush.msra.mxu0 %v5650
      %v5652 = vand.u32 %v152, 4294901760
      %v5653 = vsub.f32 %v152, %v5652
      %v5654 = vand.u32 %v5653, 4294901760
      %v5655 = vsub.f32 %v5653, %v5654
      %v5656 = vand.u32 %v5655, 4294901760
      %5657 = vmatmul.f32.gmra.mxu0 %v5656
      %v5658 = vpop.f32.mrf.mxu0
      %v5659 = vadd.f32 0.0, %v5658
      %v5660 = vand.u32 %v154, 4294901760
      %v5661 = vsub.f32 %v154, %v5660
      %v5662 = vand.u32 %v5661, 4294901760
      %v5663 = vsub.f32 %v5661, %v5662
      %v5664 = vand.u32 %v5663, 4294901760
      %5665 = vmatmul.f32.gmra.mxu0 %v5664
      %v5666 = vpop.f32.mrf.mxu0
      %v5667 = vadd.f32 0.0, %v5666
      %5668 = vdwg.mxu0
      %v5669 = vand.u32 %v283, 4294901760
      %v5670 = vsub.f32 %v283, %v5669
      %v5671 = vand.u32 %v5670, 4294901760
      %v5672 = vsub.f32 %v5670, %v5671
      %v5673 = vand.u32 %v5672, 4294901760
      %5674 = vmatpush.msra.mxu0 %v5673
      %v5675 = vand.u32 %v275, 4294901760
      %v5676 = vsub.f32 %v275, %v5675
      %v5677 = vand.u32 %v5676, 4294901760
      %v5678 = vsub.f32 %v5676, %v5677
      %v5679 = vand.u32 %v5678, 4294901760
      %5680 = vmatpush.msra.mxu0 %v5679
      %v5681 = vand.u32 %v267, 4294901760
      %v5682 = vsub.f32 %v267, %v5681
      %v5683 = vand.u32 %v5682, 4294901760
      %v5684 = vsub.f32 %v5682, %v5683
      %v5685 = vand.u32 %v5684, 4294901760
      %5686 = vmatpush.msra.mxu0 %v5685
      %v5687 = vand.u32 %v259, 4294901760
      %v5688 = vsub.f32 %v259, %v5687
      %v5689 = vand.u32 %v5688, 4294901760
      %v5690 = vsub.f32 %v5688, %v5689
      %v5691 = vand.u32 %v5690, 4294901760
      %5692 = vmatpush.msra.mxu0 %v5691
      %v5693 = vand.u32 %v251, 4294901760
      %v5694 = vsub.f32 %v251, %v5693
      %v5695 = vand.u32 %v5694, 4294901760
      %v5696 = vsub.f32 %v5694, %v5695
      %v5697 = vand.u32 %v5696, 4294901760
      %5698 = vmatpush.msra.mxu0 %v5697
      %v5699 = vand.u32 %v243, 4294901760
      %v5700 = vsub.f32 %v243, %v5699
      %v5701 = vand.u32 %v5700, 4294901760
      %v5702 = vsub.f32 %v5700, %v5701
      %v5703 = vand.u32 %v5702, 4294901760
      %5704 = vmatpush.msra.mxu0 %v5703
      %v5705 = vand.u32 %v235, 4294901760
      %v5706 = vsub.f32 %v235, %v5705
      %v5707 = vand.u32 %v5706, 4294901760
      %v5708 = vsub.f32 %v5706, %v5707
      %v5709 = vand.u32 %v5708, 4294901760
      %5710 = vmatpush.msra.mxu0 %v5709
      %v5711 = vand.u32 %v227, 4294901760
      %v5712 = vsub.f32 %v227, %v5711
      %v5713 = vand.u32 %v5712, 4294901760
      %v5714 = vsub.f32 %v5712, %v5713
      %v5715 = vand.u32 %v5714, 4294901760
      %5716 = vmatpush.msra.mxu0 %v5715
      %v5717 = vand.u32 %v219, 4294901760
      %v5718 = vsub.f32 %v219, %v5717
      %v5719 = vand.u32 %v5718, 4294901760
      %v5720 = vsub.f32 %v5718, %v5719
      %v5721 = vand.u32 %v5720, 4294901760
      %5722 = vmatpush.msra.mxu0 %v5721
      %v5723 = vand.u32 %v211, 4294901760
      %v5724 = vsub.f32 %v211, %v5723
      %v5725 = vand.u32 %v5724, 4294901760
      %v5726 = vsub.f32 %v5724, %v5725
      %v5727 = vand.u32 %v5726, 4294901760
      %5728 = vmatpush.msra.mxu0 %v5727
      %v5729 = vand.u32 %v203, 4294901760
      %v5730 = vsub.f32 %v203, %v5729
      %v5731 = vand.u32 %v5730, 4294901760
      %v5732 = vsub.f32 %v5730, %v5731
      %v5733 = vand.u32 %v5732, 4294901760
      %5734 = vmatpush.msra.mxu0 %v5733
      %v5735 = vand.u32 %v195, 4294901760
      %v5736 = vsub.f32 %v195, %v5735
      %v5737 = vand.u32 %v5736, 4294901760
      %v5738 = vsub.f32 %v5736, %v5737
      %v5739 = vand.u32 %v5738, 4294901760
      %5740 = vmatpush.msra.mxu0 %v5739
      %v5741 = vand.u32 %v187, 4294901760
      %v5742 = vsub.f32 %v187, %v5741
      %v5743 = vand.u32 %v5742, 4294901760
      %v5744 = vsub.f32 %v5742, %v5743
      %v5745 = vand.u32 %v5744, 4294901760
      %5746 = vmatpush.msra.mxu0 %v5745
      %v5747 = vand.u32 %v179, 4294901760
      %v5748 = vsub.f32 %v179, %v5747
      %v5749 = vand.u32 %v5748, 4294901760
      %v5750 = vsub.f32 %v5748, %v5749
      %v5751 = vand.u32 %v5750, 4294901760
      %5752 = vmatpush.msra.mxu0 %v5751
      %v5753 = vand.u32 %v171, 4294901760
      %v5754 = vsub.f32 %v171, %v5753
      %v5755 = vand.u32 %v5754, 4294901760
      %v5756 = vsub.f32 %v5754, %v5755
      %v5757 = vand.u32 %v5756, 4294901760
      %5758 = vmatpush.msra.mxu0 %v5757
      %v5759 = vand.u32 %v163, 4294901760
      %v5760 = vsub.f32 %v163, %v5759
      %v5761 = vand.u32 %v5760, 4294901760
      %v5762 = vsub.f32 %v5760, %v5761
      %v5763 = vand.u32 %v5762, 4294901760
      %5764 = vmatpush.msra.mxu0 %v5763
      %v5765 = vand.u32 %v152, 4294901760
      %5766 = vmatmul.f32.gmra.mxu0 %v5765
      %v5767 = vpop.f32.mrf.mxu0
      %v5768 = vadd.f32 %v5659, %v5767
      %v5769 = vand.u32 %v154, 4294901760
      %5770 = vmatmul.f32.gmra.mxu0 %v5769
      %v5771 = vpop.f32.mrf.mxu0
      %v5772 = vadd.f32 %v5667, %v5771
      %5773 = vdwg.mxu0
      %v5774 = vand.u32 %v283, 4294901760
      %v5775 = vsub.f32 %v283, %v5774
      %5776 = vmatpush.msra.mxu0 %v5775
      %v5777 = vand.u32 %v275, 4294901760
      %v5778 = vsub.f32 %v275, %v5777
      %5779 = vmatpush.msra.mxu0 %v5778
      %v5780 = vand.u32 %v267, 4294901760
      %v5781 = vsub.f32 %v267, %v5780
      %5782 = vmatpush.msra.mxu0 %v5781
      %v5783 = vand.u32 %v259, 4294901760
      %v5784 = vsub.f32 %v259, %v5783
      %5785 = vmatpush.msra.mxu0 %v5784
      %v5786 = vand.u32 %v251, 4294901760
      %v5787 = vsub.f32 %v251, %v5786
      %5788 = vmatpush.msra.mxu0 %v5787
      %v5789 = vand.u32 %v243, 4294901760
      %v5790 = vsub.f32 %v243, %v5789
      %5791 = vmatpush.msra.mxu0 %v5790
      %v5792 = vand.u32 %v235, 4294901760
      %v5793 = vsub.f32 %v235, %v5792
      %5794 = vmatpush.msra.mxu0 %v5793
      %v5795 = vand.u32 %v227, 4294901760
      %v5796 = vsub.f32 %v227, %v5795
      %5797 = vmatpush.msra.mxu0 %v5796
      %v5798 = vand.u32 %v219, 4294901760
      %v5799 = vsub.f32 %v219, %v5798
      %5800 = vmatpush.msra.mxu0 %v5799
      %v5801 = vand.u32 %v211, 4294901760
      %v5802 = vsub.f32 %v211, %v5801
      %5803 = vmatpush.msra.mxu0 %v5802
      %v5804 = vand.u32 %v203, 4294901760
      %v5805 = vsub.f32 %v203, %v5804
      %5806 = vmatpush.msra.mxu0 %v5805
      %v5807 = vand.u32 %v195, 4294901760
      %v5808 = vsub.f32 %v195, %v5807
      %5809 = vmatpush.msra.mxu0 %v5808
      %v5810 = vand.u32 %v187, 4294901760
      %v5811 = vsub.f32 %v187, %v5810
      %5812 = vmatpush.msra.mxu0 %v5811
      %v5813 = vand.u32 %v179, 4294901760
      %v5814 = vsub.f32 %v179, %v5813
      %5815 = vmatpush.msra.mxu0 %v5814
      %v5816 = vand.u32 %v171, 4294901760
      %v5817 = vsub.f32 %v171, %v5816
      %5818 = vmatpush.msra.mxu0 %v5817
      %v5819 = vand.u32 %v163, 4294901760
      %v5820 = vsub.f32 %v163, %v5819
      %5821 = vmatpush.msra.mxu0 %v5820
      %v5822 = vand.u32 %v152, 4294901760
      %v5823 = vsub.f32 %v152, %v5822
      %5824 = vmatmul.f32.gmra.mxu0 %v5823
      %v5825 = vpop.f32.mrf.mxu0
      %v5826 = vadd.f32 %v5768, %v5825
      %v5827 = vand.u32 %v154, 4294901760
      %v5828 = vsub.f32 %v154, %v5827
      %5829 = vmatmul.f32.gmra.mxu0 %v5828
      %v5830 = vpop.f32.mrf.mxu0
      %v5831 = vadd.f32 %v5772, %v5830
      %5832 = vdwg.mxu0
      %v5833 = vand.u32 %v283, 4294901760
      %5834 = vmatpush.msra.mxu0 %v5833
      %v5835 = vand.u32 %v275, 4294901760
      %5836 = vmatpush.msra.mxu0 %v5835
      %v5837 = vand.u32 %v267, 4294901760
      %5838 = vmatpush.msra.mxu0 %v5837
      %v5839 = vand.u32 %v259, 4294901760
      %5840 = vmatpush.msra.mxu0 %v5839
      %v5841 = vand.u32 %v251, 4294901760
      %5842 = vmatpush.msra.mxu0 %v5841
      %v5843 = vand.u32 %v243, 4294901760
      %5844 = vmatpush.msra.mxu0 %v5843
      %v5845 = vand.u32 %v235, 4294901760
      %5846 = vmatpush.msra.mxu0 %v5845
      %v5847 = vand.u32 %v227, 4294901760
      %5848 = vmatpush.msra.mxu0 %v5847
      %v5849 = vand.u32 %v219, 4294901760
      %5850 = vmatpush.msra.mxu0 %v5849
      %v5851 = vand.u32 %v211, 4294901760
      %5852 = vmatpush.msra.mxu0 %v5851
      %v5853 = vand.u32 %v203, 4294901760
      %5854 = vmatpush.msra.mxu0 %v5853
      %v5855 = vand.u32 %v195, 4294901760
      %5856 = vmatpush.msra.mxu0 %v5855
      %v5857 = vand.u32 %v187, 4294901760
      %5858 = vmatpush.msra.mxu0 %v5857
      %v5859 = vand.u32 %v179, 4294901760
      %5860 = vmatpush.msra.mxu0 %v5859
      %v5861 = vand.u32 %v171, 4294901760
      %5862 = vmatpush.msra.mxu0 %v5861
      %v5863 = vand.u32 %v163, 4294901760
      %5864 = vmatpush.msra.mxu0 %v5863
      %v5865 = vand.u32 %v152, 4294901760
      %v5866 = vsub.f32 %v152, %v5865
      %v5867 = vand.u32 %v5866, 4294901760
      %5868 = vmatmul.f32.gmra.mxu0 %v5867
      %v5869 = vpop.f32.mrf.mxu0
      %v5870 = vadd.f32 %v5826, %v5869
      %v5871 = vand.u32 %v154, 4294901760
      %v5872 = vsub.f32 %v154, %v5871
      %v5873 = vand.u32 %v5872, 4294901760
      %5874 = vmatmul.f32.gmra.mxu0 %v5873
      %v5875 = vpop.f32.mrf.mxu0
      %v5876 = vadd.f32 %v5831, %v5875
      %5877 = vdwg.mxu0
      %v5878 = vand.u32 %v283, 4294901760
      %v5879 = vsub.f32 %v283, %v5878
      %v5880 = vand.u32 %v5879, 4294901760
      %5881 = vmatpush.msra.mxu0 %v5880
      %v5882 = vand.u32 %v275, 4294901760
      %v5883 = vsub.f32 %v275, %v5882
      %v5884 = vand.u32 %v5883, 4294901760
      %5885 = vmatpush.msra.mxu0 %v5884
      %v5886 = vand.u32 %v267, 4294901760
      %v5887 = vsub.f32 %v267, %v5886
      %v5888 = vand.u32 %v5887, 4294901760
      %5889 = vmatpush.msra.mxu0 %v5888
      %v5890 = vand.u32 %v259, 4294901760
      %v5891 = vsub.f32 %v259, %v5890
      %v5892 = vand.u32 %v5891, 4294901760
      %5893 = vmatpush.msra.mxu0 %v5892
      %v5894 = vand.u32 %v251, 4294901760
      %v5895 = vsub.f32 %v251, %v5894
      %v5896 = vand.u32 %v5895, 4294901760
      %5897 = vmatpush.msra.mxu0 %v5896
      %v5898 = vand.u32 %v243, 4294901760
      %v5899 = vsub.f32 %v243, %v5898
      %v5900 = vand.u32 %v5899, 4294901760
      %5901 = vmatpush.msra.mxu0 %v5900
      %v5902 = vand.u32 %v235, 4294901760
      %v5903 = vsub.f32 %v235, %v5902
      %v5904 = vand.u32 %v5903, 4294901760
      %5905 = vmatpush.msra.mxu0 %v5904
      %v5906 = vand.u32 %v227, 4294901760
      %v5907 = vsub.f32 %v227, %v5906
      %v5908 = vand.u32 %v5907, 4294901760
      %5909 = vmatpush.msra.mxu0 %v5908
      %v5910 = vand.u32 %v219, 4294901760
      %v5911 = vsub.f32 %v219, %v5910
      %v5912 = vand.u32 %v5911, 4294901760
      %5913 = vmatpush.msra.mxu0 %v5912
      %v5914 = vand.u32 %v211, 4294901760
      %v5915 = vsub.f32 %v211, %v5914
      %v5916 = vand.u32 %v5915, 4294901760
      %5917 = vmatpush.msra.mxu0 %v5916
      %v5918 = vand.u32 %v203, 4294901760
      %v5919 = vsub.f32 %v203, %v5918
      %v5920 = vand.u32 %v5919, 4294901760
      %5921 = vmatpush.msra.mxu0 %v5920
      %v5922 = vand.u32 %v195, 4294901760
      %v5923 = vsub.f32 %v195, %v5922
      %v5924 = vand.u32 %v5923, 4294901760
      %5925 = vmatpush.msra.mxu0 %v5924
      %v5926 = vand.u32 %v187, 4294901760
      %v5927 = vsub.f32 %v187, %v5926
      %v5928 = vand.u32 %v5927, 4294901760
      %5929 = vmatpush.msra.mxu0 %v5928
      %v5930 = vand.u32 %v179, 4294901760
      %v5931 = vsub.f32 %v179, %v5930
      %v5932 = vand.u32 %v5931, 4294901760
      %5933 = vmatpush.msra.mxu0 %v5932
      %v5934 = vand.u32 %v171, 4294901760
      %v5935 = vsub.f32 %v171, %v5934
      %v5936 = vand.u32 %v5935, 4294901760
      %5937 = vmatpush.msra.mxu0 %v5936
      %v5938 = vand.u32 %v163, 4294901760
      %v5939 = vsub.f32 %v163, %v5938
      %v5940 = vand.u32 %v5939, 4294901760
      %5941 = vmatpush.msra.mxu0 %v5940
      %v5942 = vand.u32 %v152, 4294901760
      %5943 = vmatmul.f32.gmra.mxu0 %v5942
      %v5944 = vpop.f32.mrf.mxu0
      %v5945 = vadd.f32 %v5870, %v5944
      %v5946 = vand.u32 %v154, 4294901760
      %5947 = vmatmul.f32.gmra.mxu0 %v5946
      %v5948 = vpop.f32.mrf.mxu0
      %v5949 = vadd.f32 %v5876, %v5948
      %5950 = vdwg.mxu0
      %v5951 = vand.u32 %v283, 4294901760
      %5952 = vmatpush.msra.mxu0 %v5951
      %v5953 = vand.u32 %v275, 4294901760
      %5954 = vmatpush.msra.mxu0 %v5953
      %v5955 = vand.u32 %v267, 4294901760
      %5956 = vmatpush.msra.mxu0 %v5955
      %v5957 = vand.u32 %v259, 4294901760
      %5958 = vmatpush.msra.mxu0 %v5957
      %v5959 = vand.u32 %v251, 4294901760
      %5960 = vmatpush.msra.mxu0 %v5959
      %v5961 = vand.u32 %v243, 4294901760
      %5962 = vmatpush.msra.mxu0 %v5961
      %v5963 = vand.u32 %v235, 4294901760
      %5964 = vmatpush.msra.mxu0 %v5963
      %v5965 = vand.u32 %v227, 4294901760
      %5966 = vmatpush.msra.mxu0 %v5965
      %v5967 = vand.u32 %v219, 4294901760
      %5968 = vmatpush.msra.mxu0 %v5967
      %v5969 = vand.u32 %v211, 4294901760
      %5970 = vmatpush.msra.mxu0 %v5969
      %v5971 = vand.u32 %v203, 4294901760
      %5972 = vmatpush.msra.mxu0 %v5971
      %v5973 = vand.u32 %v195, 4294901760
      %5974 = vmatpush.msra.mxu0 %v5973
      %v5975 = vand.u32 %v187, 4294901760
      %5976 = vmatpush.msra.mxu0 %v5975
      %v5977 = vand.u32 %v179, 4294901760
      %5978 = vmatpush.msra.mxu0 %v5977
      %v5979 = vand.u32 %v171, 4294901760
      %5980 = vmatpush.msra.mxu0 %v5979
      %v5981 = vand.u32 %v163, 4294901760
      %5982 = vmatpush.msra.mxu0 %v5981
      %v5983 = vand.u32 %v152, 4294901760
      %5984 = vmatmul.f32.gmra.mxu0 %v5983
      %v5985 = vpop.f32.mrf.mxu0
      %v5986 = vadd.f32 %v5945, %v5985
      %v5987 = vand.u32 %v154, 4294901760
      %5988 = vmatmul.f32.gmra.mxu0 %v5987
      %v5989 = vpop.f32.mrf.mxu0
      %v5990 = vadd.f32 %v5949, %v5989
      %5991 = vdwg.mxu0
      %v5992 = vand.u32 %v411, 4294901760
      %5993 = vmatpush.msra.mxu0 %v5992
      %v5994 = vand.u32 %v403, 4294901760
      %5995 = vmatpush.msra.mxu0 %v5994
      %v5996 = vand.u32 %v395, 4294901760
      %5997 = vmatpush.msra.mxu0 %v5996
      %v5998 = vand.u32 %v387, 4294901760
      %5999 = vmatpush.msra.mxu0 %v5998
      %v6000 = vand.u32 %v379, 4294901760
      %6001 = vmatpush.msra.mxu0 %v6000
      %v6002 = vand.u32 %v371, 4294901760
      %6003 = vmatpush.msra.mxu0 %v6002
      %v6004 = vand.u32 %v363, 4294901760
      %6005 = vmatpush.msra.mxu0 %v6004
      %v6006 = vand.u32 %v355, 4294901760
      %6007 = vmatpush.msra.mxu0 %v6006
      %v6008 = vand.u32 %v347, 4294901760
      %6009 = vmatpush.msra.mxu0 %v6008
      %v6010 = vand.u32 %v339, 4294901760
      %6011 = vmatpush.msra.mxu0 %v6010
      %v6012 = vand.u32 %v331, 4294901760
      %6013 = vmatpush.msra.mxu0 %v6012
      %v6014 = vand.u32 %v323, 4294901760
      %6015 = vmatpush.msra.mxu0 %v6014
      %v6016 = vand.u32 %v315, 4294901760
      %6017 = vmatpush.msra.mxu0 %v6016
      %v6018 = vand.u32 %v307, 4294901760
      %6019 = vmatpush.msra.mxu0 %v6018
      %v6020 = vand.u32 %v299, 4294901760
      %6021 = vmatpush.msra.mxu0 %v6020
      %v6022 = vand.u32 %v291, 4294901760
      %6023 = vmatpush.msra.mxu0 %v6022
      %v6024 = vand.u32 %v153, 4294901760
      %v6025 = vsub.f32 %v153, %v6024
      %v6026 = vand.u32 %v6025, 4294901760
      %v6027 = vsub.f32 %v6025, %v6026
      %v6028 = vand.u32 %v6027, 4294901760
      %6029 = vmatmul.f32.gmra.mxu0 %v6028
      %v6030 = vpop.f32.mrf.mxu0
      %v6031 = vadd.f32 %v5986, %v6030
      %v6032 = vand.u32 %v155, 4294901760
      %v6033 = vsub.f32 %v155, %v6032
      %v6034 = vand.u32 %v6033, 4294901760
      %v6035 = vsub.f32 %v6033, %v6034
      %v6036 = vand.u32 %v6035, 4294901760
      %6037 = vmatmul.f32.gmra.mxu0 %v6036
      %v6038 = vpop.f32.mrf.mxu0
      %v6039 = vadd.f32 %v5990, %v6038
      %6040 = vdwg.mxu0
      %v6041 = vand.u32 %v411, 4294901760
      %v6042 = vsub.f32 %v411, %v6041
      %v6043 = vand.u32 %v6042, 4294901760
      %v6044 = vsub.f32 %v6042, %v6043
      %v6045 = vand.u32 %v6044, 4294901760
      %6046 = vmatpush.msra.mxu0 %v6045
      %v6047 = vand.u32 %v403, 4294901760
      %v6048 = vsub.f32 %v403, %v6047
      %v6049 = vand.u32 %v6048, 4294901760
      %v6050 = vsub.f32 %v6048, %v6049
      %v6051 = vand.u32 %v6050, 4294901760
      %6052 = vmatpush.msra.mxu0 %v6051
      %v6053 = vand.u32 %v395, 4294901760
      %v6054 = vsub.f32 %v395, %v6053
      %v6055 = vand.u32 %v6054, 4294901760
      %v6056 = vsub.f32 %v6054, %v6055
      %v6057 = vand.u32 %v6056, 4294901760
      %6058 = vmatpush.msra.mxu0 %v6057
      %v6059 = vand.u32 %v387, 4294901760
      %v6060 = vsub.f32 %v387, %v6059
      %v6061 = vand.u32 %v6060, 4294901760
      %v6062 = vsub.f32 %v6060, %v6061
      %v6063 = vand.u32 %v6062, 4294901760
      %6064 = vmatpush.msra.mxu0 %v6063
      %v6065 = vand.u32 %v379, 4294901760
      %v6066 = vsub.f32 %v379, %v6065
      %v6067 = vand.u32 %v6066, 4294901760
      %v6068 = vsub.f32 %v6066, %v6067
      %v6069 = vand.u32 %v6068, 4294901760
      %6070 = vmatpush.msra.mxu0 %v6069
      %v6071 = vand.u32 %v371, 4294901760
      %v6072 = vsub.f32 %v371, %v6071
      %v6073 = vand.u32 %v6072, 4294901760
      %v6074 = vsub.f32 %v6072, %v6073
      %v6075 = vand.u32 %v6074, 4294901760
      %6076 = vmatpush.msra.mxu0 %v6075
      %v6077 = vand.u32 %v363, 4294901760
      %v6078 = vsub.f32 %v363, %v6077
      %v6079 = vand.u32 %v6078, 4294901760
      %v6080 = vsub.f32 %v6078, %v6079
      %v6081 = vand.u32 %v6080, 4294901760
      %6082 = vmatpush.msra.mxu0 %v6081
      %v6083 = vand.u32 %v355, 4294901760
      %v6084 = vsub.f32 %v355, %v6083
      %v6085 = vand.u32 %v6084, 4294901760
      %v6086 = vsub.f32 %v6084, %v6085
      %v6087 = vand.u32 %v6086, 4294901760
      %6088 = vmatpush.msra.mxu0 %v6087
      %v6089 = vand.u32 %v347, 4294901760
      %v6090 = vsub.f32 %v347, %v6089
      %v6091 = vand.u32 %v6090, 4294901760
      %v6092 = vsub.f32 %v6090, %v6091
      %v6093 = vand.u32 %v6092, 4294901760
      %6094 = vmatpush.msra.mxu0 %v6093
      %v6095 = vand.u32 %v339, 4294901760
      %v6096 = vsub.f32 %v339, %v6095
      %v6097 = vand.u32 %v6096, 4294901760
      %v6098 = vsub.f32 %v6096, %v6097
      %v6099 = vand.u32 %v6098, 4294901760
      %6100 = vmatpush.msra.mxu0 %v6099
      %v6101 = vand.u32 %v331, 4294901760
      %v6102 = vsub.f32 %v331, %v6101
      %v6103 = vand.u32 %v6102, 4294901760
      %v6104 = vsub.f32 %v6102, %v6103
      %v6105 = vand.u32 %v6104, 4294901760
      %6106 = vmatpush.msra.mxu0 %v6105
      %v6107 = vand.u32 %v323, 4294901760
      %v6108 = vsub.f32 %v323, %v6107
      %v6109 = vand.u32 %v6108, 4294901760
      %v6110 = vsub.f32 %v6108, %v6109
      %v6111 = vand.u32 %v6110, 4294901760
      %6112 = vmatpush.msra.mxu0 %v6111
      %v6113 = vand.u32 %v315, 4294901760
      %v6114 = vsub.f32 %v315, %v6113
      %v6115 = vand.u32 %v6114, 4294901760
      %v6116 = vsub.f32 %v6114, %v6115
      %v6117 = vand.u32 %v6116, 4294901760
      %6118 = vmatpush.msra.mxu0 %v6117
      %v6119 = vand.u32 %v307, 4294901760
      %v6120 = vsub.f32 %v307, %v6119
      %v6121 = vand.u32 %v6120, 4294901760
      %v6122 = vsub.f32 %v6120, %v6121
      %v6123 = vand.u32 %v6122, 4294901760
      %6124 = vmatpush.msra.mxu0 %v6123
      %v6125 = vand.u32 %v299, 4294901760
      %v6126 = vsub.f32 %v299, %v6125
      %v6127 = vand.u32 %v6126, 4294901760
      %v6128 = vsub.f32 %v6126, %v6127
      %v6129 = vand.u32 %v6128, 4294901760
      %6130 = vmatpush.msra.mxu0 %v6129
      %v6131 = vand.u32 %v291, 4294901760
      %v6132 = vsub.f32 %v291, %v6131
      %v6133 = vand.u32 %v6132, 4294901760
      %v6134 = vsub.f32 %v6132, %v6133
      %v6135 = vand.u32 %v6134, 4294901760
      %6136 = vmatpush.msra.mxu0 %v6135
      %v6137 = vand.u32 %v153, 4294901760
      %6138 = vmatmul.f32.gmra.mxu0 %v6137
      %v6139 = vpop.f32.mrf.mxu0
      %v6140 = vadd.f32 %v6031, %v6139
      %v6141 = vand.u32 %v155, 4294901760
      %6142 = vmatmul.f32.gmra.mxu0 %v6141
      %v6143 = vpop.f32.mrf.mxu0
      %v6144 = vadd.f32 %v6039, %v6143
      %6145 = vdwg.mxu0
      %v6146 = vand.u32 %v411, 4294901760
      %v6147 = vsub.f32 %v411, %v6146
      %6148 = vmatpush.msra.mxu0 %v6147
      %v6149 = vand.u32 %v403, 4294901760
      %v6150 = vsub.f32 %v403, %v6149
      %6151 = vmatpush.msra.mxu0 %v6150
      %v6152 = vand.u32 %v395, 4294901760
      %v6153 = vsub.f32 %v395, %v6152
      %6154 = vmatpush.msra.mxu0 %v6153
      %v6155 = vand.u32 %v387, 4294901760
      %v6156 = vsub.f32 %v387, %v6155
      %6157 = vmatpush.msra.mxu0 %v6156
      %v6158 = vand.u32 %v379, 4294901760
      %v6159 = vsub.f32 %v379, %v6158
      %6160 = vmatpush.msra.mxu0 %v6159
      %v6161 = vand.u32 %v371, 4294901760
      %v6162 = vsub.f32 %v371, %v6161
      %6163 = vmatpush.msra.mxu0 %v6162
      %v6164 = vand.u32 %v363, 4294901760
      %v6165 = vsub.f32 %v363, %v6164
      %6166 = vmatpush.msra.mxu0 %v6165
      %v6167 = vand.u32 %v355, 4294901760
      %v6168 = vsub.f32 %v355, %v6167
      %6169 = vmatpush.msra.mxu0 %v6168
      %v6170 = vand.u32 %v347, 4294901760
      %v6171 = vsub.f32 %v347, %v6170
      %6172 = vmatpush.msra.mxu0 %v6171
      %v6173 = vand.u32 %v339, 4294901760
      %v6174 = vsub.f32 %v339, %v6173
      %6175 = vmatpush.msra.mxu0 %v6174
      %v6176 = vand.u32 %v331, 4294901760
      %v6177 = vsub.f32 %v331, %v6176
      %6178 = vmatpush.msra.mxu0 %v6177
      %v6179 = vand.u32 %v323, 4294901760
      %v6180 = vsub.f32 %v323, %v6179
      %6181 = vmatpush.msra.mxu0 %v6180
      %v6182 = vand.u32 %v315, 4294901760
      %v6183 = vsub.f32 %v315, %v6182
      %6184 = vmatpush.msra.mxu0 %v6183
      %v6185 = vand.u32 %v307, 4294901760
      %v6186 = vsub.f32 %v307, %v6185
      %6187 = vmatpush.msra.mxu0 %v6186
      %v6188 = vand.u32 %v299, 4294901760
      %v6189 = vsub.f32 %v299, %v6188
      %6190 = vmatpush.msra.mxu0 %v6189
      %v6191 = vand.u32 %v291, 4294901760
      %v6192 = vsub.f32 %v291, %v6191
      %6193 = vmatpush.msra.mxu0 %v6192
      %v6194 = vand.u32 %v153, 4294901760
      %v6195 = vsub.f32 %v153, %v6194
      %6196 = vmatmul.f32.gmra.mxu0 %v6195
      %v6197 = vpop.f32.mrf.mxu0
      %v6198 = vadd.f32 %v6140, %v6197
      %v6199 = vand.u32 %v155, 4294901760
      %v6200 = vsub.f32 %v155, %v6199
      %6201 = vmatmul.f32.gmra.mxu0 %v6200
      %v6202 = vpop.f32.mrf.mxu0
      %v6203 = vadd.f32 %v6144, %v6202
      %6204 = vdwg.mxu0
      %v6205 = vand.u32 %v411, 4294901760
      %6206 = vmatpush.msra.mxu0 %v6205
      %v6207 = vand.u32 %v403, 4294901760
      %6208 = vmatpush.msra.mxu0 %v6207
      %v6209 = vand.u32 %v395, 4294901760
      %6210 = vmatpush.msra.mxu0 %v6209
      %v6211 = vand.u32 %v387, 4294901760
      %6212 = vmatpush.msra.mxu0 %v6211
      %v6213 = vand.u32 %v379, 4294901760
      %6214 = vmatpush.msra.mxu0 %v6213
      %v6215 = vand.u32 %v371, 4294901760
      %6216 = vmatpush.msra.mxu0 %v6215
      %v6217 = vand.u32 %v363, 4294901760
      %6218 = vmatpush.msra.mxu0 %v6217
      %v6219 = vand.u32 %v355, 4294901760
      %6220 = vmatpush.msra.mxu0 %v6219
      %v6221 = vand.u32 %v347, 4294901760
      %6222 = vmatpush.msra.mxu0 %v6221
      %v6223 = vand.u32 %v339, 4294901760
      %6224 = vmatpush.msra.mxu0 %v6223
      %v6225 = vand.u32 %v331, 4294901760
      %6226 = vmatpush.msra.mxu0 %v6225
      %v6227 = vand.u32 %v323, 4294901760
      %6228 = vmatpush.msra.mxu0 %v6227
      %v6229 = vand.u32 %v315, 4294901760
      %6230 = vmatpush.msra.mxu0 %v6229
      %v6231 = vand.u32 %v307, 4294901760
      %6232 = vmatpush.msra.mxu0 %v6231
      %v6233 = vand.u32 %v299, 4294901760
      %6234 = vmatpush.msra.mxu0 %v6233
      %v6235 = vand.u32 %v291, 4294901760
      %6236 = vmatpush.msra.mxu0 %v6235
      %v6237 = vand.u32 %v153, 4294901760
      %v6238 = vsub.f32 %v153, %v6237
      %v6239 = vand.u32 %v6238, 4294901760
      %6240 = vmatmul.f32.gmra.mxu0 %v6239
      %v6241 = vpop.f32.mrf.mxu0
      %v6242 = vadd.f32 %v6198, %v6241
      %v6243 = vand.u32 %v155, 4294901760
      %v6244 = vsub.f32 %v155, %v6243
      %v6245 = vand.u32 %v6244, 4294901760
      %6246 = vmatmul.f32.gmra.mxu0 %v6245
      %v6247 = vpop.f32.mrf.mxu0
      %v6248 = vadd.f32 %v6203, %v6247
      %6249 = vdwg.mxu0
      %v6250 = vand.u32 %v411, 4294901760
      %v6251 = vsub.f32 %v411, %v6250
      %v6252 = vand.u32 %v6251, 4294901760
      %6253 = vmatpush.msra.mxu0 %v6252
      %v6254 = vand.u32 %v403, 4294901760
      %v6255 = vsub.f32 %v403, %v6254
      %v6256 = vand.u32 %v6255, 4294901760
      %6257 = vmatpush.msra.mxu0 %v6256
      %v6258 = vand.u32 %v395, 4294901760
      %v6259 = vsub.f32 %v395, %v6258
      %v6260 = vand.u32 %v6259, 4294901760
      %6261 = vmatpush.msra.mxu0 %v6260
      %v6262 = vand.u32 %v387, 4294901760
      %v6263 = vsub.f32 %v387, %v6262
      %v6264 = vand.u32 %v6263, 4294901760
      %6265 = vmatpush.msra.mxu0 %v6264
      %v6266 = vand.u32 %v379, 4294901760
      %v6267 = vsub.f32 %v379, %v6266
      %v6268 = vand.u32 %v6267, 4294901760
      %6269 = vmatpush.msra.mxu0 %v6268
      %v6270 = vand.u32 %v371, 4294901760
      %v6271 = vsub.f32 %v371, %v6270
      %v6272 = vand.u32 %v6271, 4294901760
      %6273 = vmatpush.msra.mxu0 %v6272
      %v6274 = vand.u32 %v363, 4294901760
      %v6275 = vsub.f32 %v363, %v6274
      %v6276 = vand.u32 %v6275, 4294901760
      %6277 = vmatpush.msra.mxu0 %v6276
      %v6278 = vand.u32 %v355, 4294901760
      %v6279 = vsub.f32 %v355, %v6278
      %v6280 = vand.u32 %v6279, 4294901760
      %6281 = vmatpush.msra.mxu0 %v6280
      %v6282 = vand.u32 %v347, 4294901760
      %v6283 = vsub.f32 %v347, %v6282
      %v6284 = vand.u32 %v6283, 4294901760
      %6285 = vmatpush.msra.mxu0 %v6284
      %v6286 = vand.u32 %v339, 4294901760
      %v6287 = vsub.f32 %v339, %v6286
      %v6288 = vand.u32 %v6287, 4294901760
      %6289 = vmatpush.msra.mxu0 %v6288
      %v6290 = vand.u32 %v331, 4294901760
      %v6291 = vsub.f32 %v331, %v6290
      %v6292 = vand.u32 %v6291, 4294901760
      %6293 = vmatpush.msra.mxu0 %v6292
      %v6294 = vand.u32 %v323, 4294901760
      %v6295 = vsub.f32 %v323, %v6294
      %v6296 = vand.u32 %v6295, 4294901760
      %6297 = vmatpush.msra.mxu0 %v6296
      %v6298 = vand.u32 %v315, 4294901760
      %v6299 = vsub.f32 %v315, %v6298
      %v6300 = vand.u32 %v6299, 4294901760
      %6301 = vmatpush.msra.mxu0 %v6300
      %v6302 = vand.u32 %v307, 4294901760
      %v6303 = vsub.f32 %v307, %v6302
      %v6304 = vand.u32 %v6303, 4294901760
      %6305 = vmatpush.msra.mxu0 %v6304
      %v6306 = vand.u32 %v299, 4294901760
      %v6307 = vsub.f32 %v299, %v6306
      %v6308 = vand.u32 %v6307, 4294901760
      %6309 = vmatpush.msra.mxu0 %v6308
      %v6310 = vand.u32 %v291, 4294901760
      %v6311 = vsub.f32 %v291, %v6310
      %v6312 = vand.u32 %v6311, 4294901760
      %6313 = vmatpush.msra.mxu0 %v6312
      %v6314 = vand.u32 %v153, 4294901760
      %6315 = vmatmul.f32.gmra.mxu0 %v6314
      %v6316 = vpop.f32.mrf.mxu0
      %v6317 = vadd.f32 %v6242, %v6316
      %v6318 = vand.u32 %v155, 4294901760
      %6319 = vmatmul.f32.gmra.mxu0 %v6318
      %v6320 = vpop.f32.mrf.mxu0
      %v6321 = vadd.f32 %v6248, %v6320
      %6322 = vdwg.mxu0
      %v6323 = vand.u32 %v411, 4294901760
      %6324 = vmatpush.msra.mxu0 %v6323
      %v6325 = vand.u32 %v403, 4294901760
      %6326 = vmatpush.msra.mxu0 %v6325
      %v6327 = vand.u32 %v395, 4294901760
      %6328 = vmatpush.msra.mxu0 %v6327
      %v6329 = vand.u32 %v387, 4294901760
      %6330 = vmatpush.msra.mxu0 %v6329
      %v6331 = vand.u32 %v379, 4294901760
      %6332 = vmatpush.msra.mxu0 %v6331
      %v6333 = vand.u32 %v371, 4294901760
      %6334 = vmatpush.msra.mxu0 %v6333
      %v6335 = vand.u32 %v363, 4294901760
      %6336 = vmatpush.msra.mxu0 %v6335
      %v6337 = vand.u32 %v355, 4294901760
      %6338 = vmatpush.msra.mxu0 %v6337
      %v6339 = vand.u32 %v347, 4294901760
      %6340 = vmatpush.msra.mxu0 %v6339
      %v6341 = vand.u32 %v339, 4294901760
      %6342 = vmatpush.msra.mxu0 %v6341
      %v6343 = vand.u32 %v331, 4294901760
      %6344 = vmatpush.msra.mxu0 %v6343
      %v6345 = vand.u32 %v323, 4294901760
      %6346 = vmatpush.msra.mxu0 %v6345
      %v6347 = vand.u32 %v315, 4294901760
      %6348 = vmatpush.msra.mxu0 %v6347
      %v6349 = vand.u32 %v307, 4294901760
      %6350 = vmatpush.msra.mxu0 %v6349
      %v6351 = vand.u32 %v299, 4294901760
      %6352 = vmatpush.msra.mxu0 %v6351
      %v6353 = vand.u32 %v291, 4294901760
      %6354 = vmatpush.msra.mxu0 %v6353
      %v6355 = vand.u32 %v153, 4294901760
      %6356 = vmatmul.f32.gmra.mxu0 %v6355
      %v6357 = vpop.f32.mrf.mxu0
      %v6358 = vadd.f32 %v6317, %v6357
      %v6359 = vand.u32 %v155, 4294901760
      %6360 = vmatmul.f32.gmra.mxu0 %v6359
      %v6361 = vpop.f32.mrf.mxu0
      %v6362 = vadd.f32 %v6321, %v6361
      %6363 = vdwg.mxu0
      %6364 = vst [vmem:[%s150] sm:$0xff] %v1150
      %6365 = vst [vmem:[%s150 + $0x8] sm:$0xff] %v1894
      %6366 = vst [vmem:[%s150 + $0x10] sm:$0xff] %v2638
      %6367 = vst [vmem:[%s150 + $0x18] sm:$0xff] %v3382
      %6368 = vst [vmem:[%s150 + $0x20] sm:$0xff] %v4126
      %6369 = vst [vmem:[%s150 + $0x28] sm:$0xff] %v4870
      %6370 = vst [vmem:[%s150 + $0x30] sm:$0xff] %v5614
      %6371 = vst [vmem:[%s150 + $0x38] sm:$0xff] %v6358
      %6372 = vst [vmem:[%s150 + $0x40] sm:$0xff] %v1154
      %6373 = vst [vmem:[%s150 + $0x48] sm:$0xff] %v1898
      %6374 = vst [vmem:[%s150 + $0x50] sm:$0xff] %v2642
      %6375 = vst [vmem:[%s150 + $0x58] sm:$0xff] %v3386
      %6376 = vst [vmem:[%s150 + $0x60] sm:$0xff] %v4130
      %6377 = vst [vmem:[%s150 + $0x68] sm:$0xff] %v4874
      %6378 = vst [vmem:[%s150 + $0x70] sm:$0xff] %v5618
      %6379 = vst [vmem:[%s150 + $0x78] sm:$0xff] %v6362
      %s6380 = smul.u32 2, %s13
      %p6381 = scmp.lt.s32.totalorder %s6380, 3
      %s6382 = scalar_select %p6381, %s6380, 3
      %s6383 = smul.addr %s6382, 8
      %s6384 = smul.addr %s6383, 8
      %s6385 = scalar_lea.vmem %s2, %s6384
      // Predicated region
      $region29: #{quaternion_upsample.1} parent=27 // pred_check
        %p6386 = pneg %p78
      $region30: #{quaternion_upsample.1} parent=27 // pred_check_branch
        %6388 = sbr.rel (%p6386) target = $region32
      $region31: #{quaternion_upsample.1} parent=27 // pred_region
        %s6389 = smul.u32 2, %s13
      $region32: #{quaternion_upsample.1} parent=27 // pred_fallthru
        _
    $region28: #{quaternion_upsample.1} parent=5 // pred_fallthru
      _
    %p6390 = scmp.le.s32.totalorder 2, %s8
    // Predicated region
    $region33: #{quaternion_upsample.1} parent=5 // pred_check
      %p6391 = pneg %p6390
    $region34: #{quaternion_upsample.1} parent=5 // pred_check_branch
      %6393 = sbr.rel (%p6391) target = $region36
    $region35: #{quaternion_upsample.1} parent=5 // pred_region
      %s6394 = ssub.s32 %s8, 2
      // Predicated region
      $region37: #{quaternion_upsample.1} parent=35 // pred_check
        %p6395 = pneg %p84
      $region38: #{quaternion_upsample.1} parent=35 // pred_check_branch
        %6397 = sbr.rel (%p6395) target = $region40
      $region39: #{quaternion_upsample.1} parent=35 // pred_region
        %s6398 = smul.u32 2, %s14
        %p6399 = scmp.lt.s32.totalorder %s6398, 3
        %s6400 = scalar_select %p6399, %s6398, 3
        %s6401 = smul.addr %s6400, 8
        %s6402 = smul.addr %s6401, 8
        %s6403 = scalar_lea.vmem %s2, %s6402
      $region40: #{quaternion_upsample.1} parent=35 // pred_fallthru
        _
    $region36: #{quaternion_upsample.1} parent=5 // pred_fallthru
      _
  $region6: #{quaternion_upsample.1} parent=0 // loop_footer
    %s12 = sadd.s32 1, %s8
  $region7: #{quaternion_upsample.1} parent=0 // loop_footer_branch
    %7 = sbr.rel target = $region3
  $region8: #{quaternion_upsample.1} parent=0 // loop_exit
    _

</llo_original>
